<compile_context>
chip_gen: v6e
topology: v6e:2x2x1
jax: 0.10.0
libtpu: 0.0.40
codegen_flags: <defaults>
</compile_context>

<pallas_src>
import functools

import jax
import jax.numpy as jnp
from jax.experimental import pallas as pl
from jax.experimental.pallas import tpu as pltpu


# --------------------------------------------------------------------------- #
# Kernel A: embedding gather + GRU + attention + concat                        #
# --------------------------------------------------------------------------- #
def decoder_core_kernel(tok_ref,                     # scalar prefetch (SMEM)
                        emb_hbm,                     # (O, Hp) f32, HBM (pl.ANY)
                        h_ref, enc_ref,
                        wih_ref, whh_ref, bih_ref, bhh_ref,
                        wa_ref, ba_ref,
                        wch_ref, wcc_ref, bc_ref,
                        hnew_ref, attn_ref, cat_ref,
                        emb_buf, sem,
                        *, B, Bp, Hp, L):
    # ---- fused embedding lookup: token ids (SMEM) drive HBM row DMAs --------
    copies = []
    for b in range(B):                               # static loop, B is small
        cp = pltpu.make_async_copy(
            emb_hbm.at[pl.ds(tok_ref[b], 1), :],     # (1, Hp) row in HBM
            emb_buf.at[pl.ds(b, 1), :],              # (1, Hp) row in VMEM
            sem.at[b])
        cp.start()
        copies.append(cp)
    for cp in copies:
        cp.wait()

    row = jax.lax.broadcasted_iota(jnp.int32, (Bp, Hp), 0)
    x = jnp.where(row < B, emb_buf[...], 0.0)        # zero padded batch rows
    h = h_ref[...]                                   # (Bp, Hp) f32

    # ---- single-step GRU (PyTorch gate order r, z, n); bf16 MXU, f32 acc ----
    gi = jnp.dot(x.astype(jnp.bfloat16), wih_ref[...],
                 preferred_element_type=jnp.float32) + bih_ref[...]
    gh = jnp.dot(h.astype(jnp.bfloat16), whh_ref[...],
                 preferred_element_type=jnp.float32) + bhh_ref[...]
    r = jax.nn.sigmoid(gi[:, 0 * Hp:1 * Hp] + gh[:, 0 * Hp:1 * Hp])
    z = jax.nn.sigmoid(gi[:, 1 * Hp:2 * Hp] + gh[:, 1 * Hp:2 * Hp])
    n = jnp.tanh(gi[:, 2 * Hp:3 * Hp] + r * gh[:, 2 * Hp:3 * Hp])
    h_new = (1.0 - z) * n + z * h
    hnew_ref[...] = h_new

    # ---- Luong 'general' attention:
    #      energy[b,l] = h_new[b].(Wa enc[b,l] + ba)
    #                  = enc[b,l].(h_new[b] @ Wa) + h_new[b].ba
    # The M=1 "matmuls" are done as VPU multiply + cross-lane reduce (XLU),
    # leaving the MXU for the real (B,K)x(K,N) dots.
    enc = enc_ref[...].astype(jnp.float32)           # (Bp, Lp, Hp)
    q = jnp.dot(h_new.astype(jnp.bfloat16), wa_ref[...],
                preferred_element_type=jnp.float32)  # (Bp, Hp)
    bias_term = jnp.sum(h_new * ba_ref[...], axis=-1, keepdims=True)   # (Bp, 1)
    energy = jnp.sum(q[:, None, :] * enc, axis=-1) + bias_term         # (Bp, Lp)
    lane = jax.lax.broadcasted_iota(jnp.int32, energy.shape, 1)
    energy = jnp.where(lane < L, energy, -jnp.inf)   # mask padded enc positions
    m = jnp.max(energy, axis=-1, keepdims=True)
    e = jnp.exp(energy - m)
    attn = e / jnp.sum(e, axis=-1, keepdims=True)    # rows sum to 1 over real L
    attn_ref[...] = attn                             # (Bp, Lp), lane-dense

    # ---- context + concat linear + tanh (W_concat pre-split, pre-transposed)
    ctx = jnp.sum(attn[:, :, None] * enc, axis=1)    # (Bp, Hp)
    cat = jnp.tanh(
        jnp.dot(h_new.astype(jnp.bfloat16), wch_ref[...],
                preferred_element_type=jnp.float32)
        + jnp.dot(ctx.astype(jnp.bfloat16), wcc_ref[...],
                  preferred_element_type=jnp.float32)
        + bc_ref[...])
    cat_ref[...] = cat.astype(cat_ref.dtype)


# --------------------------------------------------------------------------- #
# Kernel B: vocab projection, streamed over the output-vocab axis              #
# --------------------------------------------------------------------------- #
def vocab_proj_kernel(cat_ref, wo_ref, bo_ref, out_ref):
    out_ref[...] = (jnp.dot(cat_ref[...], wo_ref[...],
                            preferred_element_type=jnp.float32) + bo_ref[...])


# --------------------------------------------------------------------------- #
# One-time preparation (NOT per decode step)                                   #
# --------------------------------------------------------------------------- #
def _rup(x, m):
    return ((x + m - 1) // m) * m


def _pad_to(a, shape):
    return jnp.pad(a, [(0, t - s) for s, t in zip(a.shape, shape)])


def prepare_params(params):
    """Pad / pre-transpose / bf16-cast all weights once (per model)."""
    H = params['W_attn'].shape[0]
    O = params['W_out'].shape[0]
    Hp, Op = _rup(H, 128), _rup(O, 128)

    def pad_gate_weight(w):          # (3H, H) -> transposed + per-gate padded (Hp, 3Hp)
        wt = jnp.zeros((Hp, 3 * Hp), jnp.float32)
        for g in range(3):
            wt = wt.at[:H, g * Hp:g * Hp + H].set(w[g * H:(g + 1) * H, :].T)
        return wt.astype(jnp.bfloat16)

    def pad_gate_bias(b):            # (1, 3H) -> (1, 3Hp), per-gate padded
        bp = jnp.zeros((1, 3 * Hp), jnp.float32)
        for g in range(3):
            bp = bp.at[:, g * Hp:g * Hp + H].set(b[:, g * H:(g + 1) * H])
        return bp

    Wc = params['W_concat']          # (H, 2H)
    return {
        'H': H, 'O': O, 'Hp': Hp, 'Op': Op,
        # embedding kept f32 (activations stay f32); padded for clean row DMAs
        'embedding': _pad_to(params['embedding'].astype(jnp.float32), (O, Hp)),
        'W_ih_T': pad_gate_weight(params['W_ih']),
        'W_hh_T': pad_gate_weight(params['W_hh']),
        'b_ih': pad_gate_bias(params['b_ih']),
        'b_hh': pad_gate_bias(params['b_hh']),
        'W_attn': _pad_to(params['W_attn'], (Hp, Hp)).astype(jnp.bfloat16),
        'b_attn': _pad_to(params['b_attn'], (1, Hp)),
        'Wc_h_T': _pad_to(Wc[:, :H].T, (Hp, Hp)).astype(jnp.bfloat16),
        'Wc_c_T': _pad_to(Wc[:, H:].T, (Hp, Hp)).astype(jnp.bfloat16),
        'b_concat': _pad_to(params['b_concat'], (1, Hp)),
        'W_out_T': _pad_to(params['W_out'].T, (Hp, Op)).astype(jnp.bfloat16),
        'b_out': _pad_to(params['b_out'], (1, Op)),
    }


def prepare_encoder_outputs(encoder_outputs, Hp):
    """(L, B, H) -> batch-major padded bf16, done ONCE per source sequence."""
    L, B, H = encoder_outputs.shape
    Bp, Lp = _rup(B, 8), _rup(L, 128)
    enc = jnp.transpose(encoder_outputs, (1, 0, 2))            # (B, L, H)
    enc_p = jnp.zeros((Bp, Lp, Hp), jnp.bfloat16)
    enc_p = enc_p.at[:B, :L, :H].set(enc.astype(jnp.bfloat16))
    return enc_p, L


# --------------------------------------------------------------------------- #
# Per-decode-step wrapper                                                      #
# --------------------------------------------------------------------------- #
def luong_attn_decoder_step(input_seq, last_hidden, enc_p, enc_len, pp):
    """input_seq: (B,) int32; last_hidden: (1, B, H); enc_p from prepare_encoder_outputs."""
    B = int(input_seq.shape[0])
    H, O, Hp, Op = pp['H'], pp['O'], pp['Hp'], pp['Op']
    Bp, Lp = int(enc_p.shape[0]), int(enc_p.shape[1])

    h_prev = jnp.zeros((Bp, Hp), jnp.float32).at[:B, :H].set(
        last_hidden[0].astype(jnp.float32))

    def vspec(shape):
        n = len(shape)
        return pl.BlockSpec(shape, lambda i, tok: (0,) * n)

    kern = functools.partial(decoder_core_kernel, B=B, Bp=Bp, Hp=Hp, L=enc_len)

    h_new_p, attn_p, cat_p = pl.pallas_call(
        kern,
        out_shape=(jax.ShapeDtypeStruct((Bp, Hp), jnp.float32),
                   jax.ShapeDtypeStruct((Bp, Lp), jnp.float32),
                   jax.ShapeDtypeStruct((Bp, Hp), jnp.bfloat16)),
        grid_spec=pltpu.PrefetchScalarGridSpec(
            num_scalar_prefetch=1,                       # input token ids -> SMEM
            grid=(1,),
            in_specs=[pl.BlockSpec(memory_space=pl.ANY), # embedding table stays in HBM
                      vspec((Bp, Hp)),                   # h_prev
                      vspec((Bp, Lp, Hp)),               # encoder outputs
                      vspec((Hp, 3 * Hp)), vspec((Hp, 3 * Hp)),   # W_ih_T, W_hh_T
                      vspec((1, 3 * Hp)), vspec((1, 3 * Hp)),     # b_ih, b_hh
                      vspec((Hp, Hp)), vspec((1, Hp)),            # W_attn, b_attn
                      vspec((Hp, Hp)), vspec((Hp, Hp)), vspec((1, Hp))],  # concat
            out_specs=[vspec((Bp, Hp)), vspec((Bp, Lp)), vspec((Bp, Hp))],
            scratch_shapes=[pltpu.VMEM((Bp, Hp), jnp.float32),
                            pltpu.SemaphoreType.DMA((B,))]),
        compiler_params=pltpu.CompilerParams(
            dimension_semantics=("arbitrary",)),
    )(input_seq, pp['embedding'], h_prev, enc_p,
      pp['W_ih_T'], pp['W_hh_T'], pp['b_ih'], pp['b_hh'],
      pp['W_attn'], pp['b_attn'],
      pp['Wc_h_T'], pp['Wc_c_T'], pp['b_concat'])

    # Vocab projection: stream (Hp, TN) weight slabs, shardable across TCs (v7x).
    TN = 512 if Op % 512 == 0 else (256 if Op % 256 == 0 else 128)
    logits_p = pl.pallas_call(
        vocab_proj_kernel,
        out_shape=jax.ShapeDtypeStruct((Bp, Op), jnp.float32),
        grid=(Op // TN,),
        in_specs=[pl.BlockSpec((Bp, Hp), lambda j: (0, 0)),
                  pl.BlockSpec((Hp, TN), lambda j: (0, j)),
                  pl.BlockSpec((1, TN), lambda j: (0, j))],
        out_specs=pl.BlockSpec((Bp, TN), lambda j: (0, j)),
        compiler_params=pltpu.CompilerParams(
            dimension_semantics=("parallel",)),
    )(cat_p, pp['W_out_T'], pp['b_out'])

    logits = logits_p[:B, :O]                       # raw logits (matches nn.Module)
    hidden = h_new_p[:B, :H][None, :, :]            # (1, B, H)
    attn_w = attn_p[:B, :enc_len][:, None, :]       # (B, 1, L)
    return logits, hidden, attn_w


# --------------------------------------------------------------------------- #
# Parameters + pure-JAX f32 reference (mirrors the PyTorch forward)            #
# --------------------------------------------------------------------------- #
def make_params(key, hidden_size, output_size):
    H, O = hidden_size, output_size
    ks = jax.random.split(key, 11)
    s = 0.1
    return {
        'embedding': jax.random.normal(ks[0], (O, H), jnp.float32) * s,
        'W_ih':      jax.random.normal(ks[1], (3 * H, H), jnp.float32) * s,
        'W_hh':      jax.random.normal(ks[2], (3 * H, H), jnp.float32) * s,
        'b_ih':      jax.random.normal(ks[3], (1, 3 * H), jnp.float32) * s,
        'b_hh':      jax.random.normal(ks[4], (1, 3 * H), jnp.float32) * s,
        'W_attn':    jax.random.normal(ks[5], (H, H), jnp.float32) * s,
        'b_attn':    jax.random.normal(ks[6], (1, H), jnp.float32) * s,
        'W_concat':  jax.random.normal(ks[7], (H, 2 * H), jnp.float32) * s,
        'b_concat':  jax.random.normal(ks[8], (1, H), jnp.float32) * s,
        'W_out':     jax.random.normal(ks[9], (O, H), jnp.float32) * s,
        'b_out':     jax.random.normal(ks[10], (1, O), jnp.float32) * s,
    }


def reference_decoder(input_seq, last_hidden, encoder_outputs, params):
    H = params['W_attn'].shape[0]
    emb = params['embedding'][input_seq]                       # (B, H)
    h = last_hidden[0]
    gi = emb @ params['W_ih'].T + params['b_ih']
    gh = h @ params['W_hh'].T + params['b_hh']
    r = jax.nn.sigmoid(gi[:, :H] + gh[:, :H])
    z = jax.nn.sigmoid(gi[:, H:2 * H] + gh[:, H:2 * H])
    n = jnp.tanh(gi[:, 2 * H:] + r * gh[:, 2 * H:])
    h_new = (1.0 - z) * n + z * h
    proj = jnp.einsum('lbh,oh->lbo', encoder_outputs, params['W_attn']) + params['b_attn']
    energy = jnp.einsum('bh,lbh->bl', h_new, proj)
    attn = jax.nn.softmax(energy, axis=-1)[:, None, :]         # (B, 1, L)
    ctx = jnp.einsum('bl,lbh->bh', attn[:, 0, :], encoder_outputs)
    cat = jnp.tanh(jnp.concatenate([h_new, ctx], axis=1) @ params['W_concat'].T
                   + params['b_concat'])
    logits = cat @ params['W_out'].T + params['b_out']
    return logits, h_new[None], attn


if __name__ == "__main__":
    B, L, H, O = 2, 8, 32, 48          # batch, encoder seq len, hidden, output vocab
    key = jax.random.PRNGKey(0)
    k_par, k_inp, k_hid, k_enc = jax.random.split(key, 4)

    params = make_params(k_par, H, O)
    input_seq = jax.random.randint(k_inp, (B,), 0, O, dtype=jnp.int32)
    last_hidden = jax.random.normal(k_hid, (1, B, H), jnp.float32) * 0.1
    encoder_outputs = jax.random.normal(k_enc, (L, B, H), jnp.float32) * 0.1

    pp = prepare_params(params)                                # once per model
    enc_p, enc_len = prepare_encoder_outputs(encoder_outputs, pp['Hp'])  # once per utterance

    output, hidden, attn_weights = luong_attn_decoder_step(
        input_seq, last_hidden, enc_p, enc_len, pp)
    jax.block_until_ready((output, hidden, attn_weights))

    assert output.shape == (B, O)
    assert hidden.shape == (1, B, H)
    assert attn_weights.shape == (B, 1, L)
    assert bool(jnp.all(jnp.isfinite(output)))
    assert bool(jnp.allclose(jnp.sum(attn_weights, axis=-1), 1.0, atol=1e-5))

    # numeric check vs pure-JAX f32 reference (kernel uses bf16 weights on the MXU)
    ref_out, ref_hid, ref_attn = reference_decoder(
        input_seq, last_hidden, encoder_outputs, params)
    assert bool(jnp.allclose(output, ref_out, atol=2e-2))
    assert bool(jnp.allclose(hidden, ref_hid, atol=2e-2))
    assert bool(jnp.allclose(attn_weights, ref_attn, atol=2e-2))

    print("KERNEL_OK")
</pallas_src>

<mosaic_0001>
module attributes {stable_mosaic.version = 11 : i64} {
  func.func @decoder_core_kernel(%arg0: i32, %arg1: memref<2xi32, #tpu.memory_space<smem>>, %arg2: memref<48x128xf32, #tpu.memory_space<any>>, %arg3: memref<8x128xf32, #tpu.memory_space<vmem>>, %arg4: memref<8x128x128xbf16, #tpu.memory_space<vmem>>, %arg5: memref<128x384xbf16, #tpu.memory_space<vmem>>, %arg6: memref<128x384xbf16, #tpu.memory_space<vmem>>, %arg7: memref<1x384xf32, #tpu.memory_space<vmem>>, %arg8: memref<1x384xf32, #tpu.memory_space<vmem>>, %arg9: memref<128x128xbf16, #tpu.memory_space<vmem>>, %arg10: memref<1x128xf32, #tpu.memory_space<vmem>>, %arg11: memref<128x128xbf16, #tpu.memory_space<vmem>>, %arg12: memref<128x128xbf16, #tpu.memory_space<vmem>>, %arg13: memref<1x128xf32, #tpu.memory_space<vmem>>, %arg14: memref<8x128xf32, #tpu.memory_space<vmem>>, %arg15: memref<8x128xf32, #tpu.memory_space<vmem>>, %arg16: memref<8x128xbf16, #tpu.memory_space<vmem>>, %arg17: memref<8x128xf32, #tpu.memory_space<vmem>>, %arg18: memref<2x!tpu.dma_semaphore, #tpu.memory_space<semaphore_mem>>) attributes {dimension_semantics = [#tpu.dimension_semantics<arbitrary>], iteration_bounds = array<i64: 1>, scalar_prefetch = 1 : i64, scratch_operands = 2 : i64, tpu.core_type = #tpu.core_type<tc>, window_params = [{}, {pipeline_mode = #tpu.pipeline_mode<synchronous>, transform_indices = @transform_1, window_bounds = array<i64: 8, 128>}, {pipeline_mode = #tpu.pipeline_mode<synchronous>, transform_indices = @transform_2, window_bounds = array<i64: 8, 128, 128>}, {pipeline_mode = #tpu.pipeline_mode<synchronous>, transform_indices = @transform_3, window_bounds = array<i64: 128, 384>}, {pipeline_mode = #tpu.pipeline_mode<synchronous>, transform_indices = @transform_4, window_bounds = array<i64: 128, 384>}, {pipeline_mode = #tpu.pipeline_mode<synchronous>, transform_indices = @transform_5, window_bounds = array<i64: 1, 384>}, {pipeline_mode = #tpu.pipeline_mode<synchronous>, transform_indices = @transform_6, window_bounds = array<i64: 1, 384>}, {pipeline_mode = #tpu.pipeline_mode<synchronous>, transform_indices = @transform_7, window_bounds = array<i64: 128, 128>}, {pipeline_mode = #tpu.pipeline_mode<synchronous>, transform_indices = @transform_8, window_bounds = array<i64: 1, 128>}, {pipeline_mode = #tpu.pipeline_mode<synchronous>, transform_indices = @transform_9, window_bounds = array<i64: 128, 128>}, {pipeline_mode = #tpu.pipeline_mode<synchronous>, transform_indices = @transform_10, window_bounds = array<i64: 128, 128>}, {pipeline_mode = #tpu.pipeline_mode<synchronous>, transform_indices = @transform_11, window_bounds = array<i64: 1, 128>}, {pipeline_mode = #tpu.pipeline_mode<synchronous>, transform_indices = @transform_12, window_bounds = array<i64: 8, 128>}, {pipeline_mode = #tpu.pipeline_mode<synchronous>, transform_indices = @transform_13, window_bounds = array<i64: 8, 128>}, {pipeline_mode = #tpu.pipeline_mode<synchronous>, transform_indices = @transform_14, window_bounds = array<i64: 8, 128>}]} {
    %c0 = arith.constant 0 : index
    %0 = memref.load %arg1[%c0] : memref<2xi32, #tpu.memory_space<smem>>
    %c0_i32 = arith.constant 0 : i32
    %c0_i32_0 = arith.constant 0 : i32
    %1 = tpu.memref_slice %arg2[%0, %c0_i32_0] : memref<48x128xf32, #tpu.memory_space<any>> -> memref<1x128xf32, #tpu.memory_space<any>>
    %c0_i32_1 = arith.constant 0 : i32
    %c0_i32_2 = arith.constant 0 : i32
    %2 = tpu.memref_slice %arg17[%c0_i32_1, %c0_i32_2] : memref<8x128xf32, #tpu.memory_space<vmem>> -> memref<1x128xf32, #tpu.memory_space<vmem>>
    %3 = tpu.memref_slice %arg18[%c0_i32] : memref<2x!tpu.dma_semaphore, #tpu.memory_space<semaphore_mem>> -> memref<1x!tpu.dma_semaphore, #tpu.memory_space<semaphore_mem>>
    %4 = tpu.memref_squeeze %3 : memref<1x!tpu.dma_semaphore, #tpu.memory_space<semaphore_mem>> -> memref<!tpu.dma_semaphore, #tpu.memory_space<semaphore_mem>>
    tpu.enqueue_dma source(%1 : memref<1x128xf32, #tpu.memory_space<any>>) target(%2 : memref<1x128xf32, #tpu.memory_space<vmem>>) target_semaphore(%4 : memref<!tpu.dma_semaphore, #tpu.memory_space<semaphore_mem>>)
    %c1 = arith.constant 1 : index
    %5 = memref.load %arg1[%c1] : memref<2xi32, #tpu.memory_space<smem>>
    %c1_i32 = arith.constant 1 : i32
    %c0_i32_3 = arith.constant 0 : i32
    %6 = tpu.memref_slice %arg2[%5, %c0_i32_3] : memref<48x128xf32, #tpu.memory_space<any>> -> memref<1x128xf32, #tpu.memory_space<any>>
    %c1_i32_4 = arith.constant 1 : i32
    %c0_i32_5 = arith.constant 0 : i32
    %7 = tpu.memref_slice %arg17[%c1_i32_4, %c0_i32_5] : memref<8x128xf32, #tpu.memory_space<vmem>> -> memref<1x128xf32, #tpu.memory_space<vmem>>
    %8 = tpu.memref_slice %arg18[%c1_i32] : memref<2x!tpu.dma_semaphore, #tpu.memory_space<semaphore_mem>> -> memref<1x!tpu.dma_semaphore, #tpu.memory_space<semaphore_mem>>
    %9 = tpu.memref_squeeze %8 : memref<1x!tpu.dma_semaphore, #tpu.memory_space<semaphore_mem>> -> memref<!tpu.dma_semaphore, #tpu.memory_space<semaphore_mem>>
    tpu.enqueue_dma source(%6 : memref<1x128xf32, #tpu.memory_space<any>>) target(%7 : memref<1x128xf32, #tpu.memory_space<vmem>>) target_semaphore(%9 : memref<!tpu.dma_semaphore, #tpu.memory_space<semaphore_mem>>)
    %c0_i32_6 = arith.constant 0 : i32
    %c0_i32_7 = arith.constant 0 : i32
    %10 = tpu.memref_slice %arg2[%0, %c0_i32_7] : memref<48x128xf32, #tpu.memory_space<any>> -> memref<1x128xf32, #tpu.memory_space<any>>
    %c0_i32_8 = arith.constant 0 : i32
    %c0_i32_9 = arith.constant 0 : i32
    %11 = tpu.memref_slice %arg17[%c0_i32_8, %c0_i32_9] : memref<8x128xf32, #tpu.memory_space<vmem>> -> memref<1x128xf32, #tpu.memory_space<vmem>>
    %12 = tpu.memref_slice %arg18[%c0_i32_6] : memref<2x!tpu.dma_semaphore, #tpu.memory_space<semaphore_mem>> -> memref<1x!tpu.dma_semaphore, #tpu.memory_space<semaphore_mem>>
    %13 = tpu.memref_squeeze %12 : memref<1x!tpu.dma_semaphore, #tpu.memory_space<semaphore_mem>> -> memref<!tpu.dma_semaphore, #tpu.memory_space<semaphore_mem>>
    tpu.wait_dma2 semaphore(%13 : memref<!tpu.dma_semaphore, #tpu.memory_space<semaphore_mem>>) src(%10 : memref<1x128xf32, #tpu.memory_space<any>>) dst(%11 : memref<1x128xf32, #tpu.memory_space<vmem>>)
    %c1_i32_10 = arith.constant 1 : i32
    %c0_i32_11 = arith.constant 0 : i32
    %14 = tpu.memref_slice %arg2[%5, %c0_i32_11] : memref<48x128xf32, #tpu.memory_space<any>> -> memref<1x128xf32, #tpu.memory_space<any>>
    %c1_i32_12 = arith.constant 1 : i32
    %c0_i32_13 = arith.constant 0 : i32
    %15 = tpu.memref_slice %arg17[%c1_i32_12, %c0_i32_13] : memref<8x128xf32, #tpu.memory_space<vmem>> -> memref<1x128xf32, #tpu.memory_space<vmem>>
    %16 = tpu.memref_slice %arg18[%c1_i32_10] : memref<2x!tpu.dma_semaphore, #tpu.memory_space<semaphore_mem>> -> memref<1x!tpu.dma_semaphore, #tpu.memory_space<semaphore_mem>>
    %17 = tpu.memref_squeeze %16 : memref<1x!tpu.dma_semaphore, #tpu.memory_space<semaphore_mem>> -> memref<!tpu.dma_semaphore, #tpu.memory_space<semaphore_mem>>
    tpu.wait_dma2 semaphore(%17 : memref<!tpu.dma_semaphore, #tpu.memory_space<semaphore_mem>>) src(%14 : memref<1x128xf32, #tpu.memory_space<any>>) dst(%15 : memref<1x128xf32, #tpu.memory_space<vmem>>)
    %18 = tpu.iota {dimensions = array<i32: 0>} : vector<8x128xi32>
    %c2_i32 = arith.constant 2 : i32
    %19 = vector.broadcast %c2_i32 : i32 to vector<8x128xi32>
    %20 = arith.cmpi slt, %18, %19 : vector<8x128xi32>
    %c0_14 = arith.constant 0 : index
    %c0_15 = arith.constant 0 : index
    %21 = vector.load %arg17[%c0_14, %c0_15] : memref<8x128xf32, #tpu.memory_space<vmem>>, vector<8x128xf32>
    %cst = arith.constant 0.000000e+00 : f32
    %22 = vector.broadcast %cst : f32 to vector<8x128xf32>
    %23 = arith.select %20, %21, %22 : vector<8x128xi1>, vector<8x128xf32>
    %c0_16 = arith.constant 0 : index
    %c0_17 = arith.constant 0 : index
    %24 = vector.load %arg3[%c0_16, %c0_17] : memref<8x128xf32, #tpu.memory_space<vmem>>, vector<8x128xf32>
    %25 = arith.truncf %23 : vector<8x128xf32> to vector<8x128xbf16>
    %c0_18 = arith.constant 0 : index
    %c0_19 = arith.constant 0 : index
    %26 = vector.load %arg5[%c0_18, %c0_19] : memref<128x384xbf16, #tpu.memory_space<vmem>>, vector<128x384xbf16>
    %cst_20 = arith.constant dense<0.000000e+00> : vector<8x384xf32>
    %27 = tpu.matmul %25, %26, %cst_20 {dimension_numbers = #tpu.dot_dimension_numbers<[1], [0], [0], [1], [0, 0, 1, 1], [], []>} : vector<8x128xbf16>, vector<128x384xbf16>, vector<8x384xf32> -> vector<8x384xf32>
    %c0_21 = arith.constant 0 : index
    %c0_22 = arith.constant 0 : index
    %28 = vector.load %arg7[%c0_21, %c0_22] : memref<1x384xf32, #tpu.memory_space<vmem>>, vector<1x384xf32>
    %29 = vector.broadcast %28 : vector<1x384xf32> to vector<8x384xf32>
    %30 = arith.addf %27, %29 : vector<8x384xf32>
    %31 = arith.truncf %24 : vector<8x128xf32> to vector<8x128xbf16>
    %c0_23 = arith.constant 0 : index
    %c0_24 = arith.constant 0 : index
    %32 = vector.load %arg6[%c0_23, %c0_24] : memref<128x384xbf16, #tpu.memory_space<vmem>>, vector<128x384xbf16>
    %cst_25 = arith.constant dense<0.000000e+00> : vector<8x384xf32>
    %33 = tpu.matmul %31, %32, %cst_25 {dimension_numbers = #tpu.dot_dimension_numbers<[1], [0], [0], [1], [0, 0, 1, 1], [], []>} : vector<8x128xbf16>, vector<128x384xbf16>, vector<8x384xf32> -> vector<8x384xf32>
    %c0_26 = arith.constant 0 : index
    %c0_27 = arith.constant 0 : index
    %34 = vector.load %arg8[%c0_26, %c0_27] : memref<1x384xf32, #tpu.memory_space<vmem>>, vector<1x384xf32>
    %35 = vector.broadcast %34 : vector<1x384xf32> to vector<8x384xf32>
    %36 = arith.addf %33, %35 : vector<8x384xf32>
    %37 = vector.extract_strided_slice %30 {offsets = [0, 0], sizes = [8, 128], strides = [1, 1]} : vector<8x384xf32> to vector<8x128xf32>
    %38 = vector.extract_strided_slice %36 {offsets = [0, 0], sizes = [8, 128], strides = [1, 1]} : vector<8x384xf32> to vector<8x128xf32>
    %39 = arith.addf %37, %38 : vector<8x128xf32>
    %40 = arith.negf %39 : vector<8x128xf32>
    %41 = math.exp %40 : vector<8x128xf32>
    %cst_28 = arith.constant 1.000000e+00 : f32
    %42 = vector.broadcast %cst_28 : f32 to vector<8x128xf32>
    %43 = arith.addf %42, %41 : vector<8x128xf32>
    %44 = arith.divf %42, %43 : vector<8x128xf32>
    %45 = vector.extract_strided_slice %30 {offsets = [0, 128], sizes = [8, 128], strides = [1, 1]} : vector<8x384xf32> to vector<8x128xf32>
    %46 = vector.extract_strided_slice %36 {offsets = [0, 128], sizes = [8, 128], strides = [1, 1]} : vector<8x384xf32> to vector<8x128xf32>
    %47 = arith.addf %45, %46 : vector<8x128xf32>
    %48 = arith.negf %47 : vector<8x128xf32>
    %49 = math.exp %48 : vector<8x128xf32>
    %cst_29 = arith.constant 1.000000e+00 : f32
    %50 = vector.broadcast %cst_29 : f32 to vector<8x128xf32>
    %51 = arith.addf %50, %49 : vector<8x128xf32>
    %52 = arith.divf %50, %51 : vector<8x128xf32>
    %53 = vector.extract_strided_slice %30 {offsets = [0, 256], sizes = [8, 128], strides = [1, 1]} : vector<8x384xf32> to vector<8x128xf32>
    %54 = vector.extract_strided_slice %36 {offsets = [0, 256], sizes = [8, 128], strides = [1, 1]} : vector<8x384xf32> to vector<8x128xf32>
    %55 = arith.mulf %44, %54 : vector<8x128xf32>
    %56 = arith.addf %53, %55 : vector<8x128xf32>
    %57 = math.tanh %56 : vector<8x128xf32>
    %cst_30 = arith.constant 1.000000e+00 : f32
    %58 = vector.broadcast %cst_30 : f32 to vector<8x128xf32>
    %59 = arith.subf %58, %52 : vector<8x128xf32>
    %60 = arith.mulf %59, %57 : vector<8x128xf32>
    %61 = arith.mulf %52, %24 : vector<8x128xf32>
    %62 = arith.addf %60, %61 : vector<8x128xf32>
    %c0_31 = arith.constant 0 : index
    %c0_32 = arith.constant 0 : index
    %63 = vector.load %arg14[%c0_31, %c0_32] : memref<8x128xf32, #tpu.memory_space<vmem>>, vector<8x128xf32>
    tpu.vector_store %arg14[%c0_31, %c0_32], %62 {strides = array<i32>} : memref<8x128xf32, #tpu.memory_space<vmem>>, vector<8x128xf32>,
    %c0_33 = arith.constant 0 : index
    %c0_34 = arith.constant 0 : index
    %c0_35 = arith.constant 0 : index
    %64 = vector.load %arg4[%c0_33, %c0_34, %c0_35] : memref<8x128x128xbf16, #tpu.memory_space<vmem>>, vector<8x128x128xbf16>
    %65 = arith.extf %64 : vector<8x128x128xbf16> to vector<8x128x128xf32>
    %66 = arith.truncf %62 : vector<8x128xf32> to vector<8x128xbf16>
    %c0_36 = arith.constant 0 : index
    %c0_37 = arith.constant 0 : index
    %67 = vector.load %arg9[%c0_36, %c0_37] : memref<128x128xbf16, #tpu.memory_space<vmem>>, vector<128x128xbf16>
    %cst_38 = arith.constant dense<0.000000e+00> : vector<8x128xf32>
    %68 = tpu.matmul %66, %67, %cst_38 {dimension_numbers = #tpu.dot_dimension_numbers<[1], [0], [0], [1], [0, 0, 1, 1], [], []>} : vector<8x128xbf16>, vector<128x128xbf16>, vector<8x128xf32> -> vector<8x128xf32>
    %c0_39 = arith.constant 0 : index
    %c0_40 = arith.constant 0 : index
    %69 = vector.load %arg10[%c0_39, %c0_40] : memref<1x128xf32, #tpu.memory_space<vmem>>, vector<1x128xf32>
    %70 = vector.broadcast %69 : vector<1x128xf32> to vector<8x128xf32>
    %71 = arith.mulf %62, %70 : vector<8x128xf32>
    %cst_41 = arith.constant dense<0.000000e+00> : vector<8xf32>
    %72 = vector.multi_reduction <add>, %71, %cst_41 [1] : vector<8x128xf32> to vector<8xf32>
    %73 = vector.shape_cast %72 : vector<8xf32> to vector<8x1xf32>
    %74 = vector.shape_cast %68 : vector<8x128xf32> to vector<8x1x128xf32>
    %75 = vector.broadcast %74 : vector<8x1x128xf32> to vector<8x128x128xf32>
    %76 = arith.mulf %75, %65 : vector<8x128x128xf32>
    %cst_42 = arith.constant dense<0.000000e+00> : vector<8x128xf32>
    %77 = vector.multi_reduction <add>, %76, %cst_42 [2] : vector<8x128x128xf32> to vector<8x128xf32>
    %78 = vector.broadcast %73 : vector<8x1xf32> to vector<8x128xf32>
    %79 = arith.addf %77, %78 : vector<8x128xf32>
    %80 = tpu.iota {dimensions = array<i32: 1>} : vector<8x128xi32>
    %c8_i32 = arith.constant 8 : i32
    %81 = vector.broadcast %c8_i32 : i32 to vector<8x128xi32>
    %82 = arith.cmpi slt, %80, %81 : vector<8x128xi32>
    %cst_43 = arith.constant 0xFF800000 : f32
    %83 = vector.broadcast %cst_43 : f32 to vector<8x128xf32>
    %84 = arith.select %82, %79, %83 : vector<8x128xi1>, vector<8x128xf32>
    %cst_44 = arith.constant dense<0xFF800000> : vector<8xf32>
    %85 = vector.multi_reduction <maximumf>, %84, %cst_44 [1] : vector<8x128xf32> to vector<8xf32>
    %86 = vector.shape_cast %85 : vector<8xf32> to vector<8x1xf32>
    %87 = vector.broadcast %86 : vector<8x1xf32> to vector<8x128xf32>
    %88 = arith.subf %84, %87 : vector<8x128xf32>
    %89 = math.exp %88 : vector<8x128xf32>
    %cst_45 = arith.constant dense<0.000000e+00> : vector<8xf32>
    %90 = vector.multi_reduction <add>, %89, %cst_45 [1] : vector<8x128xf32> to vector<8xf32>
    %91 = vector.shape_cast %90 : vector<8xf32> to vector<8x1xf32>
    %92 = vector.broadcast %91 : vector<8x1xf32> to vector<8x128xf32>
    %93 = arith.divf %89, %92 : vector<8x128xf32>
    %c0_46 = arith.constant 0 : index
    %c0_47 = arith.constant 0 : index
    %94 = vector.load %arg15[%c0_46, %c0_47] : memref<8x128xf32, #tpu.memory_space<vmem>>, vector<8x128xf32>
    tpu.vector_store %arg15[%c0_46, %c0_47], %93 {strides = array<i32>} : memref<8x128xf32, #tpu.memory_space<vmem>>, vector<8x128xf32>,
    %95 = vector.shape_cast %93 : vector<8x128xf32> to vector<8x128x1xf32>
    %96 = vector.broadcast %95 : vector<8x128x1xf32> to vector<8x128x128xf32>
    %97 = arith.mulf %96, %65 : vector<8x128x128xf32>
    %cst_48 = arith.constant dense<0.000000e+00> : vector<8x128xf32>
    %98 = vector.multi_reduction <add>, %97, %cst_48 [1] : vector<8x128x128xf32> to vector<8x128xf32>
    %99 = arith.truncf %62 : vector<8x128xf32> to vector<8x128xbf16>
    %c0_49 = arith.constant 0 : index
    %c0_50 = arith.constant 0 : index
    %100 = vector.load %arg11[%c0_49, %c0_50] : memref<128x128xbf16, #tpu.memory_space<vmem>>, vector<128x128xbf16>
    %cst_51 = arith.constant dense<0.000000e+00> : vector<8x128xf32>
    %101 = tpu.matmul %99, %100, %cst_51 {dimension_numbers = #tpu.dot_dimension_numbers<[1], [0], [0], [1], [0, 0, 1, 1], [], []>} : vector<8x128xbf16>, vector<128x128xbf16>, vector<8x128xf32> -> vector<8x128xf32>
    %102 = arith.truncf %98 : vector<8x128xf32> to vector<8x128xbf16>
    %c0_52 = arith.constant 0 : index
    %c0_53 = arith.constant 0 : index
    %103 = vector.load %arg12[%c0_52, %c0_53] : memref<128x128xbf16, #tpu.memory_space<vmem>>, vector<128x128xbf16>
    %cst_54 = arith.constant dense<0.000000e+00> : vector<8x128xf32>
    %104 = tpu.matmul %102, %103, %cst_54 {dimension_numbers = #tpu.dot_dimension_numbers<[1], [0], [0], [1], [0, 0, 1, 1], [], []>} : vector<8x128xbf16>, vector<128x128xbf16>, vector<8x128xf32> -> vector<8x128xf32>
    %105 = arith.addf %101, %104 : vector<8x128xf32>
    %c0_55 = arith.constant 0 : index
    %c0_56 = arith.constant 0 : index
    %106 = vector.load %arg13[%c0_55, %c0_56] : memref<1x128xf32, #tpu.memory_space<vmem>>, vector<1x128xf32>
    %107 = vector.broadcast %106 : vector<1x128xf32> to vector<8x128xf32>
    %108 = arith.addf %105, %107 : vector<8x128xf32>
    %109 = math.tanh %108 : vector<8x128xf32>
    %110 = arith.truncf %109 : vector<8x128xf32> to vector<8x128xbf16>
    %c0_57 = arith.constant 0 : index
    %c0_58 = arith.constant 0 : index
    %111 = vector.load %arg16[%c0_57, %c0_58] : memref<8x128xbf16, #tpu.memory_space<vmem>>, vector<8x128xbf16>
    tpu.vector_store %arg16[%c0_57, %c0_58], %110 {strides = array<i32>} : memref<8x128xbf16, #tpu.memory_space<vmem>>, vector<8x128xbf16>,
    return
  }
  func.func @transform_1(%arg0: i32, %arg1: memref<2xi32, #tpu.memory_space<smem>>) -> (i32, i32) {
    %c0_i32 = arith.constant 0 : i32
    %c0_i32_0 = arith.constant 0 : i32
    %c0_i32_1 = arith.constant 0 : i32
    return %c0_i32, %c0_i32_0 : i32, i32
  }
  func.func @transform_2(%arg0: i32, %arg1: memref<2xi32, #tpu.memory_space<smem>>) -> (i32, i32, i32) {
    %c0_i32 = arith.constant 0 : i32
    %c0_i32_0 = arith.constant 0 : i32
    %c0_i32_1 = arith.constant 0 : i32
    %c0_i32_2 = arith.constant 0 : i32
    return %c0_i32, %c0_i32_0, %c0_i32_1 : i32, i32, i32
  }
  func.func @transform_3(%arg0: i32, %arg1: memref<2xi32, #tpu.memory_space<smem>>) -> (i32, i32) {
    %c0_i32 = arith.constant 0 : i32
    %c0_i32_0 = arith.constant 0 : i32
    %c0_i32_1 = arith.constant 0 : i32
    return %c0_i32, %c0_i32_0 : i32, i32
  }
  func.func @transform_4(%arg0: i32, %arg1: memref<2xi32, #tpu.memory_space<smem>>) -> (i32, i32) {
    %c0_i32 = arith.constant 0 : i32
    %c0_i32_0 = arith.constant 0 : i32
    %c0_i32_1 = arith.constant 0 : i32
    return %c0_i32, %c0_i32_0 : i32, i32
  }
  func.func @transform_5(%arg0: i32, %arg1: memref<2xi32, #tpu.memory_space<smem>>) -> (i32, i32) {
    %c0_i32 = arith.constant 0 : i32
    %c0_i32_0 = arith.constant 0 : i32
    %c0_i32_1 = arith.constant 0 : i32
    return %c0_i32, %c0_i32_0 : i32, i32
  }
  func.func @transform_6(%arg0: i32, %arg1: memref<2xi32, #tpu.memory_space<smem>>) -> (i32, i32) {
    %c0_i32 = arith.constant 0 : i32
    %c0_i32_0 = arith.constant 0 : i32
    %c0_i32_1 = arith.constant 0 : i32
    return %c0_i32, %c0_i32_0 : i32, i32
  }
  func.func @transform_7(%arg0: i32, %arg1: memref<2xi32, #tpu.memory_space<smem>>) -> (i32, i32) {
    %c0_i32 = arith.constant 0 : i32
    %c0_i32_0 = arith.constant 0 : i32
    %c0_i32_1 = arith.constant 0 : i32
    return %c0_i32, %c0_i32_0 : i32, i32
  }
  func.func @transform_8(%arg0: i32, %arg1: memref<2xi32, #tpu.memory_space<smem>>) -> (i32, i32) {
    %c0_i32 = arith.constant 0 : i32
    %c0_i32_0 = arith.constant 0 : i32
    %c0_i32_1 = arith.constant 0 : i32
    return %c0_i32, %c0_i32_0 : i32, i32
  }
  func.func @transform_9(%arg0: i32, %arg1: memref<2xi32, #tpu.memory_space<smem>>) -> (i32, i32) {
    %c0_i32 = arith.constant 0 : i32
    %c0_i32_0 = arith.constant 0 : i32
    %c0_i32_1 = arith.constant 0 : i32
    return %c0_i32, %c0_i32_0 : i32, i32
  }
  func.func @transform_10(%arg0: i32, %arg1: memref<2xi32, #tpu.memory_space<smem>>) -> (i32, i32) {
    %c0_i32 = arith.constant 0 : i32
    %c0_i32_0 = arith.constant 0 : i32
    %c0_i32_1 = arith.constant 0 : i32
    return %c0_i32, %c0_i32_0 : i32, i32
  }
  func.func @transform_11(%arg0: i32, %arg1: memref<2xi32, #tpu.memory_space<smem>>) -> (i32, i32) {
    %c0_i32 = arith.constant 0 : i32
    %c0_i32_0 = arith.constant 0 : i32
    %c0_i32_1 = arith.constant 0 : i32
    return %c0_i32, %c0_i32_0 : i32, i32
  }
  func.func @transform_12(%arg0: i32, %arg1: memref<2xi32, #tpu.memory_space<smem>>) -> (i32, i32) {
    %c0_i32 = arith.constant 0 : i32
    %c0_i32_0 = arith.constant 0 : i32
    %c0_i32_1 = arith.constant 0 : i32
    return %c0_i32, %c0_i32_0 : i32, i32
  }
  func.func @transform_13(%arg0: i32, %arg1: memref<2xi32, #tpu.memory_space<smem>>) -> (i32, i32) {
    %c0_i32 = arith.constant 0 : i32
    %c0_i32_0 = arith.constant 0 : i32
    %c0_i32_1 = arith.constant 0 : i32
    return %c0_i32, %c0_i32_0 : i32, i32
  }
  func.func @transform_14(%arg0: i32, %arg1: memref<2xi32, #tpu.memory_space<smem>>) -> (i32, i32) {
    %c0_i32 = arith.constant 0 : i32
    %c0_i32_0 = arith.constant 0 : i32
    %c0_i32_1 = arith.constant 0 : i32
    return %c0_i32, %c0_i32_0 : i32, i32
  }
}

</mosaic_0001>

<llo_original>
// kernel: tpu_custom_call.1
$region0: #{tpu_custom_call.1}
  #allocation0 [shape = 'u32[]', space=smem, size = 0x4, offset = 0x4, fixed_abs, tag = 'smem constant byte address 0x4 - core index']
  #allocation1 [shape = 'u32[144,128]{1,0:T(1,128)}', space=vmem, size = 0x12000, scoped, tag = 'internal scratch']
  #allocation2 [shape = 'f32[8,128]{1,0:T(8,128)}', space=vmem, size = 0x1000, scoped, tag = 'scratch operand']
  #allocation3 [shape = 's32[2]{0}', space=sflag, size = 0x8, scoped, tag = 'scratch operand']
  #allocation4 [shape = 's32[1]{0}', space=sflag, size = 0x4, scoped, tag = 'scoped memory for tpu_custom_call.1']
  #allocation5 [shape = 'u8[512]{0}', space=smem, size = 0x200, scoped, tag = 'prefetched SMEM operand 0']
  #allocation22 [shape = 's32[]', space=sflag, size = 0x4, offset = 0, fixed_abs, tag = 'sflag constant byte address 0x0 - dummy sync flag']
  #allocation23 [shape = 's32[]', space=sflag, size = 0x4, offset = 0, fixed_abs, tag = 'sflag constant byte address 0x0 - dummy sync flag']
  #allocation24 [shape = 'u32[]', space=smem, size = 0x4, offset = 0x44, fixed_abs, tag = 'smem constant byte address 0x44 - assertion arg 0']
  #allocation25 [shape = 'u32[]', space=smem, size = 0x4, offset = 0x48, fixed_abs, tag = 'smem constant byte address 0x48 - assertion arg 1']
  #allocation26 [shape = 's32[]', space=sflag, size = 0x4, offset = 0, fixed_abs, tag = 'sflag constant byte address 0x0 - dummy sync flag']
  #allocation27 [shape = 's32[]', space=sflag, size = 0x4, offset = 0, fixed_abs, tag = 'sflag constant byte address 0x0 - dummy sync flag']
  %s0 = inlined_call_operand.hbm [shape: s32[2], index: 0, kind: input, shape index: {}]
  %s1 = inlined_call_operand.hbm [shape: f32[48,128], index: 1, kind: input, shape index: {}]
  %s2 = inlined_call_operand.hbm [shape: f32[8,128], index: 2, kind: input, shape index: {}]
  %s3 = inlined_call_operand.hbm [shape: bf16[8,128,128], index: 3, kind: input, shape index: {}]
  %s4 = inlined_call_operand.hbm [shape: bf16[128,384], index: 4, kind: input, shape index: {}]
  %s5 = inlined_call_operand.hbm [shape: bf16[128,384], index: 5, kind: input, shape index: {}]
  %s6 = inlined_call_operand.vmem [shape: f32[1,384], index: 6, kind: input, shape index: {}]
  %s7 = inlined_call_operand.vmem [shape: f32[1,384], index: 7, kind: input, shape index: {}]
  %s8 = inlined_call_operand.hbm [shape: bf16[128,128], index: 8, kind: input, shape index: {}]
  %s9 = inlined_call_operand.vmem [shape: f32[1,128], index: 9, kind: input, shape index: {}]
  %s10 = inlined_call_operand.hbm [shape: bf16[128,128], index: 10, kind: input, shape index: {}]
  %s11 = inlined_call_operand.hbm [shape: bf16[128,128], index: 11, kind: input, shape index: {}]
  %s12 = inlined_call_operand.vmem [shape: f32[1,128], index: 12, kind: input, shape index: {}]
  %s13 = inlined_call_operand.hbm [shape: f32[8,128], index: 13, kind: output, shape index: {0}]
  %s14 = inlined_call_operand.hbm [shape: f32[8,128], index: 14, kind: output, shape index: {1}]
  %s15 = inlined_call_operand.hbm [shape: bf16[8,128], index: 15, kind: output, shape index: {2}]
  %16 = xla_tuple %s13, %s14, %s15
  %s17 = sld [smem:[#allocation0]]
  $region106: #{tpu_custom_call.1} parent=0
    _
  %s19 = ssub.s32 1, %s17
  %s20 = scalar_select 0, %s19, %s17
  %22 = dma.hbm_to_smem %s0, 16, [#allocation5], [#allocation4]
  %23 = dma.done [#allocation4], 16
  %24 = sfence
  $region1: #{tpu_custom_call.1} parent=0
    #allocation6 [shape = 'u8[4096]{0}', space=vmem, size = 0x1000, scoped, tag = 'input window, operand 2, single buffered']
    #allocation7 [shape = 's32[1]{0}', space=sflag, size = 0x4, scoped, tag = 'scoped memory for tpu_custom_call.1']
    #allocation8 [shape = 's32[1]{0}', space=sflag, size = 0x4, scoped, tag = 'scoped memory for tpu_custom_call.1']
    #allocation9 [shape = 'u8[262144]{0}', space=vmem, size = 0x40000, scoped, tag = 'input window, operand 3, single buffered']
    #allocation10 [shape = 's32[1]{0}', space=sflag, size = 0x4, scoped, tag = 'scoped memory for tpu_custom_call.1']
    #allocation11 [shape = 'u8[98304]{0}', space=vmem, size = 0x18000, scoped, tag = 'input window, operand 4, single buffered']
    #allocation12 [shape = 'u8[98304]{0}', space=vmem, size = 0x18000, scoped, tag = 'input window, operand 5, single buffered']
    #allocation13 [shape = 's32[1]{0}', space=sflag, size = 0x4, scoped, tag = 'scoped memory for tpu_custom_call.1']
    #allocation14 [shape = 'u8[32768]{0}', space=vmem, size = 0x8000, scoped, tag = 'input window, operand 8, single buffered']
    #allocation15 [shape = 'u8[32768]{0}', space=vmem, size = 0x8000, scoped, tag = 'input window, operand 10, single buffered']
    #allocation16 [shape = 's32[1]{0}', space=sflag, size = 0x4, scoped, tag = 'scoped memory for tpu_custom_call.1']
    #allocation17 [shape = 'u8[32768]{0}', space=vmem, size = 0x8000, scoped, tag = 'input window, operand 11, single buffered']
    #allocation18 [shape = 'u8[4096]{0}', space=vmem, size = 0x1000, scoped, tag = 'output window, operand 0, single buffered']
    #allocation19 [shape = 'u8[4096]{0}', space=vmem, size = 0x1000, scoped, tag = 'output window, operand 1, single buffered']
    #allocation20 [shape = 's32[1]{0}', space=sflag, size = 0x4, scoped, tag = 'scoped memory for tpu_custom_call.1']
    #allocation21 [shape = 'u8[2048]{0}', space=vmem, size = 0x800, scoped, tag = 'output window, operand 2, single buffered']
    %25 = vsyncpa [#allocation7], 0
    %26 = vsyncpa [#allocation10], 0
    %27 = vsyncpa [#allocation13], 0
    %28 = vsyncpa [#allocation16], 0
    %29 = vsyncpa [#allocation8], 0
    %30 = vsyncpa [#allocation20], 0
    // Predicated region
    $region2: #{tpu_custom_call.1} parent=1 // pred_check
      _
    $region3: #{tpu_custom_call.1} parent=1 // pred_check_branch
      %32 = sbr.rel (0) target = $region5
    $region4: #{tpu_custom_call.1} parent=1 // pred_region
      %s34 = ssub.s32 128, 128
      %35 = vsyncadd [#allocation7], %s34
      %s37 = sshll.u32 [#allocation6], 4
      %s38 = int_to_ptr.vmem [resolvable:$true] %s37
      %40 = dma.hbm_to_vmem [thread:$0]  %s2, 128, %s38, [#allocation7]
    $region5: #{tpu_custom_call.1} parent=1 // pred_fallthru
      _
    // Predicated region
    $region6: #{tpu_custom_call.1} parent=1 // pred_check
      _
    $region7: #{tpu_custom_call.1} parent=1 // pred_check_branch
      %42 = sbr.rel (0) target = $region9
    $region8: #{tpu_custom_call.1} parent=1 // pred_region
      %s44 = ssub.s32 8192, 8192
      %45 = vsyncadd [#allocation10], %s44
      %s46 = sshll.u32 [#allocation9], 4
      %s47 = int_to_ptr.vmem [resolvable:$true] %s46
      %52 = dma.hbm_to_vmem [thread:$0]  %s3, 8192, %s47, [#allocation10], 64, 64, 4
    $region9: #{tpu_custom_call.1} parent=1 // pred_fallthru
      _
    // Predicated region
    $region10: #{tpu_custom_call.1} parent=1 // pred_check
      _
    $region11: #{tpu_custom_call.1} parent=1 // pred_check_branch
      %54 = sbr.rel (0) target = $region13
    $region12: #{tpu_custom_call.1} parent=1 // pred_region
      %s56 = ssub.s32 3072, 3072
      %57 = vsyncadd [#allocation10], %s56
      %s58 = sshll.u32 [#allocation11], 4
      %s59 = int_to_ptr.vmem [resolvable:$true] %s58
      %64 = dma.hbm_to_vmem [thread:$0]  %s4, 3072, %s59, [#allocation10], 192, 192, 12
    $region13: #{tpu_custom_call.1} parent=1 // pred_fallthru
      _
    // Predicated region
    $region14: #{tpu_custom_call.1} parent=1 // pred_check
      _
    $region15: #{tpu_custom_call.1} parent=1 // pred_check_branch
      %66 = sbr.rel (0) target = $region17
    $region16: #{tpu_custom_call.1} parent=1 // pred_region
      %s68 = ssub.s32 3072, 3072
      %69 = vsyncadd [#allocation13], %s68
      %s70 = sshll.u32 [#allocation12], 4
      %s71 = int_to_ptr.vmem [resolvable:$true] %s70
      %76 = dma.hbm_to_vmem [thread:$0]  %s5, 3072, %s71, [#allocation13], 192, 192, 12
    $region17: #{tpu_custom_call.1} parent=1 // pred_fallthru
      _
    // Predicated region
    $region18: #{tpu_custom_call.1} parent=1 // pred_check
      _
    $region19: #{tpu_custom_call.1} parent=1 // pred_check_branch
      %78 = sbr.rel (0) target = $region21
    $region20: #{tpu_custom_call.1} parent=1 // pred_region
      _
    $region21: #{tpu_custom_call.1} parent=1 // pred_fallthru
      _
    // Predicated region
    $region22: #{tpu_custom_call.1} parent=1 // pred_check
      _
    $region23: #{tpu_custom_call.1} parent=1 // pred_check_branch
      %80 = sbr.rel (0) target = $region25
    $region24: #{tpu_custom_call.1} parent=1 // pred_region
      _
    $region25: #{tpu_custom_call.1} parent=1 // pred_fallthru
      _
    // Predicated region
    $region26: #{tpu_custom_call.1} parent=1 // pred_check
      _
    $region27: #{tpu_custom_call.1} parent=1 // pred_check_branch
      %82 = sbr.rel (0) target = $region29
    $region28: #{tpu_custom_call.1} parent=1 // pred_region
      %s84 = ssub.s32 1024, 1024
      %85 = vsyncadd [#allocation13], %s84
      %s86 = sshll.u32 [#allocation14], 4
      %s87 = int_to_ptr.vmem [resolvable:$true] %s86
      %92 = dma.hbm_to_vmem [thread:$0]  %s8, 1024, %s87, [#allocation13], 64, 64, 4
    $region29: #{tpu_custom_call.1} parent=1 // pred_fallthru
      _
    // Predicated region
    $region30: #{tpu_custom_call.1} parent=1 // pred_check
      _
    $region31: #{tpu_custom_call.1} parent=1 // pred_check_branch
      %94 = sbr.rel (0) target = $region33
    $region32: #{tpu_custom_call.1} parent=1 // pred_region
      _
    $region33: #{tpu_custom_call.1} parent=1 // pred_fallthru
      _
    // Predicated region
    $region34: #{tpu_custom_call.1} parent=1 // pred_check
      _
    $region35: #{tpu_custom_call.1} parent=1 // pred_check_branch
      %96 = sbr.rel (0) target = $region37
    $region36: #{tpu_custom_call.1} parent=1 // pred_region
      %s98 = ssub.s32 1024, 1024
      %99 = vsyncadd [#allocation16], %s98
      %s100 = sshll.u32 [#allocation15], 4
      %s101 = int_to_ptr.vmem [resolvable:$true] %s100
      %106 = dma.hbm_to_vmem [thread:$0]  %s10, 1024, %s101, [#allocation16], 64, 64, 4
    $region37: #{tpu_custom_call.1} parent=1 // pred_fallthru
      _
    // Predicated region
    $region38: #{tpu_custom_call.1} parent=1 // pred_check
      _
    $region39: #{tpu_custom_call.1} parent=1 // pred_check_branch
      %108 = sbr.rel (0) target = $region41
    $region40: #{tpu_custom_call.1} parent=1 // pred_region
      %s110 = ssub.s32 1024, 1024
      %111 = vsyncadd [#allocation16], %s110
      %s112 = sshll.u32 [#allocation17], 4
      %s113 = int_to_ptr.vmem [resolvable:$true] %s112
      %118 = dma.hbm_to_vmem [thread:$0]  %s11, 1024, %s113, [#allocation16], 64, 64, 4
    $region41: #{tpu_custom_call.1} parent=1 // pred_fallthru
      _
    // Predicated region
    $region42: #{tpu_custom_call.1} parent=1 // pred_check
      _
    $region43: #{tpu_custom_call.1} parent=1 // pred_check_branch
      %120 = sbr.rel (0) target = $region45
    $region44: #{tpu_custom_call.1} parent=1 // pred_region
      _
    $region45: #{tpu_custom_call.1} parent=1 // pred_fallthru
      _
    // Predicated region
    $region46: #{tpu_custom_call.1} parent=1 // pred_check
      _
    $region47: #{tpu_custom_call.1} parent=1 // pred_check_branch
      %122 = sbr.rel (0) target = $region49
    $region48: #{tpu_custom_call.1} parent=1 // pred_region
      %123 = dma.done [#allocation7], 128
    $region49: #{tpu_custom_call.1} parent=1 // pred_fallthru
      _
    // Predicated region
    $region50: #{tpu_custom_call.1} parent=1 // pred_check
      _
    $region51: #{tpu_custom_call.1} parent=1 // pred_check_branch
      %125 = sbr.rel (0) target = $region53
    $region52: #{tpu_custom_call.1} parent=1 // pred_region
      %126 = dma.done [#allocation10], 8192
    $region53: #{tpu_custom_call.1} parent=1 // pred_fallthru
      _
    // Predicated region
    $region54: #{tpu_custom_call.1} parent=1 // pred_check
      _
    $region55: #{tpu_custom_call.1} parent=1 // pred_check_branch
      %128 = sbr.rel (0) target = $region57
    $region56: #{tpu_custom_call.1} parent=1 // pred_region
      %129 = dma.done [#allocation10], 3072
    $region57: #{tpu_custom_call.1} parent=1 // pred_fallthru
      _
    // Predicated region
    $region58: #{tpu_custom_call.1} parent=1 // pred_check
      _
    $region59: #{tpu_custom_call.1} parent=1 // pred_check_branch
      %131 = sbr.rel (0) target = $region61
    $region60: #{tpu_custom_call.1} parent=1 // pred_region
      %132 = dma.done [#allocation13], 3072
    $region61: #{tpu_custom_call.1} parent=1 // pred_fallthru
      _
    // Predicated region
    $region62: #{tpu_custom_call.1} parent=1 // pred_check
      _
    $region63: #{tpu_custom_call.1} parent=1 // pred_check_branch
      %134 = sbr.rel (0) target = $region65
    $region64: #{tpu_custom_call.1} parent=1 // pred_region
      %135 = dma.done [#allocation13], 1024
    $region65: #{tpu_custom_call.1} parent=1 // pred_fallthru
      _
    // Predicated region
    $region66: #{tpu_custom_call.1} parent=1 // pred_check
      _
    $region67: #{tpu_custom_call.1} parent=1 // pred_check_branch
      %137 = sbr.rel (0) target = $region69
    $region68: #{tpu_custom_call.1} parent=1 // pred_region
      %138 = dma.done [#allocation16], 1024
    $region69: #{tpu_custom_call.1} parent=1 // pred_fallthru
      _
    // Predicated region
    $region70: #{tpu_custom_call.1} parent=1 // pred_check
      _
    $region71: #{tpu_custom_call.1} parent=1 // pred_check_branch
      %140 = sbr.rel (0) target = $region73
    $region72: #{tpu_custom_call.1} parent=1 // pred_region
      %141 = dma.done [#allocation16], 1024
    $region73: #{tpu_custom_call.1} parent=1 // pred_fallthru
      _
    %s143 = sld [smem:[#allocation5]]
    %s144 = smul.addr %s143, 16
    %s145 = scalar_lea.hbm %s1, %s144
    // Predicated region
    $region74: #{tpu_custom_call.1} parent=1 // pred_check
      _
    $region75: #{tpu_custom_call.1} parent=1 // pred_check_branch
      %147 = sbr.rel target = $region77
    $region76: #{tpu_custom_call.1} parent=1 // pred_region
      %148 = sst [smem:[#allocation24]] [#allocation23]
      %149 = sst [smem:[#allocation25]] [#allocation22]
    $region77: #{tpu_custom_call.1} parent=1 // pred_fallthru
      _
    %151 = shalt.err (0)
    %s153 = sshll.u32 [#allocation2], 4
    %s154 = int_to_ptr.vmem [resolvable:$true] %s153
    %156 = dma.hbm_to_vmem [thread:$0]  %s145, 16, %s154, [#allocation3]
    %s157 = sld [smem:[#allocation5 + $0x1]]
    %s158 = smul.addr %s157, 16
    %s159 = scalar_lea.hbm %s1, %s158
    %s160 = scalar_lea.vmem [#allocation2], 1
    %s161 = scalar_lea.sflag [#allocation3], 1
    // Predicated region
    $region78: #{tpu_custom_call.1} parent=1 // pred_check
      _
    $region79: #{tpu_custom_call.1} parent=1 // pred_check_branch
      %163 = sbr.rel target = $region81
    $region80: #{tpu_custom_call.1} parent=1 // pred_region
      %164 = sst [smem:[#allocation24]] [#allocation27]
      %165 = sst [smem:[#allocation25]] [#allocation26]
    $region81: #{tpu_custom_call.1} parent=1 // pred_fallthru
      _
    %167 = shalt.err (0)
    %s169 = sshll.u32 %s160, 4
    %s170 = int_to_ptr.vmem [resolvable:$true] %s169
    %172 = dma.hbm_to_vmem [thread:$0]  %s159, 16, %s170, %s161
    %s173 = smul.u32 1, 1
    %s174 = sshll.u32 %s173, 4
    %175 = dma.done [#allocation3], %s174
    %s176 = sshll.u32 %s173, 4
    %177 = dma.done %s161, %s176
    %v178 = vlaneseq
    %v179 = vshrl.u32 %v178, 7
    %vm180 = vcmp.lt.s32.totalorder %v179, 2
    %v181 = vld [vmem:[#allocation2] sm:$0xff]
    %v182 = vsel %vm180, %v181, 0.0
    %v183 = vld [vmem:[#allocation6] sm:$0xff]
    %v184 = vpack.c.bf16 %v182, %v182
    %v185 = vld [vmem:[#allocation11] sm:$0xff]
    %v186 = vld [vmem:[#allocation11 + $0x8] sm:$0xf]
    %v187 = vld [vmem:[#allocation11 + $0xc] sm:$0xff]
    %v188 = vld [vmem:[#allocation11 + $0x14] sm:$0xf]
    %v189 = vld [vmem:[#allocation11 + $0x18] sm:$0xff]
    %v190 = vld [vmem:[#allocation11 + $0x20] sm:$0xf]
    %v191 = vld [vmem:[#allocation11 + $0x24] sm:$0xff]
    %v192 = vld [vmem:[#allocation11 + $0x2c] sm:$0xf]
    %v193 = vld [vmem:[#allocation11 + $0x30] sm:$0xff]
    %v194 = vld [vmem:[#allocation11 + $0x38] sm:$0xf]
    %v195 = vld [vmem:[#allocation11 + $0x3c] sm:$0xff]
    %v196 = vld [vmem:[#allocation11 + $0x44] sm:$0xf]
    %v197 = vld [vmem:[#allocation11 + $0x48] sm:$0xff]
    %v198 = vld [vmem:[#allocation11 + $0x50] sm:$0xf]
    %v199 = vld [vmem:[#allocation11 + $0x54] sm:$0xff]
    %v200 = vld [vmem:[#allocation11 + $0x5c] sm:$0xf]
    %v201 = vld [vmem:[#allocation11 + $0x60] sm:$0xff]
    %v202 = vld [vmem:[#allocation11 + $0x68] sm:$0xf]
    %v203 = vld [vmem:[#allocation11 + $0x6c] sm:$0xff]
    %v204 = vld [vmem:[#allocation11 + $0x74] sm:$0xf]
    %v205 = vld [vmem:[#allocation11 + $0x78] sm:$0xff]
    %v206 = vld [vmem:[#allocation11 + $0x80] sm:$0xf]
    %v207 = vld [vmem:[#allocation11 + $0x84] sm:$0xff]
    %v208 = vld [vmem:[#allocation11 + $0x8c] sm:$0xf]
    %v209 = vld [vmem:[#allocation11 + $0x90] sm:$0xff]
    %v210 = vld [vmem:[#allocation11 + $0x98] sm:$0xf]
    %v211 = vld [vmem:[#allocation11 + $0x9c] sm:$0xff]
    %v212 = vld [vmem:[#allocation11 + $0xa4] sm:$0xf]
    %v213 = vld [vmem:[#allocation11 + $0xa8] sm:$0xff]
    %v214 = vld [vmem:[#allocation11 + $0xb0] sm:$0xf]
    %v215 = vld [vmem:[#allocation11 + $0xb4] sm:$0xff]
    %v216 = vld [vmem:[#allocation11 + $0xbc] sm:$0xf]
    %v217 = vld [vmem:[%s6] sm:$0x7]
    %v219 = vlaneseq
    %v220 = vshrl.u32 %v219, 7
    %v221 = vsub.s32 0, %v220
    %v222 = vrot.slane %v217, %v221
    %v223 = vlaneseq
    %v224 = vshrl.u32 %v223, 7
    %v225 = vsub.s32 1, %v224
    %v226 = vrot.slane %v217, %v225
    %v227 = vlaneseq
    %v228 = vshrl.u32 %v227, 7
    %v229 = vsub.s32 2, %v228
    %v230 = vrot.slane %v217, %v229
    %v266 = vunpack.c.l.b16 %v185
    %v267 = vunpack.c.h.b16 %v185
    %v268 = vunpack.c.l.b16 %v186
    %v269 = vunpack.c.l.b16 %v187
    %v270 = vunpack.c.h.b16 %v187
    %v271 = vunpack.c.l.b16 %v188
    %v272 = vunpack.c.l.b16 %v189
    %v273 = vunpack.c.h.b16 %v189
    %v274 = vunpack.c.l.b16 %v190
    %v275 = vunpack.c.l.b16 %v191
    %v276 = vunpack.c.h.b16 %v191
    %v277 = vunpack.c.l.b16 %v192
    %v278 = vunpack.c.l.b16 %v193
    %v279 = vunpack.c.h.b16 %v193
    %v280 = vunpack.c.l.b16 %v194
    %v281 = vunpack.c.l.b16 %v195
    %v282 = vunpack.c.h.b16 %v195
    %v283 = vunpack.c.l.b16 %v196
    %v284 = vunpack.c.l.b16 %v197
    %v285 = vunpack.c.h.b16 %v197
    %v286 = vunpack.c.l.b16 %v198
    %v287 = vunpack.c.l.b16 %v199
    %v288 = vunpack.c.h.b16 %v199
    %v289 = vunpack.c.l.b16 %v200
    %v290 = vunpack.c.l.b16 %v201
    %v291 = vunpack.c.h.b16 %v201
    %v292 = vunpack.c.l.b16 %v202
    %v293 = vunpack.c.l.b16 %v203
    %v294 = vunpack.c.h.b16 %v203
    %v295 = vunpack.c.l.b16 %v204
    %v296 = vunpack.c.l.b16 %v205
    %v297 = vunpack.c.h.b16 %v205
    %v298 = vunpack.c.l.b16 %v206
    %v299 = vunpack.c.l.b16 %v207
    %v300 = vunpack.c.h.b16 %v207
    %v301 = vunpack.c.l.b16 %v208
    %v302 = vunpack.c.l.b16 %v209
    %v303 = vunpack.c.h.b16 %v209
    %v304 = vunpack.c.l.b16 %v210
    %v305 = vunpack.c.l.b16 %v211
    %v306 = vunpack.c.h.b16 %v211
    %v307 = vunpack.c.l.b16 %v212
    %v308 = vunpack.c.l.b16 %v213
    %v309 = vunpack.c.h.b16 %v213
    %v310 = vunpack.c.l.b16 %v214
    %v311 = vunpack.c.l.b16 %v215
    %v312 = vunpack.c.h.b16 %v215
    %v313 = vunpack.c.l.b16 %v216
    %v314 = vpack.c.b16 %v269, %v266
    %v315 = vpack.c.b16 %v270, %v267
    %v316 = vpack.c.b16 %v271, %v268
    %v317 = vpack.c.b16 %v275, %v272
    %v318 = vpack.c.b16 %v276, %v273
    %v319 = vpack.c.b16 %v277, %v274
    %v320 = vpack.c.b16 %v281, %v278
    %v321 = vpack.c.b16 %v282, %v279
    %v322 = vpack.c.b16 %v283, %v280
    %v323 = vpack.c.b16 %v287, %v284
    %v324 = vpack.c.b16 %v288, %v285
    %v325 = vpack.c.b16 %v289, %v286
    %v326 = vpack.c.b16 %v293, %v290
    %v327 = vpack.c.b16 %v294, %v291
    %v328 = vpack.c.b16 %v295, %v292
    %v329 = vpack.c.b16 %v299, %v296
    %v330 = vpack.c.b16 %v300, %v297
    %v331 = vpack.c.b16 %v301, %v298
    %v332 = vpack.c.b16 %v305, %v302
    %v333 = vpack.c.b16 %v306, %v303
    %v334 = vpack.c.b16 %v307, %v304
    %v335 = vpack.c.b16 %v311, %v308
    %v336 = vpack.c.b16 %v312, %v309
    %v337 = vpack.c.b16 %v313, %v310
    %362 = vmatprep.subr.bf16.mxu0 %v336
    %363 = vmatpush1.bf16.msra.mxu0 %v335
    %364 = vmatprep.subr.bf16.mxu0 %v333
    %365 = vmatpush1.bf16.msra.mxu0 %v332
    %366 = vmatprep.subr.bf16.mxu0 %v330
    %367 = vmatpush1.bf16.msra.mxu0 %v329
    %368 = vmatprep.subr.bf16.mxu0 %v327
    %369 = vmatpush1.bf16.msra.mxu0 %v326
    %370 = vmatprep.subr.bf16.mxu0 %v324
    %371 = vmatpush1.bf16.msra.mxu0 %v323
    %372 = vmatprep.subr.bf16.mxu0 %v321
    %373 = vmatpush1.bf16.msra.mxu0 %v320
    %374 = vmatprep.subr.bf16.mxu0 %v318
    %375 = vmatpush1.bf16.msra.mxu0 %v317
    %376 = vmatprep.subr.bf16.mxu0 %v315
    %377 = vmatpush1.bf16.msra.mxu0 %v314
    %378 = vmatprep.subr.bf16.mxu0 0
    %379 = vmatpush2.bf16.msra.mxu0 0
    %380 = vmatprep.subr.bf16.mxu0 0
    %381 = vmatpush2.bf16.msra.mxu0 0
    %382 = vmatprep.subr.bf16.mxu0 0
    %383 = vmatpush2.bf16.msra.mxu0 0
    %384 = vmatprep.subr.bf16.mxu0 0
    %385 = vmatpush2.bf16.msra.mxu0 0
    %386 = vmatprep.subr.bf16.mxu0 0
    %387 = vmatpush2.bf16.msra.mxu0 0
    %388 = vmatprep.subr.bf16.mxu0 0
    %389 = vmatpush2.bf16.msra.mxu0 0
    %390 = vmatprep.subr.bf16.mxu0 0
    %391 = vmatpush2.bf16.msra.mxu0 0
    %392 = vmatprep.subr.bf16.mxu0 0
    %393 = vmatpush2.bf16.msra.mxu0 0
    %394 = vmatprep.mubr.bf16.mxu0 0
    %395 = vmatmul.mubr.bf16.gmra.mxu0 %v184
    %v396 = vpop.f32.mrf.mxu0
    %v397 = vadd.f32 %v222, %v396
    %v398 = vpop.f32.mrf.mxu0
    %v399 = vadd.f32 %v226, %v398
    %v400 = vpop.f32.mrf.mxu0
    %v401 = vpop.f32.mrf.mxu0
    %402 = vdwg.mxu0
    %403 = vmatprep.subr.bf16.mxu0 0
    %404 = vmatpush1.bf16.msra.mxu0 %v337
    %405 = vmatprep.subr.bf16.mxu0 0
    %406 = vmatpush1.bf16.msra.mxu0 %v334
    %407 = vmatprep.subr.bf16.mxu0 0
    %408 = vmatpush1.bf16.msra.mxu0 %v331
    %409 = vmatprep.subr.bf16.mxu0 0
    %410 = vmatpush1.bf16.msra.mxu0 %v328
    %411 = vmatprep.subr.bf16.mxu0 0
    %412 = vmatpush1.bf16.msra.mxu0 %v325
    %413 = vmatprep.subr.bf16.mxu0 0
    %414 = vmatpush1.bf16.msra.mxu0 %v322
    %415 = vmatprep.subr.bf16.mxu0 0
    %416 = vmatpush1.bf16.msra.mxu0 %v319
    %417 = vmatprep.subr.bf16.mxu0 0
    %418 = vmatpush1.bf16.msra.mxu0 %v316
    %419 = vmatprep.subr.bf16.mxu0 0
    %420 = vmatpush2.bf16.msra.mxu0 0
    %421 = vmatprep.subr.bf16.mxu0 0
    %422 = vmatpush2.bf16.msra.mxu0 0
    %423 = vmatprep.subr.bf16.mxu0 0
    %424 = vmatpush2.bf16.msra.mxu0 0
    %425 = vmatprep.subr.bf16.mxu0 0
    %426 = vmatpush2.bf16.msra.mxu0 0
    %427 = vmatprep.subr.bf16.mxu0 0
    %428 = vmatpush2.bf16.msra.mxu0 0
    %429 = vmatprep.subr.bf16.mxu0 0
    %430 = vmatpush2.bf16.msra.mxu0 0
    %431 = vmatprep.subr.bf16.mxu0 0
    %432 = vmatpush2.bf16.msra.mxu0 0
    %433 = vmatprep.subr.bf16.mxu0 0
    %434 = vmatpush2.bf16.msra.mxu0 0
    %435 = vmatprep.mubr.bf16.mxu0 0
    %436 = vmatmul.mubr.bf16.gmra.mxu0 %v184
    %v437 = vpop.f32.mrf.mxu0
    %v438 = vadd.f32 %v230, %v437
    %v439 = vpop.f32.mrf.mxu0
    %v440 = vpop.f32.mrf.mxu0
    %v441 = vpop.f32.mrf.mxu0
    %442 = vdwg.mxu0
    %v443 = vpack.c.bf16 %v183, %v183
    %v444 = vld [vmem:[#allocation12] sm:$0xff]
    %v445 = vld [vmem:[#allocation12 + $0x8] sm:$0xf]
    %v446 = vld [vmem:[#allocation12 + $0xc] sm:$0xff]
    %v447 = vld [vmem:[#allocation12 + $0x14] sm:$0xf]
    %v448 = vld [vmem:[#allocation12 + $0x18] sm:$0xff]
    %v449 = vld [vmem:[#allocation12 + $0x20] sm:$0xf]
    %v450 = vld [vmem:[#allocation12 + $0x24] sm:$0xff]
    %v451 = vld [vmem:[#allocation12 + $0x2c] sm:$0xf]
    %v452 = vld [vmem:[#allocation12 + $0x30] sm:$0xff]
    %v453 = vld [vmem:[#allocation12 + $0x38] sm:$0xf]
    %v454 = vld [vmem:[#allocation12 + $0x3c] sm:$0xff]
    %v455 = vld [vmem:[#allocation12 + $0x44] sm:$0xf]
    %v456 = vld [vmem:[#allocation12 + $0x48] sm:$0xff]
    %v457 = vld [vmem:[#allocation12 + $0x50] sm:$0xf]
    %v458 = vld [vmem:[#allocation12 + $0x54] sm:$0xff]
    %v459 = vld [vmem:[#allocation12 + $0x5c] sm:$0xf]
    %v460 = vld [vmem:[#allocation12 + $0x60] sm:$0xff]
    %v461 = vld [vmem:[#allocation12 + $0x68] sm:$0xf]
    %v462 = vld [vmem:[#allocation12 + $0x6c] sm:$0xff]
    %v463 = vld [vmem:[#allocation12 + $0x74] sm:$0xf]
    %v464 = vld [vmem:[#allocation12 + $0x78] sm:$0xff]
    %v465 = vld [vmem:[#allocation12 + $0x80] sm:$0xf]
    %v466 = vld [vmem:[#allocation12 + $0x84] sm:$0xff]
    %v467 = vld [vmem:[#allocation12 + $0x8c] sm:$0xf]
    %v468 = vld [vmem:[#allocation12 + $0x90] sm:$0xff]
    %v469 = vld [vmem:[#allocation12 + $0x98] sm:$0xf]
    %v470 = vld [vmem:[#allocation12 + $0x9c] sm:$0xff]
    %v471 = vld [vmem:[#allocation12 + $0xa4] sm:$0xf]
    %v472 = vld [vmem:[#allocation12 + $0xa8] sm:$0xff]
    %v473 = vld [vmem:[#allocation12 + $0xb0] sm:$0xf]
    %v474 = vld [vmem:[#allocation12 + $0xb4] sm:$0xff]
    %v475 = vld [vmem:[#allocation12 + $0xbc] sm:$0xf]
    %v476 = vld [vmem:[%s7] sm:$0x7]
    %v478 = vlaneseq
    %v479 = vshrl.u32 %v478, 7
    %v480 = vsub.s32 0, %v479
    %v481 = vrot.slane %v476, %v480
    %v482 = vlaneseq
    %v483 = vshrl.u32 %v482, 7
    %v484 = vsub.s32 1, %v483
    %v485 = vrot.slane %v476, %v484
    %v486 = vlaneseq
    %v487 = vshrl.u32 %v486, 7
    %v488 = vsub.s32 2, %v487
    %v489 = vrot.slane %v476, %v488
    %v525 = vunpack.c.l.b16 %v444
    %v526 = vunpack.c.h.b16 %v444
    %v527 = vunpack.c.l.b16 %v445
    %v528 = vunpack.c.l.b16 %v446
    %v529 = vunpack.c.h.b16 %v446
    %v530 = vunpack.c.l.b16 %v447
    %v531 = vunpack.c.l.b16 %v448
    %v532 = vunpack.c.h.b16 %v448
    %v533 = vunpack.c.l.b16 %v449
    %v534 = vunpack.c.l.b16 %v450
    %v535 = vunpack.c.h.b16 %v450
    %v536 = vunpack.c.l.b16 %v451
    %v537 = vunpack.c.l.b16 %v452
    %v538 = vunpack.c.h.b16 %v452
    %v539 = vunpack.c.l.b16 %v453
    %v540 = vunpack.c.l.b16 %v454
    %v541 = vunpack.c.h.b16 %v454
    %v542 = vunpack.c.l.b16 %v455
    %v543 = vunpack.c.l.b16 %v456
    %v544 = vunpack.c.h.b16 %v456
    %v545 = vunpack.c.l.b16 %v457
    %v546 = vunpack.c.l.b16 %v458
    %v547 = vunpack.c.h.b16 %v458
    %v548 = vunpack.c.l.b16 %v459
    %v549 = vunpack.c.l.b16 %v460
    %v550 = vunpack.c.h.b16 %v460
    %v551 = vunpack.c.l.b16 %v461
    %v552 = vunpack.c.l.b16 %v462
    %v553 = vunpack.c.h.b16 %v462
    %v554 = vunpack.c.l.b16 %v463
    %v555 = vunpack.c.l.b16 %v464
    %v556 = vunpack.c.h.b16 %v464
    %v557 = vunpack.c.l.b16 %v465
    %v558 = vunpack.c.l.b16 %v466
    %v559 = vunpack.c.h.b16 %v466
    %v560 = vunpack.c.l.b16 %v467
    %v561 = vunpack.c.l.b16 %v468
    %v562 = vunpack.c.h.b16 %v468
    %v563 = vunpack.c.l.b16 %v469
    %v564 = vunpack.c.l.b16 %v470
    %v565 = vunpack.c.h.b16 %v470
    %v566 = vunpack.c.l.b16 %v471
    %v567 = vunpack.c.l.b16 %v472
    %v568 = vunpack.c.h.b16 %v472
    %v569 = vunpack.c.l.b16 %v473
    %v570 = vunpack.c.l.b16 %v474
    %v571 = vunpack.c.h.b16 %v474
    %v572 = vunpack.c.l.b16 %v475
    %v573 = vpack.c.b16 %v528, %v525
    %v574 = vpack.c.b16 %v529, %v526
    %v575 = vpack.c.b16 %v530, %v527
    %v576 = vpack.c.b16 %v534, %v531
    %v577 = vpack.c.b16 %v535, %v532
    %v578 = vpack.c.b16 %v536, %v533
    %v579 = vpack.c.b16 %v540, %v537
    %v580 = vpack.c.b16 %v541, %v538
    %v581 = vpack.c.b16 %v542, %v539
    %v582 = vpack.c.b16 %v546, %v543
    %v583 = vpack.c.b16 %v547, %v544
    %v584 = vpack.c.b16 %v548, %v545
    %v585 = vpack.c.b16 %v552, %v549
    %v586 = vpack.c.b16 %v553, %v550
    %v587 = vpack.c.b16 %v554, %v551
    %v588 = vpack.c.b16 %v558, %v555
    %v589 = vpack.c.b16 %v559, %v556
    %v590 = vpack.c.b16 %v560, %v557
    %v591 = vpack.c.b16 %v564, %v561
    %v592 = vpack.c.b16 %v565, %v562
    %v593 = vpack.c.b16 %v566, %v563
    %v594 = vpack.c.b16 %v570, %v567
    %v595 = vpack.c.b16 %v571, %v568
    %v596 = vpack.c.b16 %v572, %v569
    %621 = vmatprep.subr.bf16.mxu0 %v595
    %622 = vmatpush1.bf16.msra.mxu0 %v594
    %623 = vmatprep.subr.bf16.mxu0 %v592
    %624 = vmatpush1.bf16.msra.mxu0 %v591
    %625 = vmatprep.subr.bf16.mxu0 %v589
    %626 = vmatpush1.bf16.msra.mxu0 %v588
    %627 = vmatprep.subr.bf16.mxu0 %v586
    %628 = vmatpush1.bf16.msra.mxu0 %v585
    %629 = vmatprep.subr.bf16.mxu0 %v583
    %630 = vmatpush1.bf16.msra.mxu0 %v582
    %631 = vmatprep.subr.bf16.mxu0 %v580
    %632 = vmatpush1.bf16.msra.mxu0 %v579
    %633 = vmatprep.subr.bf16.mxu0 %v577
    %634 = vmatpush1.bf16.msra.mxu0 %v576
    %635 = vmatprep.subr.bf16.mxu0 %v574
    %636 = vmatpush1.bf16.msra.mxu0 %v573
    %637 = vmatprep.subr.bf16.mxu0 0
    %638 = vmatpush2.bf16.msra.mxu0 0
    %639 = vmatprep.subr.bf16.mxu0 0
    %640 = vmatpush2.bf16.msra.mxu0 0
    %641 = vmatprep.subr.bf16.mxu0 0
    %642 = vmatpush2.bf16.msra.mxu0 0
    %643 = vmatprep.subr.bf16.mxu0 0
    %644 = vmatpush2.bf16.msra.mxu0 0
    %645 = vmatprep.subr.bf16.mxu0 0
    %646 = vmatpush2.bf16.msra.mxu0 0
    %647 = vmatprep.subr.bf16.mxu0 0
    %648 = vmatpush2.bf16.msra.mxu0 0
    %649 = vmatprep.subr.bf16.mxu0 0
    %650 = vmatpush2.bf16.msra.mxu0 0
    %651 = vmatprep.subr.bf16.mxu0 0
    %652 = vmatpush2.bf16.msra.mxu0 0
    %653 = vmatprep.mubr.bf16.mxu0 0
    %654 = vmatmul.mubr.bf16.gmra.mxu0 %v443
    %v655 = vpop.f32.mrf.mxu0
    %v656 = vadd.f32 %v481, %v655
    %v657 = vpop.f32.mrf.mxu0
    %v658 = vadd.f32 %v485, %v657
    %v659 = vpop.f32.mrf.mxu0
    %v660 = vpop.f32.mrf.mxu0
    %661 = vdwg.mxu0
    %662 = vmatprep.subr.bf16.mxu0 0
    %663 = vmatpush1.bf16.msra.mxu0 %v596
    %664 = vmatprep.subr.bf16.mxu0 0
    %665 = vmatpush1.bf16.msra.mxu0 %v593
    %666 = vmatprep.subr.bf16.mxu0 0
    %667 = vmatpush1.bf16.msra.mxu0 %v590
    %668 = vmatprep.subr.bf16.mxu0 0
    %669 = vmatpush1.bf16.msra.mxu0 %v587
    %670 = vmatprep.subr.bf16.mxu0 0
    %671 = vmatpush1.bf16.msra.mxu0 %v584
    %672 = vmatprep.subr.bf16.mxu0 0
    %673 = vmatpush1.bf16.msra.mxu0 %v581
    %674 = vmatprep.subr.bf16.mxu0 0
    %675 = vmatpush1.bf16.msra.mxu0 %v578
    %676 = vmatprep.subr.bf16.mxu0 0
    %677 = vmatpush1.bf16.msra.mxu0 %v575
    %678 = vmatprep.subr.bf16.mxu0 0
    %679 = vmatpush2.bf16.msra.mxu0 0
    %680 = vmatprep.subr.bf16.mxu0 0
    %681 = vmatpush2.bf16.msra.mxu0 0
    %682 = vmatprep.subr.bf16.mxu0 0
    %683 = vmatpush2.bf16.msra.mxu0 0
    %684 = vmatprep.subr.bf16.mxu0 0
    %685 = vmatpush2.bf16.msra.mxu0 0
    %686 = vmatprep.subr.bf16.mxu0 0
    %687 = vmatpush2.bf16.msra.mxu0 0
    %688 = vmatprep.subr.bf16.mxu0 0
    %689 = vmatpush2.bf16.msra.mxu0 0
    %690 = vmatprep.subr.bf16.mxu0 0
    %691 = vmatpush2.bf16.msra.mxu0 0
    %692 = vmatprep.subr.bf16.mxu0 0
    %693 = vmatpush2.bf16.msra.mxu0 0
    %694 = vmatprep.mubr.bf16.mxu0 0
    %695 = vmatmul.mubr.bf16.gmra.mxu0 %v443
    %v696 = vpop.f32.mrf.mxu0
    %v697 = vadd.f32 %v489, %v696
    %v698 = vpop.f32.mrf.mxu0
    %v699 = vpop.f32.mrf.mxu0
    %v700 = vpop.f32.mrf.mxu0
    %701 = vdwg.mxu0
    %v702 = vadd.f32 %v397, %v656
    %v703 = vxor.u32 %v702, 2147483648
    %v704 = vmul.f32 %v703, 1.442695
    %v705 = vpow.pop %v704
    %v706 = vadd.f32 %v705, 1.0
    %v707 = vrcp.pop %v706
    %v708 = vmul.f32 1.0, %v707
    %v709 = vadd.f32 %v399, %v658
    %v710 = vxor.u32 %v709, 2147483648
    %v711 = vmul.f32 %v710, 1.442695
    %v712 = vpow.pop %v711
    %v713 = vadd.f32 %v712, 1.0
    %v714 = vrcp.pop %v713
    %v715 = vmul.f32 1.0, %v714
    %v716 = vmul.f32 %v708, %v697
    %v717 = vadd.f32 %v438, %v716
    %v718 = vtanh.pop %v717
    %v719 = vsub.f32 1.0, %v715
    %v720 = vmul.f32 %v719, %v718
    %v721 = vmul.f32 %v715, %v183
    %v722 = vadd.f32 %v720, %v721
    %723 = vst [vmem:[#allocation18] sm:$0xff] %v722
    %v724 = vld [vmem:[#allocation9] sm:$0xf]
    %v725 = vld [vmem:[#allocation9 + $0x4] sm:$0xf]
    %v726 = vld [vmem:[#allocation9 + $0x8] sm:$0xf]
    %v727 = vld [vmem:[#allocation9 + $0xc] sm:$0xf]
    %v728 = vld [vmem:[#allocation9 + $0x10] sm:$0xf]
    %v729 = vld [vmem:[#allocation9 + $0x14] sm:$0xf]
    %v730 = vld [vmem:[#allocation9 + $0x18] sm:$0xf]
    %v731 = vld [vmem:[#allocation9 + $0x1c] sm:$0xf]
    %v732 = vld [vmem:[#allocation9 + $0x20] sm:$0xf]
    %v733 = vld [vmem:[#allocation9 + $0x24] sm:$0xf]
    %v734 = vld [vmem:[#allocation9 + $0x28] sm:$0xf]
    %v735 = vld [vmem:[#allocation9 + $0x2c] sm:$0xf]
    %v736 = vld [vmem:[#allocation9 + $0x30] sm:$0xf]
    %v737 = vld [vmem:[#allocation9 + $0x34] sm:$0xf]
    %v738 = vld [vmem:[#allocation9 + $0x38] sm:$0xf]
    %v739 = vld [vmem:[#allocation9 + $0x3c] sm:$0xf]
    %v740 = vld [vmem:[#allocation9 + $0x40] sm:$0xf]
    %v741 = vld [vmem:[#allocation9 + $0x44] sm:$0xf]
    %v742 = vld [vmem:[#allocation9 + $0x48] sm:$0xf]
    %v743 = vld [vmem:[#allocation9 + $0x4c] sm:$0xf]
    %v744 = vld [vmem:[#allocation9 + $0x50] sm:$0xf]
    %v745 = vld [vmem:[#allocation9 + $0x54] sm:$0xf]
    %v746 = vld [vmem:[#allocation9 + $0x58] sm:$0xf]
    %v747 = vld [vmem:[#allocation9 + $0x5c] sm:$0xf]
    %v748 = vld [vmem:[#allocation9 + $0x60] sm:$0xf]
    %v749 = vld [vmem:[#allocation9 + $0x64] sm:$0xf]
    %v750 = vld [vmem:[#allocation9 + $0x68] sm:$0xf]
    %v751 = vld [vmem:[#allocation9 + $0x6c] sm:$0xf]
    %v752 = vld [vmem:[#allocation9 + $0x70] sm:$0xf]
    %v753 = vld [vmem:[#allocation9 + $0x74] sm:$0xf]
    %v754 = vld [vmem:[#allocation9 + $0x78] sm:$0xf]
    %v755 = vld [vmem:[#allocation9 + $0x7c] sm:$0xf]
    %v756 = vld [vmem:[#allocation9 + $0x80] sm:$0xf]
    %v757 = vld [vmem:[#allocation9 + $0x84] sm:$0xf]
    %v758 = vld [vmem:[#allocation9 + $0x88] sm:$0xf]
    %v759 = vld [vmem:[#allocation9 + $0x8c] sm:$0xf]
    %v760 = vld [vmem:[#allocation9 + $0x90] sm:$0xf]
    %v761 = vld [vmem:[#allocation9 + $0x94] sm:$0xf]
    %v762 = vld [vmem:[#allocation9 + $0x98] sm:$0xf]
    %v763 = vld [vmem:[#allocation9 + $0x9c] sm:$0xf]
    %v764 = vld [vmem:[#allocation9 + $0xa0] sm:$0xf]
    %v765 = vld [vmem:[#allocation9 + $0xa4] sm:$0xf]
    %v766 = vld [vmem:[#allocation9 + $0xa8] sm:$0xf]
    %v767 = vld [vmem:[#allocation9 + $0xac] sm:$0xf]
    %v768 = vld [vmem:[#allocation9 + $0xb0] sm:$0xf]
    %v769 = vld [vmem:[#allocation9 + $0xb4] sm:$0xf]
    %v770 = vld [vmem:[#allocation9 + $0xb8] sm:$0xf]
    %v771 = vld [vmem:[#allocation9 + $0xbc] sm:$0xf]
    %v772 = vld [vmem:[#allocation9 + $0xc0] sm:$0xf]
    %v773 = vld [vmem:[#allocation9 + $0xc4] sm:$0xf]
    %v774 = vld [vmem:[#allocation9 + $0xc8] sm:$0xf]
    %v775 = vld [vmem:[#allocation9 + $0xcc] sm:$0xf]
    %v776 = vld [vmem:[#allocation9 + $0xd0] sm:$0xf]
    %v777 = vld [vmem:[#allocation9 + $0xd4] sm:$0xf]
    %v778 = vld [vmem:[#allocation9 + $0xd8] sm:$0xf]
    %v779 = vld [vmem:[#allocation9 + $0xdc] sm:$0xf]
    %v780 = vld [vmem:[#allocation9 + $0xe0] sm:$0xf]
    %v781 = vld [vmem:[#allocation9 + $0xe4] sm:$0xf]
    %v782 = vld [vmem:[#allocation9 + $0xe8] sm:$0xf]
    %v783 = vld [vmem:[#allocation9 + $0xec] sm:$0xf]
    %v784 = vld [vmem:[#allocation9 + $0xf0] sm:$0xf]
    %v785 = vld [vmem:[#allocation9 + $0xf4] sm:$0xf]
    %v786 = vld [vmem:[#allocation9 + $0xf8] sm:$0xf]
    %v787 = vld [vmem:[#allocation9 + $0xfc] sm:$0xf]
    %v788 = vld [vmem:[#allocation9 + $0x100] sm:$0xf]
    %v789 = vld [vmem:[#allocation9 + $0x104] sm:$0xf]
    %v790 = vld [vmem:[#allocation9 + $0x108] sm:$0xf]
    %v791 = vld [vmem:[#allocation9 + $0x10c] sm:$0xf]
    %v792 = vld [vmem:[#allocation9 + $0x110] sm:$0xf]
    %v793 = vld [vmem:[#allocation9 + $0x114] sm:$0xf]
    %v794 = vld [vmem:[#allocation9 + $0x118] sm:$0xf]
    %v795 = vld [vmem:[#allocation9 + $0x11c] sm:$0xf]
    %v796 = vld [vmem:[#allocation9 + $0x120] sm:$0xf]
    %v797 = vld [vmem:[#allocation9 + $0x124] sm:$0xf]
    %v798 = vld [vmem:[#allocation9 + $0x128] sm:$0xf]
    %v799 = vld [vmem:[#allocation9 + $0x12c] sm:$0xf]
    %v800 = vld [vmem:[#allocation9 + $0x130] sm:$0xf]
    %v801 = vld [vmem:[#allocation9 + $0x134] sm:$0xf]
    %v802 = vld [vmem:[#allocation9 + $0x138] sm:$0xf]
    %v803 = vld [vmem:[#allocation9 + $0x13c] sm:$0xf]
    %v804 = vld [vmem:[#allocation9 + $0x140] sm:$0xf]
    %v805 = vld [vmem:[#allocation9 + $0x144] sm:$0xf]
    %v806 = vld [vmem:[#allocation9 + $0x148] sm:$0xf]
    %v807 = vld [vmem:[#allocation9 + $0x14c] sm:$0xf]
    %v808 = vld [vmem:[#allocation9 + $0x150] sm:$0xf]
    %v809 = vld [vmem:[#allocation9 + $0x154] sm:$0xf]
    %v810 = vld [vmem:[#allocation9 + $0x158] sm:$0xf]
    %v811 = vld [vmem:[#allocation9 + $0x15c] sm:$0xf]
    %v812 = vld [vmem:[#allocation9 + $0x160] sm:$0xf]
    %v813 = vld [vmem:[#allocation9 + $0x164] sm:$0xf]
    %v814 = vld [vmem:[#allocation9 + $0x168] sm:$0xf]
    %v815 = vld [vmem:[#allocation9 + $0x16c] sm:$0xf]
    %v816 = vld [vmem:[#allocation9 + $0x170] sm:$0xf]
    %v817 = vld [vmem:[#allocation9 + $0x174] sm:$0xf]
    %v818 = vld [vmem:[#allocation9 + $0x178] sm:$0xf]
    %v819 = vld [vmem:[#allocation9 + $0x17c] sm:$0xf]
    %v820 = vld [vmem:[#allocation9 + $0x180] sm:$0xf]
    %v821 = vld [vmem:[#allocation9 + $0x184] sm:$0xf]
    %v822 = vld [vmem:[#allocation9 + $0x188] sm:$0xf]
    %v823 = vld [vmem:[#allocation9 + $0x18c] sm:$0xf]
    %v824 = vld [vmem:[#allocation9 + $0x190] sm:$0xf]
    %v825 = vld [vmem:[#allocation9 + $0x194] sm:$0xf]
    %v826 = vld [vmem:[#allocation9 + $0x198] sm:$0xf]
    %v827 = vld [vmem:[#allocation9 + $0x19c] sm:$0xf]
    %v828 = vld [vmem:[#allocation9 + $0x1a0] sm:$0xf]
    %v829 = vld [vmem:[#allocation9 + $0x1a4] sm:$0xf]
    %v830 = vld [vmem:[#allocation9 + $0x1a8] sm:$0xf]
    %v831 = vld [vmem:[#allocation9 + $0x1ac] sm:$0xf]
    %v832 = vld [vmem:[#allocation9 + $0x1b0] sm:$0xf]
    %v833 = vld [vmem:[#allocation9 + $0x1b4] sm:$0xf]
    %v834 = vld [vmem:[#allocation9 + $0x1b8] sm:$0xf]
    %v835 = vld [vmem:[#allocation9 + $0x1bc] sm:$0xf]
    %v836 = vld [vmem:[#allocation9 + $0x1c0] sm:$0xf]
    %v837 = vld [vmem:[#allocation9 + $0x1c4] sm:$0xf]
    %v838 = vld [vmem:[#allocation9 + $0x1c8] sm:$0xf]
    %v839 = vld [vmem:[#allocation9 + $0x1cc] sm:$0xf]
    %v840 = vld [vmem:[#allocation9 + $0x1d0] sm:$0xf]
    %v841 = vld [vmem:[#allocation9 + $0x1d4] sm:$0xf]
    %v842 = vld [vmem:[#allocation9 + $0x1d8] sm:$0xf]
    %v843 = vld [vmem:[#allocation9 + $0x1dc] sm:$0xf]
    %v844 = vld [vmem:[#allocation9 + $0x1e0] sm:$0xf]
    %v845 = vld [vmem:[#allocation9 + $0x1e4] sm:$0xf]
    %v846 = vld [vmem:[#allocation9 + $0x1e8] sm:$0xf]
    %v847 = vld [vmem:[#allocation9 + $0x1ec] sm:$0xf]
    %v848 = vld [vmem:[#allocation9 + $0x1f0] sm:$0xf]
    %v849 = vld [vmem:[#allocation9 + $0x1f4] sm:$0xf]
    %v850 = vld [vmem:[#allocation9 + $0x1f8] sm:$0xf]
    %v851 = vld [vmem:[#allocation9 + $0x1fc] sm:$0xf]
    %v852 = vunpack.c.l.bf16 %v724
    %v853 = vunpack.c.l.bf16 %v725
    %v854 = vunpack.c.l.bf16 %v726
    %v855 = vunpack.c.l.bf16 %v727
    %v856 = vunpack.c.l.bf16 %v728
    %v857 = vunpack.c.l.bf16 %v729
    %v858 = vunpack.c.l.bf16 %v730
    %v859 = vunpack.c.l.bf16 %v731
    %v860 = vunpack.c.l.bf16 %v732
    %v861 = vunpack.c.l.bf16 %v733
    %v862 = vunpack.c.l.bf16 %v734
    %v863 = vunpack.c.l.bf16 %v735
    %v864 = vunpack.c.l.bf16 %v736
    %v865 = vunpack.c.l.bf16 %v737
    %v866 = vunpack.c.l.bf16 %v738
    %v867 = vunpack.c.l.bf16 %v739
    %v868 = vunpack.c.l.bf16 %v740
    %v869 = vunpack.c.l.bf16 %v741
    %v870 = vunpack.c.l.bf16 %v742
    %v871 = vunpack.c.l.bf16 %v743
    %v872 = vunpack.c.l.bf16 %v744
    %v873 = vunpack.c.l.bf16 %v745
    %v874 = vunpack.c.l.bf16 %v746
    %v875 = vunpack.c.l.bf16 %v747
    %v876 = vunpack.c.l.bf16 %v748
    %v877 = vunpack.c.l.bf16 %v749
    %v878 = vunpack.c.l.bf16 %v750
    %v879 = vunpack.c.l.bf16 %v751
    %v880 = vunpack.c.l.bf16 %v752
    %v881 = vunpack.c.l.bf16 %v753
    %v882 = vunpack.c.l.bf16 %v754
    %v883 = vunpack.c.l.bf16 %v755
    %v884 = vunpack.c.l.bf16 %v756
    %v885 = vunpack.c.l.bf16 %v757
    %v886 = vunpack.c.l.bf16 %v758
    %v887 = vunpack.c.l.bf16 %v759
    %v888 = vunpack.c.l.bf16 %v760
    %v889 = vunpack.c.l.bf16 %v761
    %v890 = vunpack.c.l.bf16 %v762
    %v891 = vunpack.c.l.bf16 %v763
    %v892 = vunpack.c.l.bf16 %v764
    %v893 = vunpack.c.l.bf16 %v765
    %v894 = vunpack.c.l.bf16 %v766
    %v895 = vunpack.c.l.bf16 %v767
    %v896 = vunpack.c.l.bf16 %v768
    %v897 = vunpack.c.l.bf16 %v769
    %v898 = vunpack.c.l.bf16 %v770
    %v899 = vunpack.c.l.bf16 %v771
    %v900 = vunpack.c.l.bf16 %v772
    %v901 = vunpack.c.l.bf16 %v773
    %v902 = vunpack.c.l.bf16 %v774
    %v903 = vunpack.c.l.bf16 %v775
    %v904 = vunpack.c.l.bf16 %v776
    %v905 = vunpack.c.l.bf16 %v777
    %v906 = vunpack.c.l.bf16 %v778
    %v907 = vunpack.c.l.bf16 %v779
    %v908 = vunpack.c.l.bf16 %v780
    %v909 = vunpack.c.l.bf16 %v781
    %v910 = vunpack.c.l.bf16 %v782
    %v911 = vunpack.c.l.bf16 %v783
    %v912 = vunpack.c.l.bf16 %v784
    %v913 = vunpack.c.l.bf16 %v785
    %v914 = vunpack.c.l.bf16 %v786
    %v915 = vunpack.c.l.bf16 %v787
    %v916 = vunpack.c.l.bf16 %v788
    %v917 = vunpack.c.l.bf16 %v789
    %v918 = vunpack.c.l.bf16 %v790
    %v919 = vunpack.c.l.bf16 %v791
    %v920 = vunpack.c.l.bf16 %v792
    %v921 = vunpack.c.l.bf16 %v793
    %v922 = vunpack.c.l.bf16 %v794
    %v923 = vunpack.c.l.bf16 %v795
    %v924 = vunpack.c.l.bf16 %v796
    %v925 = vunpack.c.l.bf16 %v797
    %v926 = vunpack.c.l.bf16 %v798
    %v927 = vunpack.c.l.bf16 %v799
    %v928 = vunpack.c.l.bf16 %v800
    %v929 = vunpack.c.l.bf16 %v801
    %v930 = vunpack.c.l.bf16 %v802
    %v931 = vunpack.c.l.bf16 %v803
    %v932 = vunpack.c.l.bf16 %v804
    %v933 = vunpack.c.l.bf16 %v805
    %v934 = vunpack.c.l.bf16 %v806
    %v935 = vunpack.c.l.bf16 %v807
    %v936 = vunpack.c.l.bf16 %v808
    %v937 = vunpack.c.l.bf16 %v809
    %v938 = vunpack.c.l.bf16 %v810
    %v939 = vunpack.c.l.bf16 %v811
    %v940 = vunpack.c.l.bf16 %v812
    %v941 = vunpack.c.l.bf16 %v813
    %v942 = vunpack.c.l.bf16 %v814
    %v943 = vunpack.c.l.bf16 %v815
    %v944 = vunpack.c.l.bf16 %v816
    %v945 = vunpack.c.l.bf16 %v817
    %v946 = vunpack.c.l.bf16 %v818
    %v947 = vunpack.c.l.bf16 %v819
    %v948 = vunpack.c.l.bf16 %v820
    %v949 = vunpack.c.l.bf16 %v821
    %v950 = vunpack.c.l.bf16 %v822
    %v951 = vunpack.c.l.bf16 %v823
    %v952 = vunpack.c.l.bf16 %v824
    %v953 = vunpack.c.l.bf16 %v825
    %v954 = vunpack.c.l.bf16 %v826
    %v955 = vunpack.c.l.bf16 %v827
    %v956 = vunpack.c.l.bf16 %v828
    %v957 = vunpack.c.l.bf16 %v829
    %v958 = vunpack.c.l.bf16 %v830
    %v959 = vunpack.c.l.bf16 %v831
    %v960 = vunpack.c.l.bf16 %v832
    %v961 = vunpack.c.l.bf16 %v833
    %v962 = vunpack.c.l.bf16 %v834
    %v963 = vunpack.c.l.bf16 %v835
    %v964 = vunpack.c.l.bf16 %v836
    %v965 = vunpack.c.l.bf16 %v837
    %v966 = vunpack.c.l.bf16 %v838
    %v967 = vunpack.c.l.bf16 %v839
    %v968 = vunpack.c.l.bf16 %v840
    %v969 = vunpack.c.l.bf16 %v841
    %v970 = vunpack.c.l.bf16 %v842
    %v971 = vunpack.c.l.bf16 %v843
    %v972 = vunpack.c.l.bf16 %v844
    %v973 = vunpack.c.l.bf16 %v845
    %v974 = vunpack.c.l.bf16 %v846
    %v975 = vunpack.c.l.bf16 %v847
    %v976 = vunpack.c.l.bf16 %v848
    %v977 = vunpack.c.l.bf16 %v849
    %v978 = vunpack.c.l.bf16 %v850
    %v979 = vunpack.c.l.bf16 %v851
    %v980 = vpack.c.bf16 %v722, %v722
    %v981 = vld [vmem:[#allocation14] sm:$0xf]
    %v982 = vld [vmem:[#allocation14 + $0x4] sm:$0xf]
    %v983 = vld [vmem:[#allocation14 + $0x8] sm:$0xf]
    %v984 = vld [vmem:[#allocation14 + $0xc] sm:$0xf]
    %v985 = vld [vmem:[#allocation14 + $0x10] sm:$0xf]
    %v986 = vld [vmem:[#allocation14 + $0x14] sm:$0xf]
    %v987 = vld [vmem:[#allocation14 + $0x18] sm:$0xf]
    %v988 = vld [vmem:[#allocation14 + $0x1c] sm:$0xf]
    %v989 = vld [vmem:[#allocation14 + $0x20] sm:$0xf]
    %v990 = vld [vmem:[#allocation14 + $0x24] sm:$0xf]
    %v991 = vld [vmem:[#allocation14 + $0x28] sm:$0xf]
    %v992 = vld [vmem:[#allocation14 + $0x2c] sm:$0xf]
    %v993 = vld [vmem:[#allocation14 + $0x30] sm:$0xf]
    %v994 = vld [vmem:[#allocation14 + $0x34] sm:$0xf]
    %v995 = vld [vmem:[#allocation14 + $0x38] sm:$0xf]
    %v996 = vld [vmem:[#allocation14 + $0x3c] sm:$0xf]
    %v1013 = vunpack.c.l.b16 %v981
    %v1014 = vunpack.c.l.b16 %v982
    %v1015 = vunpack.c.l.b16 %v983
    %v1016 = vunpack.c.l.b16 %v984
    %v1017 = vunpack.c.l.b16 %v985
    %v1018 = vunpack.c.l.b16 %v986
    %v1019 = vunpack.c.l.b16 %v987
    %v1020 = vunpack.c.l.b16 %v988
    %v1021 = vunpack.c.l.b16 %v989
    %v1022 = vunpack.c.l.b16 %v990
    %v1023 = vunpack.c.l.b16 %v991
    %v1024 = vunpack.c.l.b16 %v992
    %v1025 = vunpack.c.l.b16 %v993
    %v1026 = vunpack.c.l.b16 %v994
    %v1027 = vunpack.c.l.b16 %v995
    %v1028 = vunpack.c.l.b16 %v996
    %v1029 = vpack.c.b16 %v1014, %v1013
    %v1030 = vpack.c.b16 %v1016, %v1015
    %v1031 = vpack.c.b16 %v1018, %v1017
    %v1032 = vpack.c.b16 %v1020, %v1019
    %v1033 = vpack.c.b16 %v1022, %v1021
    %v1034 = vpack.c.b16 %v1024, %v1023
    %v1035 = vpack.c.b16 %v1026, %v1025
    %v1036 = vpack.c.b16 %v1028, %v1027
    %1045 = vmatprep.subr.bf16.mxu0 0
    %1046 = vmatpush1.bf16.msra.mxu0 %v1036
    %1047 = vmatprep.subr.bf16.mxu0 0
    %1048 = vmatpush1.bf16.msra.mxu0 %v1035
    %1049 = vmatprep.subr.bf16.mxu0 0
    %1050 = vmatpush1.bf16.msra.mxu0 %v1034
    %1051 = vmatprep.subr.bf16.mxu0 0
    %1052 = vmatpush1.bf16.msra.mxu0 %v1033
    %1053 = vmatprep.subr.bf16.mxu0 0
    %1054 = vmatpush1.bf16.msra.mxu0 %v1032
    %1055 = vmatprep.subr.bf16.mxu0 0
    %1056 = vmatpush1.bf16.msra.mxu0 %v1031
    %1057 = vmatprep.subr.bf16.mxu0 0
    %1058 = vmatpush1.bf16.msra.mxu0 %v1030
    %1059 = vmatprep.subr.bf16.mxu0 0
    %1060 = vmatpush1.bf16.msra.mxu0 %v1029
    %1061 = vmatprep.subr.bf16.mxu0 0
    %1062 = vmatpush2.bf16.msra.mxu0 0
    %1063 = vmatprep.subr.bf16.mxu0 0
    %1064 = vmatpush2.bf16.msra.mxu0 0
    %1065 = vmatprep.subr.bf16.mxu0 0
    %1066 = vmatpush2.bf16.msra.mxu0 0
    %1067 = vmatprep.subr.bf16.mxu0 0
    %1068 = vmatpush2.bf16.msra.mxu0 0
    %1069 = vmatprep.subr.bf16.mxu0 0
    %1070 = vmatpush2.bf16.msra.mxu0 0
    %1071 = vmatprep.subr.bf16.mxu0 0
    %1072 = vmatpush2.bf16.msra.mxu0 0
    %1073 = vmatprep.subr.bf16.mxu0 0
    %1074 = vmatpush2.bf16.msra.mxu0 0
    %1075 = vmatprep.subr.bf16.mxu0 0
    %1076 = vmatpush2.bf16.msra.mxu0 0
    %1077 = vmatprep.mubr.bf16.mxu0 0
    %1078 = vmatmul.mubr.bf16.gmra.mxu0 %v980
    %v1079 = vpop.f32.mrf.mxu0
    %v1080 = vadd.f32 0.0, %v1079
    %v1081 = vpop.f32.mrf.mxu0
    %v1082 = vpop.f32.mrf.mxu0
    %v1083 = vpop.f32.mrf.mxu0
    %1084 = vdwg.mxu0
    %v1085 = vld [vmem:[%s9] sm:$0x1]
    %v1087 = vlaneseq
    %v1088 = vshrl.u32 %v1087, 7
    %v1089 = vsub.s32 0, %v1088
    %v1090 = vrot.slane %v1085, %v1089
    %v1092 = vmul.f32 %v722, %v1090
    %1093 = vadd.xlane.f32.xlu0 %v1092
    %v1094 = vpop.xlane.xlu0 %1093
    %v1096 = vcombine.high %v1080, %v1080
    %v1098 = vunpack.c.l.s4 1966171168
    %v1099 = vunpack.c.0.s8 %v1098
    %v1100 = vlaneseq
    %v1101 = vshrl.u32 %v1100, 7
    %v1102 = vsub.s32 %v1099, %v1101
    %v1103 = vrot.slane %v1080, %v1102
    %v1105 = vunpack.c.l.s4 1966171168
    %v1106 = vunpack.c.0.s8 %v1105
    %v1107 = vlaneseq
    %v1108 = vshrl.u32 %v1107, 7
    %v1109 = vsub.s32 %v1106, %v1108
    %v1110 = vrot.slane %v1096, %v1109
    %v1111 = vcombine.high %v1103, %v1103
    %v1112 = vcombine.high %v1110, %v1110
    %v1114 = vunpack.c.l.s4 1966171168
    %v1115 = vunpack.c.0.s8 %v1114
    %v1116 = vlaneseq
    %v1117 = vshrl.u32 %v1116, 7
    %v1118 = vsub.s32 %v1115, %v1117
    %v1119 = vrot.slane %v1103, %v1118
    %v1121 = vunpack.c.l.s4 1966171168
    %v1122 = vunpack.c.0.s8 %v1121
    %v1123 = vlaneseq
    %v1124 = vshrl.u32 %v1123, 7
    %v1125 = vsub.s32 %v1122, %v1124
    %v1126 = vrot.slane %v1110, %v1125
    %v1128 = vunpack.c.l.s4 1966171168
    %v1129 = vunpack.c.0.s8 %v1128
    %v1130 = vlaneseq
    %v1131 = vshrl.u32 %v1130, 7
    %v1132 = vsub.s32 %v1129, %v1131
    %v1133 = vrot.slane %v1111, %v1132
    %v1135 = vunpack.c.l.s4 1966171168
    %v1136 = vunpack.c.0.s8 %v1135
    %v1137 = vlaneseq
    %v1138 = vshrl.u32 %v1137, 7
    %v1139 = vsub.s32 %v1136, %v1138
    %v1140 = vrot.slane %v1112, %v1139
    %v1141 = vcombine.high %v1119, %v1119
    %v1142 = vcombine.high %v1126, %v1126
    %v1143 = vcombine.high %v1133, %v1133
    %v1144 = vcombine.high %v1140, %v1140
    %v1145 = vlaneseq
    %v1146 = vshrl.u32 %v1145, 7
    %v1147 = vsub.s32 0, %v1146
    %v1148 = vrot.slane %v1119, %v1147
    %v1149 = vlaneseq
    %v1150 = vshrl.u32 %v1149, 7
    %v1151 = vsub.s32 0, %v1150
    %v1152 = vrot.slane %v1133, %v1151
    %v1153 = vlaneseq
    %v1154 = vshrl.u32 %v1153, 7
    %v1155 = vsub.s32 0, %v1154
    %v1156 = vrot.slane %v1141, %v1155
    %v1157 = vlaneseq
    %v1158 = vshrl.u32 %v1157, 7
    %v1159 = vsub.s32 0, %v1158
    %v1160 = vrot.slane %v1143, %v1159
    %v1161 = vlaneseq
    %v1162 = vshrl.u32 %v1161, 7
    %v1163 = vsub.s32 0, %v1162
    %v1164 = vrot.slane %v1126, %v1163
    %v1165 = vlaneseq
    %v1166 = vshrl.u32 %v1165, 7
    %v1167 = vsub.s32 0, %v1166
    %v1168 = vrot.slane %v1140, %v1167
    %v1169 = vlaneseq
    %v1170 = vshrl.u32 %v1169, 7
    %v1171 = vsub.s32 0, %v1170
    %v1172 = vrot.slane %v1142, %v1171
    %v1173 = vlaneseq
    %v1174 = vshrl.u32 %v1173, 7
    %v1175 = vsub.s32 0, %v1174
    %v1176 = vrot.slane %v1144, %v1175
    %v1185 = vmul.f32 %v1148, %v852
    %v1186 = vmul.f32 %v1148, %v853
    %v1187 = vmul.f32 %v1148, %v854
    %v1188 = vmul.f32 %v1148, %v855
    %v1189 = vmul.f32 %v1148, %v856
    %v1190 = vmul.f32 %v1148, %v857
    %v1191 = vmul.f32 %v1148, %v858
    %v1192 = vmul.f32 %v1148, %v859
    %v1193 = vmul.f32 %v1148, %v860
    %v1194 = vmul.f32 %v1148, %v861
    %v1195 = vmul.f32 %v1148, %v862
    %v1196 = vmul.f32 %v1148, %v863
    %v1197 = vmul.f32 %v1148, %v864
    %v1198 = vmul.f32 %v1148, %v865
    %v1199 = vmul.f32 %v1148, %v866
    %v1200 = vmul.f32 %v1148, %v867
    %v1201 = vmul.f32 %v1152, %v868
    %v1202 = vmul.f32 %v1152, %v869
    %v1203 = vmul.f32 %v1152, %v870
    %v1204 = vmul.f32 %v1152, %v871
    %v1205 = vmul.f32 %v1152, %v872
    %v1206 = vmul.f32 %v1152, %v873
    %v1207 = vmul.f32 %v1152, %v874
    %v1208 = vmul.f32 %v1152, %v875
    %v1209 = vmul.f32 %v1152, %v876
    %v1210 = vmul.f32 %v1152, %v877
    %v1211 = vmul.f32 %v1152, %v878
    %v1212 = vmul.f32 %v1152, %v879
    %v1213 = vmul.f32 %v1152, %v880
    %v1214 = vmul.f32 %v1152, %v881
    %v1215 = vmul.f32 %v1152, %v882
    %v1216 = vmul.f32 %v1152, %v883
    %v1217 = vmul.f32 %v1156, %v884
    %v1218 = vmul.f32 %v1156, %v885
    %v1219 = vmul.f32 %v1156, %v886
    %v1220 = vmul.f32 %v1156, %v887
    %v1221 = vmul.f32 %v1156, %v888
    %v1222 = vmul.f32 %v1156, %v889
    %v1223 = vmul.f32 %v1156, %v890
    %v1224 = vmul.f32 %v1156, %v891
    %v1225 = vmul.f32 %v1156, %v892
    %v1226 = vmul.f32 %v1156, %v893
    %v1227 = vmul.f32 %v1156, %v894
    %v1228 = vmul.f32 %v1156, %v895
    %v1229 = vmul.f32 %v1156, %v896
    %v1230 = vmul.f32 %v1156, %v897
    %v1231 = vmul.f32 %v1156, %v898
    %v1232 = vmul.f32 %v1156, %v899
    %v1233 = vmul.f32 %v1160, %v900
    %v1234 = vmul.f32 %v1160, %v901
    %v1235 = vmul.f32 %v1160, %v902
    %v1236 = vmul.f32 %v1160, %v903
    %v1237 = vmul.f32 %v1160, %v904
    %v1238 = vmul.f32 %v1160, %v905
    %v1239 = vmul.f32 %v1160, %v906
    %v1240 = vmul.f32 %v1160, %v907
    %v1241 = vmul.f32 %v1160, %v908
    %v1242 = vmul.f32 %v1160, %v909
    %v1243 = vmul.f32 %v1160, %v910
    %v1244 = vmul.f32 %v1160, %v911
    %v1245 = vmul.f32 %v1160, %v912
    %v1246 = vmul.f32 %v1160, %v913
    %v1247 = vmul.f32 %v1160, %v914
    %v1248 = vmul.f32 %v1160, %v915
    %v1249 = vmul.f32 %v1164, %v916
    %v1250 = vmul.f32 %v1164, %v917
    %v1251 = vmul.f32 %v1164, %v918
    %v1252 = vmul.f32 %v1164, %v919
    %v1253 = vmul.f32 %v1164, %v920
    %v1254 = vmul.f32 %v1164, %v921
    %v1255 = vmul.f32 %v1164, %v922
    %v1256 = vmul.f32 %v1164, %v923
    %v1257 = vmul.f32 %v1164, %v924
    %v1258 = vmul.f32 %v1164, %v925
    %v1259 = vmul.f32 %v1164, %v926
    %v1260 = vmul.f32 %v1164, %v927
    %v1261 = vmul.f32 %v1164, %v928
    %v1262 = vmul.f32 %v1164, %v929
    %v1263 = vmul.f32 %v1164, %v930
    %v1264 = vmul.f32 %v1164, %v931
    %v1265 = vmul.f32 %v1168, %v932
    %v1266 = vmul.f32 %v1168, %v933
    %v1267 = vmul.f32 %v1168, %v934
    %v1268 = vmul.f32 %v1168, %v935
    %v1269 = vmul.f32 %v1168, %v936
    %v1270 = vmul.f32 %v1168, %v937
    %v1271 = vmul.f32 %v1168, %v938
    %v1272 = vmul.f32 %v1168, %v939
    %v1273 = vmul.f32 %v1168, %v940
    %v1274 = vmul.f32 %v1168, %v941
    %v1275 = vmul.f32 %v1168, %v942
    %v1276 = vmul.f32 %v1168, %v943
    %v1277 = vmul.f32 %v1168, %v944
    %v1278 = vmul.f32 %v1168, %v945
    %v1279 = vmul.f32 %v1168, %v946
    %v1280 = vmul.f32 %v1168, %v947
    %v1281 = vmul.f32 %v1172, %v948
    %v1282 = vmul.f32 %v1172, %v949
    %v1283 = vmul.f32 %v1172, %v950
    %v1284 = vmul.f32 %v1172, %v951
    %v1285 = vmul.f32 %v1172, %v952
    %v1286 = vmul.f32 %v1172, %v953
    %v1287 = vmul.f32 %v1172, %v954
    %v1288 = vmul.f32 %v1172, %v955
    %v1289 = vmul.f32 %v1172, %v956
    %v1290 = vmul.f32 %v1172, %v957
    %v1291 = vmul.f32 %v1172, %v958
    %v1292 = vmul.f32 %v1172, %v959
    %v1293 = vmul.f32 %v1172, %v960
    %v1294 = vmul.f32 %v1172, %v961
    %v1295 = vmul.f32 %v1172, %v962
    %v1296 = vmul.f32 %v1172, %v963
    %v1297 = vmul.f32 %v1176, %v964
    %v1298 = vmul.f32 %v1176, %v965
    %v1299 = vmul.f32 %v1176, %v966
    %v1300 = vmul.f32 %v1176, %v967
    %v1301 = vmul.f32 %v1176, %v968
    %v1302 = vmul.f32 %v1176, %v969
    %v1303 = vmul.f32 %v1176, %v970
    %v1304 = vmul.f32 %v1176, %v971
    %v1305 = vmul.f32 %v1176, %v972
    %v1306 = vmul.f32 %v1176, %v973
    %v1307 = vmul.f32 %v1176, %v974
    %v1308 = vmul.f32 %v1176, %v975
    %v1309 = vmul.f32 %v1176, %v976
    %v1310 = vmul.f32 %v1176, %v977
    %v1311 = vmul.f32 %v1176, %v978
    %v1312 = vmul.f32 %v1176, %v979
    %1313 = vadd.xlane.f32.xlu0 %v1185
    %v1314 = vpop.xlane.xlu0 %1313
    %1315 = vadd.xlane.f32.xlu0 %v1186
    %v1316 = vpop.xlane.xlu0 %1315
    %1317 = vadd.xlane.f32.xlu0 %v1187
    %v1318 = vpop.xlane.xlu0 %1317
    %1319 = vadd.xlane.f32.xlu0 %v1188
    %v1320 = vpop.xlane.xlu0 %1319
    %1321 = vadd.xlane.f32.xlu0 %v1189
    %v1322 = vpop.xlane.xlu0 %1321
    %1323 = vadd.xlane.f32.xlu0 %v1190
    %v1324 = vpop.xlane.xlu0 %1323
    %1325 = vadd.xlane.f32.xlu0 %v1191
    %v1326 = vpop.xlane.xlu0 %1325
    %1327 = vadd.xlane.f32.xlu0 %v1192
    %v1328 = vpop.xlane.xlu0 %1327
    %1329 = vadd.xlane.f32.xlu0 %v1193
    %v1330 = vpop.xlane.xlu0 %1329
    %1331 = vadd.xlane.f32.xlu0 %v1194
    %v1332 = vpop.xlane.xlu0 %1331
    %1333 = vadd.xlane.f32.xlu0 %v1195
    %v1334 = vpop.xlane.xlu0 %1333
    %1335 = vadd.xlane.f32.xlu0 %v1196
    %v1336 = vpop.xlane.xlu0 %1335
    %1337 = vadd.xlane.f32.xlu0 %v1197
    %v1338 = vpop.xlane.xlu0 %1337
    %1339 = vadd.xlane.f32.xlu0 %v1198
    %v1340 = vpop.xlane.xlu0 %1339
    %1341 = vadd.xlane.f32.xlu0 %v1199
    %v1342 = vpop.xlane.xlu0 %1341
    %1343 = vadd.xlane.f32.xlu0 %v1200
    %v1344 = vpop.xlane.xlu0 %1343
    %1345 = vadd.xlane.f32.xlu0 %v1201
    %v1346 = vpop.xlane.xlu0 %1345
    %1347 = vadd.xlane.f32.xlu0 %v1202
    %v1348 = vpop.xlane.xlu0 %1347
    %1349 = vadd.xlane.f32.xlu0 %v1203
    %v1350 = vpop.xlane.xlu0 %1349
    %1351 = vadd.xlane.f32.xlu0 %v1204
    %v1352 = vpop.xlane.xlu0 %1351
    %1353 = vadd.xlane.f32.xlu0 %v1205
    %v1354 = vpop.xlane.xlu0 %1353
    %1355 = vadd.xlane.f32.xlu0 %v1206
    %v1356 = vpop.xlane.xlu0 %1355
    %1357 = vadd.xlane.f32.xlu0 %v1207
    %v1358 = vpop.xlane.xlu0 %1357
    %1359 = vadd.xlane.f32.xlu0 %v1208
    %v1360 = vpop.xlane.xlu0 %1359
    %1361 = vadd.xlane.f32.xlu0 %v1209
    %v1362 = vpop.xlane.xlu0 %1361
    %1363 = vadd.xlane.f32.xlu0 %v1210
    %v1364 = vpop.xlane.xlu0 %1363
    %1365 = vadd.xlane.f32.xlu0 %v1211
    %v1366 = vpop.xlane.xlu0 %1365
    %1367 = vadd.xlane.f32.xlu0 %v1212
    %v1368 = vpop.xlane.xlu0 %1367
    %1369 = vadd.xlane.f32.xlu0 %v1213
    %v1370 = vpop.xlane.xlu0 %1369
    %1371 = vadd.xlane.f32.xlu0 %v1214
    %v1372 = vpop.xlane.xlu0 %1371
    %1373 = vadd.xlane.f32.xlu0 %v1215
    %v1374 = vpop.xlane.xlu0 %1373
    %1375 = vadd.xlane.f32.xlu0 %v1216
    %v1376 = vpop.xlane.xlu0 %1375
    %1377 = vadd.xlane.f32.xlu0 %v1217
    %v1378 = vpop.xlane.xlu0 %1377
    %1379 = vadd.xlane.f32.xlu0 %v1218
    %v1380 = vpop.xlane.xlu0 %1379
    %1381 = vadd.xlane.f32.xlu0 %v1219
    %v1382 = vpop.xlane.xlu0 %1381
    %1383 = vadd.xlane.f32.xlu0 %v1220
    %v1384 = vpop.xlane.xlu0 %1383
    %1385 = vadd.xlane.f32.xlu0 %v1221
    %v1386 = vpop.xlane.xlu0 %1385
    %1387 = vadd.xlane.f32.xlu0 %v1222
    %v1388 = vpop.xlane.xlu0 %1387
    %1389 = vadd.xlane.f32.xlu0 %v1223
    %v1390 = vpop.xlane.xlu0 %1389
    %1391 = vadd.xlane.f32.xlu0 %v1224
    %v1392 = vpop.xlane.xlu0 %1391
    %1393 = vadd.xlane.f32.xlu0 %v1225
    %v1394 = vpop.xlane.xlu0 %1393
    %1395 = vadd.xlane.f32.xlu0 %v1226
    %v1396 = vpop.xlane.xlu0 %1395
    %1397 = vadd.xlane.f32.xlu0 %v1227
    %v1398 = vpop.xlane.xlu0 %1397
    %1399 = vadd.xlane.f32.xlu0 %v1228
    %v1400 = vpop.xlane.xlu0 %1399
    %1401 = vadd.xlane.f32.xlu0 %v1229
    %v1402 = vpop.xlane.xlu0 %1401
    %1403 = vadd.xlane.f32.xlu0 %v1230
    %v1404 = vpop.xlane.xlu0 %1403
    %1405 = vadd.xlane.f32.xlu0 %v1231
    %v1406 = vpop.xlane.xlu0 %1405
    %1407 = vadd.xlane.f32.xlu0 %v1232
    %v1408 = vpop.xlane.xlu0 %1407
    %1409 = vadd.xlane.f32.xlu0 %v1233
    %v1410 = vpop.xlane.xlu0 %1409
    %1411 = vadd.xlane.f32.xlu0 %v1234
    %v1412 = vpop.xlane.xlu0 %1411
    %1413 = vadd.xlane.f32.xlu0 %v1235
    %v1414 = vpop.xlane.xlu0 %1413
    %1415 = vadd.xlane.f32.xlu0 %v1236
    %v1416 = vpop.xlane.xlu0 %1415
    %1417 = vadd.xlane.f32.xlu0 %v1237
    %v1418 = vpop.xlane.xlu0 %1417
    %1419 = vadd.xlane.f32.xlu0 %v1238
    %v1420 = vpop.xlane.xlu0 %1419
    %1421 = vadd.xlane.f32.xlu0 %v1239
    %v1422 = vpop.xlane.xlu0 %1421
    %1423 = vadd.xlane.f32.xlu0 %v1240
    %v1424 = vpop.xlane.xlu0 %1423
    %1425 = vadd.xlane.f32.xlu0 %v1241
    %v1426 = vpop.xlane.xlu0 %1425
    %1427 = vadd.xlane.f32.xlu0 %v1242
    %v1428 = vpop.xlane.xlu0 %1427
    %1429 = vadd.xlane.f32.xlu0 %v1243
    %v1430 = vpop.xlane.xlu0 %1429
    %1431 = vadd.xlane.f32.xlu0 %v1244
    %v1432 = vpop.xlane.xlu0 %1431
    %1433 = vadd.xlane.f32.xlu0 %v1245
    %v1434 = vpop.xlane.xlu0 %1433
    %1435 = vadd.xlane.f32.xlu0 %v1246
    %v1436 = vpop.xlane.xlu0 %1435
    %1437 = vadd.xlane.f32.xlu0 %v1247
    %v1438 = vpop.xlane.xlu0 %1437
    %1439 = vadd.xlane.f32.xlu0 %v1248
    %v1440 = vpop.xlane.xlu0 %1439
    %1441 = vadd.xlane.f32.xlu0 %v1249
    %v1442 = vpop.xlane.xlu0 %1441
    %1443 = vadd.xlane.f32.xlu0 %v1250
    %v1444 = vpop.xlane.xlu0 %1443
    %1445 = vadd.xlane.f32.xlu0 %v1251
    %v1446 = vpop.xlane.xlu0 %1445
    %1447 = vadd.xlane.f32.xlu0 %v1252
    %v1448 = vpop.xlane.xlu0 %1447
    %1449 = vadd.xlane.f32.xlu0 %v1253
    %v1450 = vpop.xlane.xlu0 %1449
    %1451 = vadd.xlane.f32.xlu0 %v1254
    %v1452 = vpop.xlane.xlu0 %1451
    %1453 = vadd.xlane.f32.xlu0 %v1255
    %v1454 = vpop.xlane.xlu0 %1453
    %1455 = vadd.xlane.f32.xlu0 %v1256
    %v1456 = vpop.xlane.xlu0 %1455
    %1457 = vadd.xlane.f32.xlu0 %v1257
    %v1458 = vpop.xlane.xlu0 %1457
    %1459 = vadd.xlane.f32.xlu0 %v1258
    %v1460 = vpop.xlane.xlu0 %1459
    %1461 = vadd.xlane.f32.xlu0 %v1259
    %v1462 = vpop.xlane.xlu0 %1461
    %1463 = vadd.xlane.f32.xlu0 %v1260
    %v1464 = vpop.xlane.xlu0 %1463
    %1465 = vadd.xlane.f32.xlu0 %v1261
    %v1466 = vpop.xlane.xlu0 %1465
    %1467 = vadd.xlane.f32.xlu0 %v1262
    %v1468 = vpop.xlane.xlu0 %1467
    %1469 = vadd.xlane.f32.xlu0 %v1263
    %v1470 = vpop.xlane.xlu0 %1469
    %1471 = vadd.xlane.f32.xlu0 %v1264
    %v1472 = vpop.xlane.xlu0 %1471
    %1473 = vadd.xlane.f32.xlu0 %v1265
    %v1474 = vpop.xlane.xlu0 %1473
    %1475 = vadd.xlane.f32.xlu0 %v1266
    %v1476 = vpop.xlane.xlu0 %1475
    %1477 = vadd.xlane.f32.xlu0 %v1267
    %v1478 = vpop.xlane.xlu0 %1477
    %1479 = vadd.xlane.f32.xlu0 %v1268
    %v1480 = vpop.xlane.xlu0 %1479
    %1481 = vadd.xlane.f32.xlu0 %v1269
    %v1482 = vpop.xlane.xlu0 %1481
    %1483 = vadd.xlane.f32.xlu0 %v1270
    %v1484 = vpop.xlane.xlu0 %1483
    %1485 = vadd.xlane.f32.xlu0 %v1271
    %v1486 = vpop.xlane.xlu0 %1485
    %1487 = vadd.xlane.f32.xlu0 %v1272
    %v1488 = vpop.xlane.xlu0 %1487
    %1489 = vadd.xlane.f32.xlu0 %v1273
    %v1490 = vpop.xlane.xlu0 %1489
    %1491 = vadd.xlane.f32.xlu0 %v1274
    %v1492 = vpop.xlane.xlu0 %1491
    %1493 = vadd.xlane.f32.xlu0 %v1275
    %v1494 = vpop.xlane.xlu0 %1493
    %1495 = vadd.xlane.f32.xlu0 %v1276
    %v1496 = vpop.xlane.xlu0 %1495
    %1497 = vadd.xlane.f32.xlu0 %v1277
    %v1498 = vpop.xlane.xlu0 %1497
    %1499 = vadd.xlane.f32.xlu0 %v1278
    %v1500 = vpop.xlane.xlu0 %1499
    %1501 = vadd.xlane.f32.xlu0 %v1279
    %v1502 = vpop.xlane.xlu0 %1501
    %1503 = vadd.xlane.f32.xlu0 %v1280
    %v1504 = vpop.xlane.xlu0 %1503
    %1505 = vadd.xlane.f32.xlu0 %v1281
    %v1506 = vpop.xlane.xlu0 %1505
    %1507 = vadd.xlane.f32.xlu0 %v1282
    %v1508 = vpop.xlane.xlu0 %1507
    %1509 = vadd.xlane.f32.xlu0 %v1283
    %v1510 = vpop.xlane.xlu0 %1509
    %1511 = vadd.xlane.f32.xlu0 %v1284
    %v1512 = vpop.xlane.xlu0 %1511
    %1513 = vadd.xlane.f32.xlu0 %v1285
    %v1514 = vpop.xlane.xlu0 %1513
    %1515 = vadd.xlane.f32.xlu0 %v1286
    %v1516 = vpop.xlane.xlu0 %1515
    %1517 = vadd.xlane.f32.xlu0 %v1287
    %v1518 = vpop.xlane.xlu0 %1517
    %1519 = vadd.xlane.f32.xlu0 %v1288
    %v1520 = vpop.xlane.xlu0 %1519
    %1521 = vadd.xlane.f32.xlu0 %v1289
    %v1522 = vpop.xlane.xlu0 %1521
    %1523 = vadd.xlane.f32.xlu0 %v1290
    %v1524 = vpop.xlane.xlu0 %1523
    %1525 = vadd.xlane.f32.xlu0 %v1291
    %v1526 = vpop.xlane.xlu0 %1525
    %1527 = vadd.xlane.f32.xlu0 %v1292
    %v1528 = vpop.xlane.xlu0 %1527
    %1529 = vadd.xlane.f32.xlu0 %v1293
    %v1530 = vpop.xlane.xlu0 %1529
    %1531 = vadd.xlane.f32.xlu0 %v1294
    %v1532 = vpop.xlane.xlu0 %1531
    %1533 = vadd.xlane.f32.xlu0 %v1295
    %v1534 = vpop.xlane.xlu0 %1533
    %1535 = vadd.xlane.f32.xlu0 %v1296
    %v1536 = vpop.xlane.xlu0 %1535
    %1537 = vadd.xlane.f32.xlu0 %v1297
    %v1538 = vpop.xlane.xlu0 %1537
    %1539 = vadd.xlane.f32.xlu0 %v1298
    %v1540 = vpop.xlane.xlu0 %1539
    %1541 = vadd.xlane.f32.xlu0 %v1299
    %v1542 = vpop.xlane.xlu0 %1541
    %1543 = vadd.xlane.f32.xlu0 %v1300
    %v1544 = vpop.xlane.xlu0 %1543
    %1545 = vadd.xlane.f32.xlu0 %v1301
    %v1546 = vpop.xlane.xlu0 %1545
    %1547 = vadd.xlane.f32.xlu0 %v1302
    %v1548 = vpop.xlane.xlu0 %1547
    %1549 = vadd.xlane.f32.xlu0 %v1303
    %v1550 = vpop.xlane.xlu0 %1549
    %1551 = vadd.xlane.f32.xlu0 %v1304
    %v1552 = vpop.xlane.xlu0 %1551
    %1553 = vadd.xlane.f32.xlu0 %v1305
    %v1554 = vpop.xlane.xlu0 %1553
    %1555 = vadd.xlane.f32.xlu0 %v1306
    %v1556 = vpop.xlane.xlu0 %1555
    %1557 = vadd.xlane.f32.xlu0 %v1307
    %v1558 = vpop.xlane.xlu0 %1557
    %1559 = vadd.xlane.f32.xlu0 %v1308
    %v1560 = vpop.xlane.xlu0 %1559
    %1561 = vadd.xlane.f32.xlu0 %v1309
    %v1562 = vpop.xlane.xlu0 %1561
    %1563 = vadd.xlane.f32.xlu0 %v1310
    %v1564 = vpop.xlane.xlu0 %1563
    %1565 = vadd.xlane.f32.xlu0 %v1311
    %v1566 = vpop.xlane.xlu0 %1565
    %1567 = vadd.xlane.f32.xlu0 %v1312
    %v1568 = vpop.xlane.xlu0 %1567
    %v1570 = vlaneseq
    %v1571 = vshrl.u32 %v1570, 7
    %v1572 = vsub.s32 0, %v1571
    %v1573 = vrot.slane %v1094, %v1572
    %v1574 = vlaneseq
    %v1575 = vshrl.u32 %v1574, 7
    %v1576 = vsub.s32 1, %v1575
    %v1577 = vrot.slane %v1094, %v1576
    %v1578 = vlaneseq
    %v1579 = vshrl.u32 %v1578, 7
    %v1580 = vsub.s32 2, %v1579
    %v1581 = vrot.slane %v1094, %v1580
    %v1582 = vlaneseq
    %v1583 = vshrl.u32 %v1582, 7
    %v1584 = vsub.s32 3, %v1583
    %v1585 = vrot.slane %v1094, %v1584
    %v1586 = vlaneseq
    %v1587 = vshrl.u32 %v1586, 7
    %v1588 = vsub.s32 4, %v1587
    %v1589 = vrot.slane %v1094, %v1588
    %v1590 = vlaneseq
    %v1591 = vshrl.u32 %v1590, 7
    %v1592 = vsub.s32 5, %v1591
    %v1593 = vrot.slane %v1094, %v1592
    %v1594 = vlaneseq
    %v1595 = vshrl.u32 %v1594, 7
    %v1596 = vsub.s32 6, %v1595
    %v1597 = vrot.slane %v1094, %v1596
    %v1598 = vlaneseq
    %v1599 = vshrl.u32 %v1598, 7
    %v1600 = vsub.s32 7, %v1599
    %v1601 = vrot.slane %v1094, %v1600
    %v1610 = vadd.f32 %v1314, %v1573
    %v1611 = vadd.f32 %v1316, %v1573
    %v1612 = vadd.f32 %v1318, %v1573
    %v1613 = vadd.f32 %v1320, %v1573
    %v1614 = vadd.f32 %v1322, %v1573
    %v1615 = vadd.f32 %v1324, %v1573
    %v1616 = vadd.f32 %v1326, %v1573
    %v1617 = vadd.f32 %v1328, %v1573
    %v1618 = vadd.f32 %v1330, %v1573
    %v1619 = vadd.f32 %v1332, %v1573
    %v1620 = vadd.f32 %v1334, %v1573
    %v1621 = vadd.f32 %v1336, %v1573
    %v1622 = vadd.f32 %v1338, %v1573
    %v1623 = vadd.f32 %v1340, %v1573
    %v1624 = vadd.f32 %v1342, %v1573
    %v1625 = vadd.f32 %v1344, %v1573
    %v1626 = vadd.f32 %v1346, %v1577
    %v1627 = vadd.f32 %v1348, %v1577
    %v1628 = vadd.f32 %v1350, %v1577
    %v1629 = vadd.f32 %v1352, %v1577
    %v1630 = vadd.f32 %v1354, %v1577
    %v1631 = vadd.f32 %v1356, %v1577
    %v1632 = vadd.f32 %v1358, %v1577
    %v1633 = vadd.f32 %v1360, %v1577
    %v1634 = vadd.f32 %v1362, %v1577
    %v1635 = vadd.f32 %v1364, %v1577
    %v1636 = vadd.f32 %v1366, %v1577
    %v1637 = vadd.f32 %v1368, %v1577
    %v1638 = vadd.f32 %v1370, %v1577
    %v1639 = vadd.f32 %v1372, %v1577
    %v1640 = vadd.f32 %v1374, %v1577
    %v1641 = vadd.f32 %v1376, %v1577
    %v1642 = vadd.f32 %v1378, %v1581
    %v1643 = vadd.f32 %v1380, %v1581
    %v1644 = vadd.f32 %v1382, %v1581
    %v1645 = vadd.f32 %v1384, %v1581
    %v1646 = vadd.f32 %v1386, %v1581
    %v1647 = vadd.f32 %v1388, %v1581
    %v1648 = vadd.f32 %v1390, %v1581
    %v1649 = vadd.f32 %v1392, %v1581
    %v1650 = vadd.f32 %v1394, %v1581
    %v1651 = vadd.f32 %v1396, %v1581
    %v1652 = vadd.f32 %v1398, %v1581
    %v1653 = vadd.f32 %v1400, %v1581
    %v1654 = vadd.f32 %v1402, %v1581
    %v1655 = vadd.f32 %v1404, %v1581
    %v1656 = vadd.f32 %v1406, %v1581
    %v1657 = vadd.f32 %v1408, %v1581
    %v1658 = vadd.f32 %v1410, %v1585
    %v1659 = vadd.f32 %v1412, %v1585
    %v1660 = vadd.f32 %v1414, %v1585
    %v1661 = vadd.f32 %v1416, %v1585
    %v1662 = vadd.f32 %v1418, %v1585
    %v1663 = vadd.f32 %v1420, %v1585
    %v1664 = vadd.f32 %v1422, %v1585
    %v1665 = vadd.f32 %v1424, %v1585
    %v1666 = vadd.f32 %v1426, %v1585
    %v1667 = vadd.f32 %v1428, %v1585
    %v1668 = vadd.f32 %v1430, %v1585
    %v1669 = vadd.f32 %v1432, %v1585
    %v1670 = vadd.f32 %v1434, %v1585
    %v1671 = vadd.f32 %v1436, %v1585
    %v1672 = vadd.f32 %v1438, %v1585
    %v1673 = vadd.f32 %v1440, %v1585
    %v1674 = vadd.f32 %v1442, %v1589
    %v1675 = vadd.f32 %v1444, %v1589
    %v1676 = vadd.f32 %v1446, %v1589
    %v1677 = vadd.f32 %v1448, %v1589
    %v1678 = vadd.f32 %v1450, %v1589
    %v1679 = vadd.f32 %v1452, %v1589
    %v1680 = vadd.f32 %v1454, %v1589
    %v1681 = vadd.f32 %v1456, %v1589
    %v1682 = vadd.f32 %v1458, %v1589
    %v1683 = vadd.f32 %v1460, %v1589
    %v1684 = vadd.f32 %v1462, %v1589
    %v1685 = vadd.f32 %v1464, %v1589
    %v1686 = vadd.f32 %v1466, %v1589
    %v1687 = vadd.f32 %v1468, %v1589
    %v1688 = vadd.f32 %v1470, %v1589
    %v1689 = vadd.f32 %v1472, %v1589
    %v1690 = vadd.f32 %v1474, %v1593
    %v1691 = vadd.f32 %v1476, %v1593
    %v1692 = vadd.f32 %v1478, %v1593
    %v1693 = vadd.f32 %v1480, %v1593
    %v1694 = vadd.f32 %v1482, %v1593
    %v1695 = vadd.f32 %v1484, %v1593
    %v1696 = vadd.f32 %v1486, %v1593
    %v1697 = vadd.f32 %v1488, %v1593
    %v1698 = vadd.f32 %v1490, %v1593
    %v1699 = vadd.f32 %v1492, %v1593
    %v1700 = vadd.f32 %v1494, %v1593
    %v1701 = vadd.f32 %v1496, %v1593
    %v1702 = vadd.f32 %v1498, %v1593
    %v1703 = vadd.f32 %v1500, %v1593
    %v1704 = vadd.f32 %v1502, %v1593
    %v1705 = vadd.f32 %v1504, %v1593
    %v1706 = vadd.f32 %v1506, %v1597
    %v1707 = vadd.f32 %v1508, %v1597
    %v1708 = vadd.f32 %v1510, %v1597
    %v1709 = vadd.f32 %v1512, %v1597
    %v1710 = vadd.f32 %v1514, %v1597
    %v1711 = vadd.f32 %v1516, %v1597
    %v1712 = vadd.f32 %v1518, %v1597
    %v1713 = vadd.f32 %v1520, %v1597
    %v1714 = vadd.f32 %v1522, %v1597
    %v1715 = vadd.f32 %v1524, %v1597
    %v1716 = vadd.f32 %v1526, %v1597
    %v1717 = vadd.f32 %v1528, %v1597
    %v1718 = vadd.f32 %v1530, %v1597
    %v1719 = vadd.f32 %v1532, %v1597
    %v1720 = vadd.f32 %v1534, %v1597
    %v1721 = vadd.f32 %v1536, %v1597
    %v1722 = vadd.f32 %v1538, %v1601
    %v1723 = vadd.f32 %v1540, %v1601
    %v1724 = vadd.f32 %v1542, %v1601
    %v1725 = vadd.f32 %v1544, %v1601
    %v1726 = vadd.f32 %v1546, %v1601
    %v1727 = vadd.f32 %v1548, %v1601
    %v1728 = vadd.f32 %v1550, %v1601
    %v1729 = vadd.f32 %v1552, %v1601
    %v1730 = vadd.f32 %v1554, %v1601
    %v1731 = vadd.f32 %v1556, %v1601
    %v1732 = vadd.f32 %v1558, %v1601
    %v1733 = vadd.f32 %v1560, %v1601
    %v1734 = vadd.f32 %v1562, %v1601
    %v1735 = vadd.f32 %v1564, %v1601
    %v1736 = vadd.f32 %v1566, %v1601
    %v1737 = vadd.f32 %v1568, %v1601
    %v1738 = vlaneseq
    %v1739 = vand.u32 %v1738, 127
    %vm1740 = vcmp.lt.s32.totalorder %v1739, 8
    %1869 = vset.pattern.permute.xlu0 0
    %1870 = vperm.xlu0 %1869, %v1610
    %v1871 = vpop.permute.xlu0 %1870
    %1872 = vset.pattern.permute.xlu0 0
    %1873 = vperm.xlu0 %1872, %v1611
    %v1874 = vpop.permute.xlu0 %1873
    %1875 = vset.pattern.permute.xlu0 0
    %1876 = vperm.xlu0 %1875, %v1612
    %v1877 = vpop.permute.xlu0 %1876
    %1878 = vset.pattern.permute.xlu0 0
    %1879 = vperm.xlu0 %1878, %v1613
    %v1880 = vpop.permute.xlu0 %1879
    %1881 = vset.pattern.permute.xlu0 0
    %1882 = vperm.xlu0 %1881, %v1614
    %v1883 = vpop.permute.xlu0 %1882
    %1884 = vset.pattern.permute.xlu0 0
    %1885 = vperm.xlu0 %1884, %v1615
    %v1886 = vpop.permute.xlu0 %1885
    %1887 = vset.pattern.permute.xlu0 0
    %1888 = vperm.xlu0 %1887, %v1616
    %v1889 = vpop.permute.xlu0 %1888
    %1890 = vset.pattern.permute.xlu0 0
    %1891 = vperm.xlu0 %1890, %v1617
    %v1892 = vpop.permute.xlu0 %1891
    %1893 = vset.pattern.permute.xlu0 0
    %1894 = vperm.xlu0 %1893, %v1618
    %v1895 = vpop.permute.xlu0 %1894
    %1896 = vset.pattern.permute.xlu0 0
    %1897 = vperm.xlu0 %1896, %v1619
    %v1898 = vpop.permute.xlu0 %1897
    %1899 = vset.pattern.permute.xlu0 0
    %1900 = vperm.xlu0 %1899, %v1620
    %v1901 = vpop.permute.xlu0 %1900
    %1902 = vset.pattern.permute.xlu0 0
    %1903 = vperm.xlu0 %1902, %v1621
    %v1904 = vpop.permute.xlu0 %1903
    %1905 = vset.pattern.permute.xlu0 0
    %1906 = vperm.xlu0 %1905, %v1622
    %v1907 = vpop.permute.xlu0 %1906
    %1908 = vset.pattern.permute.xlu0 0
    %1909 = vperm.xlu0 %1908, %v1623
    %v1910 = vpop.permute.xlu0 %1909
    %1911 = vset.pattern.permute.xlu0 0
    %1912 = vperm.xlu0 %1911, %v1624
    %v1913 = vpop.permute.xlu0 %1912
    %1914 = vset.pattern.permute.xlu0 0
    %1915 = vperm.xlu0 %1914, %v1625
    %v1916 = vpop.permute.xlu0 %1915
    %1917 = vset.pattern.permute.xlu0 0
    %1918 = vperm.xlu0 %1917, %v1626
    %v1919 = vpop.permute.xlu0 %1918
    %1920 = vset.pattern.permute.xlu0 0
    %1921 = vperm.xlu0 %1920, %v1627
    %v1922 = vpop.permute.xlu0 %1921
    %1923 = vset.pattern.permute.xlu0 0
    %1924 = vperm.xlu0 %1923, %v1628
    %v1925 = vpop.permute.xlu0 %1924
    %1926 = vset.pattern.permute.xlu0 0
    %1927 = vperm.xlu0 %1926, %v1629
    %v1928 = vpop.permute.xlu0 %1927
    %1929 = vset.pattern.permute.xlu0 0
    %1930 = vperm.xlu0 %1929, %v1630
    %v1931 = vpop.permute.xlu0 %1930
    %1932 = vset.pattern.permute.xlu0 0
    %1933 = vperm.xlu0 %1932, %v1631
    %v1934 = vpop.permute.xlu0 %1933
    %1935 = vset.pattern.permute.xlu0 0
    %1936 = vperm.xlu0 %1935, %v1632
    %v1937 = vpop.permute.xlu0 %1936
    %1938 = vset.pattern.permute.xlu0 0
    %1939 = vperm.xlu0 %1938, %v1633
    %v1940 = vpop.permute.xlu0 %1939
    %1941 = vset.pattern.permute.xlu0 0
    %1942 = vperm.xlu0 %1941, %v1634
    %v1943 = vpop.permute.xlu0 %1942
    %1944 = vset.pattern.permute.xlu0 0
    %1945 = vperm.xlu0 %1944, %v1635
    %v1946 = vpop.permute.xlu0 %1945
    %1947 = vset.pattern.permute.xlu0 0
    %1948 = vperm.xlu0 %1947, %v1636
    %v1949 = vpop.permute.xlu0 %1948
    %1950 = vset.pattern.permute.xlu0 0
    %1951 = vperm.xlu0 %1950, %v1637
    %v1952 = vpop.permute.xlu0 %1951
    %1953 = vset.pattern.permute.xlu0 0
    %1954 = vperm.xlu0 %1953, %v1638
    %v1955 = vpop.permute.xlu0 %1954
    %1956 = vset.pattern.permute.xlu0 0
    %1957 = vperm.xlu0 %1956, %v1639
    %v1958 = vpop.permute.xlu0 %1957
    %1959 = vset.pattern.permute.xlu0 0
    %1960 = vperm.xlu0 %1959, %v1640
    %v1961 = vpop.permute.xlu0 %1960
    %1962 = vset.pattern.permute.xlu0 0
    %1963 = vperm.xlu0 %1962, %v1641
    %v1964 = vpop.permute.xlu0 %1963
    %1965 = vset.pattern.permute.xlu0 0
    %1966 = vperm.xlu0 %1965, %v1642
    %v1967 = vpop.permute.xlu0 %1966
    %1968 = vset.pattern.permute.xlu0 0
    %1969 = vperm.xlu0 %1968, %v1643
    %v1970 = vpop.permute.xlu0 %1969
    %1971 = vset.pattern.permute.xlu0 0
    %1972 = vperm.xlu0 %1971, %v1644
    %v1973 = vpop.permute.xlu0 %1972
    %1974 = vset.pattern.permute.xlu0 0
    %1975 = vperm.xlu0 %1974, %v1645
    %v1976 = vpop.permute.xlu0 %1975
    %1977 = vset.pattern.permute.xlu0 0
    %1978 = vperm.xlu0 %1977, %v1646
    %v1979 = vpop.permute.xlu0 %1978
    %1980 = vset.pattern.permute.xlu0 0
    %1981 = vperm.xlu0 %1980, %v1647
    %v1982 = vpop.permute.xlu0 %1981
    %1983 = vset.pattern.permute.xlu0 0
    %1984 = vperm.xlu0 %1983, %v1648
    %v1985 = vpop.permute.xlu0 %1984
    %1986 = vset.pattern.permute.xlu0 0
    %1987 = vperm.xlu0 %1986, %v1649
    %v1988 = vpop.permute.xlu0 %1987
    %1989 = vset.pattern.permute.xlu0 0
    %1990 = vperm.xlu0 %1989, %v1650
    %v1991 = vpop.permute.xlu0 %1990
    %1992 = vset.pattern.permute.xlu0 0
    %1993 = vperm.xlu0 %1992, %v1651
    %v1994 = vpop.permute.xlu0 %1993
    %1995 = vset.pattern.permute.xlu0 0
    %1996 = vperm.xlu0 %1995, %v1652
    %v1997 = vpop.permute.xlu0 %1996
    %1998 = vset.pattern.permute.xlu0 0
    %1999 = vperm.xlu0 %1998, %v1653
    %v2000 = vpop.permute.xlu0 %1999
    %2001 = vset.pattern.permute.xlu0 0
    %2002 = vperm.xlu0 %2001, %v1654
    %v2003 = vpop.permute.xlu0 %2002
    %2004 = vset.pattern.permute.xlu0 0
    %2005 = vperm.xlu0 %2004, %v1655
    %v2006 = vpop.permute.xlu0 %2005
    %2007 = vset.pattern.permute.xlu0 0
    %2008 = vperm.xlu0 %2007, %v1656
    %v2009 = vpop.permute.xlu0 %2008
    %2010 = vset.pattern.permute.xlu0 0
    %2011 = vperm.xlu0 %2010, %v1657
    %v2012 = vpop.permute.xlu0 %2011
    %2013 = vset.pattern.permute.xlu0 0
    %2014 = vperm.xlu0 %2013, %v1658
    %v2015 = vpop.permute.xlu0 %2014
    %2016 = vset.pattern.permute.xlu0 0
    %2017 = vperm.xlu0 %2016, %v1659
    %v2018 = vpop.permute.xlu0 %2017
    %2019 = vset.pattern.permute.xlu0 0
    %2020 = vperm.xlu0 %2019, %v1660
    %v2021 = vpop.permute.xlu0 %2020
    %2022 = vset.pattern.permute.xlu0 0
    %2023 = vperm.xlu0 %2022, %v1661
    %v2024 = vpop.permute.xlu0 %2023
    %2025 = vset.pattern.permute.xlu0 0
    %2026 = vperm.xlu0 %2025, %v1662
    %v2027 = vpop.permute.xlu0 %2026
    %2028 = vset.pattern.permute.xlu0 0
    %2029 = vperm.xlu0 %2028, %v1663
    %v2030 = vpop.permute.xlu0 %2029
    %2031 = vset.pattern.permute.xlu0 0
    %2032 = vperm.xlu0 %2031, %v1664
    %v2033 = vpop.permute.xlu0 %2032
    %2034 = vset.pattern.permute.xlu0 0
    %2035 = vperm.xlu0 %2034, %v1665
    %v2036 = vpop.permute.xlu0 %2035
    %2037 = vset.pattern.permute.xlu0 0
    %2038 = vperm.xlu0 %2037, %v1666
    %v2039 = vpop.permute.xlu0 %2038
    %2040 = vset.pattern.permute.xlu0 0
    %2041 = vperm.xlu0 %2040, %v1667
    %v2042 = vpop.permute.xlu0 %2041
    %2043 = vset.pattern.permute.xlu0 0
    %2044 = vperm.xlu0 %2043, %v1668
    %v2045 = vpop.permute.xlu0 %2044
    %2046 = vset.pattern.permute.xlu0 0
    %2047 = vperm.xlu0 %2046, %v1669
    %v2048 = vpop.permute.xlu0 %2047
    %2049 = vset.pattern.permute.xlu0 0
    %2050 = vperm.xlu0 %2049, %v1670
    %v2051 = vpop.permute.xlu0 %2050
    %2052 = vset.pattern.permute.xlu0 0
    %2053 = vperm.xlu0 %2052, %v1671
    %v2054 = vpop.permute.xlu0 %2053
    %2055 = vset.pattern.permute.xlu0 0
    %2056 = vperm.xlu0 %2055, %v1672
    %v2057 = vpop.permute.xlu0 %2056
    %2058 = vset.pattern.permute.xlu0 0
    %2059 = vperm.xlu0 %2058, %v1673
    %v2060 = vpop.permute.xlu0 %2059
    %2061 = vset.pattern.permute.xlu0 0
    %2062 = vperm.xlu0 %2061, %v1674
    %v2063 = vpop.permute.xlu0 %2062
    %2064 = vset.pattern.permute.xlu0 0
    %2065 = vperm.xlu0 %2064, %v1675
    %v2066 = vpop.permute.xlu0 %2065
    %2067 = vset.pattern.permute.xlu0 0
    %2068 = vperm.xlu0 %2067, %v1676
    %v2069 = vpop.permute.xlu0 %2068
    %2070 = vset.pattern.permute.xlu0 0
    %2071 = vperm.xlu0 %2070, %v1677
    %v2072 = vpop.permute.xlu0 %2071
    %2073 = vset.pattern.permute.xlu0 0
    %2074 = vperm.xlu0 %2073, %v1678
    %v2075 = vpop.permute.xlu0 %2074
    %2076 = vset.pattern.permute.xlu0 0
    %2077 = vperm.xlu0 %2076, %v1679
    %v2078 = vpop.permute.xlu0 %2077
    %2079 = vset.pattern.permute.xlu0 0
    %2080 = vperm.xlu0 %2079, %v1680
    %v2081 = vpop.permute.xlu0 %2080
    %2082 = vset.pattern.permute.xlu0 0
    %2083 = vperm.xlu0 %2082, %v1681
    %v2084 = vpop.permute.xlu0 %2083
    %2085 = vset.pattern.permute.xlu0 0
    %2086 = vperm.xlu0 %2085, %v1682
    %v2087 = vpop.permute.xlu0 %2086
    %2088 = vset.pattern.permute.xlu0 0
    %2089 = vperm.xlu0 %2088, %v1683
    %v2090 = vpop.permute.xlu0 %2089
    %2091 = vset.pattern.permute.xlu0 0
    %2092 = vperm.xlu0 %2091, %v1684
    %v2093 = vpop.permute.xlu0 %2092
    %2094 = vset.pattern.permute.xlu0 0
    %2095 = vperm.xlu0 %2094, %v1685
    %v2096 = vpop.permute.xlu0 %2095
    %2097 = vset.pattern.permute.xlu0 0
    %2098 = vperm.xlu0 %2097, %v1686
    %v2099 = vpop.permute.xlu0 %2098
    %2100 = vset.pattern.permute.xlu0 0
    %2101 = vperm.xlu0 %2100, %v1687
    %v2102 = vpop.permute.xlu0 %2101
    %2103 = vset.pattern.permute.xlu0 0
    %2104 = vperm.xlu0 %2103, %v1688
    %v2105 = vpop.permute.xlu0 %2104
    %2106 = vset.pattern.permute.xlu0 0
    %2107 = vperm.xlu0 %2106, %v1689
    %v2108 = vpop.permute.xlu0 %2107
    %2109 = vset.pattern.permute.xlu0 0
    %2110 = vperm.xlu0 %2109, %v1690
    %v2111 = vpop.permute.xlu0 %2110
    %2112 = vset.pattern.permute.xlu0 0
    %2113 = vperm.xlu0 %2112, %v1691
    %v2114 = vpop.permute.xlu0 %2113
    %2115 = vset.pattern.permute.xlu0 0
    %2116 = vperm.xlu0 %2115, %v1692
    %v2117 = vpop.permute.xlu0 %2116
    %2118 = vset.pattern.permute.xlu0 0
    %2119 = vperm.xlu0 %2118, %v1693
    %v2120 = vpop.permute.xlu0 %2119
    %2121 = vset.pattern.permute.xlu0 0
    %2122 = vperm.xlu0 %2121, %v1694
    %v2123 = vpop.permute.xlu0 %2122
    %2124 = vset.pattern.permute.xlu0 0
    %2125 = vperm.xlu0 %2124, %v1695
    %v2126 = vpop.permute.xlu0 %2125
    %2127 = vset.pattern.permute.xlu0 0
    %2128 = vperm.xlu0 %2127, %v1696
    %v2129 = vpop.permute.xlu0 %2128
    %2130 = vset.pattern.permute.xlu0 0
    %2131 = vperm.xlu0 %2130, %v1697
    %v2132 = vpop.permute.xlu0 %2131
    %2133 = vset.pattern.permute.xlu0 0
    %2134 = vperm.xlu0 %2133, %v1698
    %v2135 = vpop.permute.xlu0 %2134
    %2136 = vset.pattern.permute.xlu0 0
    %2137 = vperm.xlu0 %2136, %v1699
    %v2138 = vpop.permute.xlu0 %2137
    %2139 = vset.pattern.permute.xlu0 0
    %2140 = vperm.xlu0 %2139, %v1700
    %v2141 = vpop.permute.xlu0 %2140
    %2142 = vset.pattern.permute.xlu0 0
    %2143 = vperm.xlu0 %2142, %v1701
    %v2144 = vpop.permute.xlu0 %2143
    %2145 = vset.pattern.permute.xlu0 0
    %2146 = vperm.xlu0 %2145, %v1702
    %v2147 = vpop.permute.xlu0 %2146
    %2148 = vset.pattern.permute.xlu0 0
    %2149 = vperm.xlu0 %2148, %v1703
    %v2150 = vpop.permute.xlu0 %2149
    %2151 = vset.pattern.permute.xlu0 0
    %2152 = vperm.xlu0 %2151, %v1704
    %v2153 = vpop.permute.xlu0 %2152
    %2154 = vset.pattern.permute.xlu0 0
    %2155 = vperm.xlu0 %2154, %v1705
    %v2156 = vpop.permute.xlu0 %2155
    %2157 = vset.pattern.permute.xlu0 0
    %2158 = vperm.xlu0 %2157, %v1706
    %v2159 = vpop.permute.xlu0 %2158
    %2160 = vset.pattern.permute.xlu0 0
    %2161 = vperm.xlu0 %2160, %v1707
    %v2162 = vpop.permute.xlu0 %2161
    %2163 = vset.pattern.permute.xlu0 0
    %2164 = vperm.xlu0 %2163, %v1708
    %v2165 = vpop.permute.xlu0 %2164
    %2166 = vset.pattern.permute.xlu0 0
    %2167 = vperm.xlu0 %2166, %v1709
    %v2168 = vpop.permute.xlu0 %2167
    %2169 = vset.pattern.permute.xlu0 0
    %2170 = vperm.xlu0 %2169, %v1710
    %v2171 = vpop.permute.xlu0 %2170
    %2172 = vset.pattern.permute.xlu0 0
    %2173 = vperm.xlu0 %2172, %v1711
    %v2174 = vpop.permute.xlu0 %2173
    %2175 = vset.pattern.permute.xlu0 0
    %2176 = vperm.xlu0 %2175, %v1712
    %v2177 = vpop.permute.xlu0 %2176
    %2178 = vset.pattern.permute.xlu0 0
    %2179 = vperm.xlu0 %2178, %v1713
    %v2180 = vpop.permute.xlu0 %2179
    %2181 = vset.pattern.permute.xlu0 0
    %2182 = vperm.xlu0 %2181, %v1714
    %v2183 = vpop.permute.xlu0 %2182
    %2184 = vset.pattern.permute.xlu0 0
    %2185 = vperm.xlu0 %2184, %v1715
    %v2186 = vpop.permute.xlu0 %2185
    %2187 = vset.pattern.permute.xlu0 0
    %2188 = vperm.xlu0 %2187, %v1716
    %v2189 = vpop.permute.xlu0 %2188
    %2190 = vset.pattern.permute.xlu0 0
    %2191 = vperm.xlu0 %2190, %v1717
    %v2192 = vpop.permute.xlu0 %2191
    %2193 = vset.pattern.permute.xlu0 0
    %2194 = vperm.xlu0 %2193, %v1718
    %v2195 = vpop.permute.xlu0 %2194
    %2196 = vset.pattern.permute.xlu0 0
    %2197 = vperm.xlu0 %2196, %v1719
    %v2198 = vpop.permute.xlu0 %2197
    %2199 = vset.pattern.permute.xlu0 0
    %2200 = vperm.xlu0 %2199, %v1720
    %v2201 = vpop.permute.xlu0 %2200
    %2202 = vset.pattern.permute.xlu0 0
    %2203 = vperm.xlu0 %2202, %v1721
    %v2204 = vpop.permute.xlu0 %2203
    %2205 = vset.pattern.permute.xlu0 0
    %2206 = vperm.xlu0 %2205, %v1722
    %v2207 = vpop.permute.xlu0 %2206
    %2208 = vset.pattern.permute.xlu0 0
    %2209 = vperm.xlu0 %2208, %v1723
    %v2210 = vpop.permute.xlu0 %2209
    %2211 = vset.pattern.permute.xlu0 0
    %2212 = vperm.xlu0 %2211, %v1724
    %v2213 = vpop.permute.xlu0 %2212
    %2214 = vset.pattern.permute.xlu0 0
    %2215 = vperm.xlu0 %2214, %v1725
    %v2216 = vpop.permute.xlu0 %2215
    %2217 = vset.pattern.permute.xlu0 0
    %2218 = vperm.xlu0 %2217, %v1726
    %v2219 = vpop.permute.xlu0 %2218
    %2220 = vset.pattern.permute.xlu0 0
    %2221 = vperm.xlu0 %2220, %v1727
    %v2222 = vpop.permute.xlu0 %2221
    %2223 = vset.pattern.permute.xlu0 0
    %2224 = vperm.xlu0 %2223, %v1728
    %v2225 = vpop.permute.xlu0 %2224
    %2226 = vset.pattern.permute.xlu0 0
    %2227 = vperm.xlu0 %2226, %v1729
    %v2228 = vpop.permute.xlu0 %2227
    %2229 = vset.pattern.permute.xlu0 0
    %2230 = vperm.xlu0 %2229, %v1730
    %v2231 = vpop.permute.xlu0 %2230
    %2232 = vset.pattern.permute.xlu0 0
    %2233 = vperm.xlu0 %2232, %v1731
    %v2234 = vpop.permute.xlu0 %2233
    %2235 = vset.pattern.permute.xlu0 0
    %2236 = vperm.xlu0 %2235, %v1732
    %v2237 = vpop.permute.xlu0 %2236
    %2238 = vset.pattern.permute.xlu0 0
    %2239 = vperm.xlu0 %2238, %v1733
    %v2240 = vpop.permute.xlu0 %2239
    %2241 = vset.pattern.permute.xlu0 0
    %2242 = vperm.xlu0 %2241, %v1734
    %v2243 = vpop.permute.xlu0 %2242
    %2244 = vset.pattern.permute.xlu0 0
    %2245 = vperm.xlu0 %2244, %v1735
    %v2246 = vpop.permute.xlu0 %2245
    %2247 = vset.pattern.permute.xlu0 0
    %2248 = vperm.xlu0 %2247, %v1736
    %v2249 = vpop.permute.xlu0 %2248
    %2250 = vset.pattern.permute.xlu0 0
    %2251 = vperm.xlu0 %2250, %v1737
    %v2252 = vpop.permute.xlu0 %2251
    %v2253 = vlaneseq
    %v2254 = vshrl.u32 %v2253, 7
    %v2255 = vsub.s32 %v1739, %v2254
    %v2256 = vrot.slane %v1871, %v2255
    %v2257 = vadd.s32 %v1739, 4294967288
    %v2258 = vlaneseq
    %v2259 = vshrl.u32 %v2258, 7
    %v2260 = vsub.s32 %v2257, %v2259
    %v2261 = vrot.slane %v1874, %v2260
    %vm2262 = vcmask 130112
    %v2263 = vsel %vm2262, %v2261, %v2256
    %v2264 = vadd.s32 %v1739, 4294967280
    %v2265 = vlaneseq
    %v2266 = vshrl.u32 %v2265, 7
    %v2267 = vsub.s32 %v2264, %v2266
    %v2268 = vrot.slane %v1877, %v2267
    %vm2269 = vcmask 195712
    %v2270 = vsel %vm2269, %v2268, %v2263
    %v2271 = vadd.s32 %v1739, 4294967272
    %v2272 = vlaneseq
    %v2273 = vshrl.u32 %v2272, 7
    %v2274 = vsub.s32 %v2271, %v2273
    %v2275 = vrot.slane %v1880, %v2274
    %vm2276 = vcmask 261312
    %v2277 = vsel %vm2276, %v2275, %v2270
    %v2278 = vadd.s32 %v1739, 4294967264
    %v2279 = vlaneseq
    %v2280 = vshrl.u32 %v2279, 7
    %v2281 = vsub.s32 %v2278, %v2280
    %v2282 = vrot.slane %v1883, %v2281
    %vm2283 = vcmask 326912
    %v2284 = vsel %vm2283, %v2282, %v2277
    %v2285 = vadd.s32 %v1739, 4294967256
    %v2286 = vlaneseq
    %v2287 = vshrl.u32 %v2286, 7
    %v2288 = vsub.s32 %v2285, %v2287
    %v2289 = vrot.slane %v1886, %v2288
    %vm2290 = vcmask 392512
    %v2291 = vsel %vm2290, %v2289, %v2284
    %v2292 = vadd.s32 %v1739, 4294967248
    %v2293 = vlaneseq
    %v2294 = vshrl.u32 %v2293, 7
    %v2295 = vsub.s32 %v2292, %v2294
    %v2296 = vrot.slane %v1889, %v2295
    %vm2297 = vcmask 458112
    %v2298 = vsel %vm2297, %v2296, %v2291
    %v2299 = vadd.s32 %v1739, 4294967240
    %v2300 = vlaneseq
    %v2301 = vshrl.u32 %v2300, 7
    %v2302 = vsub.s32 %v2299, %v2301
    %v2303 = vrot.slane %v1892, %v2302
    %vm2304 = vcmask 523712
    %v2305 = vsel %vm2304, %v2303, %v2298
    %v2306 = vadd.s32 %v1739, 4294967232
    %v2307 = vlaneseq
    %v2308 = vshrl.u32 %v2307, 7
    %v2309 = vsub.s32 %v2306, %v2308
    %v2310 = vrot.slane %v1895, %v2309
    %vm2311 = vcmask 589312
    %v2312 = vsel %vm2311, %v2310, %v2305
    %v2313 = vadd.s32 %v1739, 4294967224
    %v2314 = vlaneseq
    %v2315 = vshrl.u32 %v2314, 7
    %v2316 = vsub.s32 %v2313, %v2315
    %v2317 = vrot.slane %v1898, %v2316
    %vm2318 = vcmask 654912
    %v2319 = vsel %vm2318, %v2317, %v2312
    %v2320 = vadd.s32 %v1739, 4294967216
    %v2321 = vlaneseq
    %v2322 = vshrl.u32 %v2321, 7
    %v2323 = vsub.s32 %v2320, %v2322
    %v2324 = vrot.slane %v1901, %v2323
    %vm2325 = vcmask 720512
    %v2326 = vsel %vm2325, %v2324, %v2319
    %v2327 = vadd.s32 %v1739, 4294967208
    %v2328 = vlaneseq
    %v2329 = vshrl.u32 %v2328, 7
    %v2330 = vsub.s32 %v2327, %v2329
    %v2331 = vrot.slane %v1904, %v2330
    %vm2332 = vcmask 786112
    %v2333 = vsel %vm2332, %v2331, %v2326
    %v2334 = vadd.s32 %v1739, 4294967200
    %v2335 = vlaneseq
    %v2336 = vshrl.u32 %v2335, 7
    %v2337 = vsub.s32 %v2334, %v2336
    %v2338 = vrot.slane %v1907, %v2337
    %vm2339 = vcmask 851712
    %v2340 = vsel %vm2339, %v2338, %v2333
    %v2341 = vadd.s32 %v1739, 4294967192
    %v2342 = vlaneseq
    %v2343 = vshrl.u32 %v2342, 7
    %v2344 = vsub.s32 %v2341, %v2343
    %v2345 = vrot.slane %v1910, %v2344
    %vm2346 = vcmask 917312
    %v2347 = vsel %vm2346, %v2345, %v2340
    %v2348 = vadd.s32 %v1739, 4294967184
    %v2349 = vlaneseq
    %v2350 = vshrl.u32 %v2349, 7
    %v2351 = vsub.s32 %v2348, %v2350
    %v2352 = vrot.slane %v1913, %v2351
    %vm2353 = vcmask 982912
    %v2354 = vsel %vm2353, %v2352, %v2347
    %v2355 = vadd.s32 %v1739, 4294967176
    %v2356 = vlaneseq
    %v2357 = vshrl.u32 %v2356, 7
    %v2358 = vsub.s32 %v2355, %v2357
    %v2359 = vrot.slane %v1916, %v2358
    %vm2360 = vcmask 1048512
    %v2361 = vsel %vm2360, %v2359, %v2354
    %v2362 = vlaneseq
    %v2363 = vshrl.u32 %v2362, 7
    %v2364 = vsub.s32 %v1739, %v2363
    %v2365 = vrot.slane %v1919, %v2364
    %v2366 = vlaneseq
    %v2367 = vshrl.u32 %v2366, 7
    %v2368 = vsub.s32 %v2257, %v2367
    %v2369 = vrot.slane %v1922, %v2368
    %v2370 = vsel %vm2262, %v2369, %v2365
    %v2371 = vlaneseq
    %v2372 = vshrl.u32 %v2371, 7
    %v2373 = vsub.s32 %v2264, %v2372
    %v2374 = vrot.slane %v1925, %v2373
    %v2375 = vsel %vm2269, %v2374, %v2370
    %v2376 = vlaneseq
    %v2377 = vshrl.u32 %v2376, 7
    %v2378 = vsub.s32 %v2271, %v2377
    %v2379 = vrot.slane %v1928, %v2378
    %v2380 = vsel %vm2276, %v2379, %v2375
    %v2381 = vlaneseq
    %v2382 = vshrl.u32 %v2381, 7
    %v2383 = vsub.s32 %v2278, %v2382
    %v2384 = vrot.slane %v1931, %v2383
    %v2385 = vsel %vm2283, %v2384, %v2380
    %v2386 = vlaneseq
    %v2387 = vshrl.u32 %v2386, 7
    %v2388 = vsub.s32 %v2285, %v2387
    %v2389 = vrot.slane %v1934, %v2388
    %v2390 = vsel %vm2290, %v2389, %v2385
    %v2391 = vlaneseq
    %v2392 = vshrl.u32 %v2391, 7
    %v2393 = vsub.s32 %v2292, %v2392
    %v2394 = vrot.slane %v1937, %v2393
    %v2395 = vsel %vm2297, %v2394, %v2390
    %v2396 = vlaneseq
    %v2397 = vshrl.u32 %v2396, 7
    %v2398 = vsub.s32 %v2299, %v2397
    %v2399 = vrot.slane %v1940, %v2398
    %v2400 = vsel %vm2304, %v2399, %v2395
    %v2401 = vlaneseq
    %v2402 = vshrl.u32 %v2401, 7
    %v2403 = vsub.s32 %v2306, %v2402
    %v2404 = vrot.slane %v1943, %v2403
    %v2405 = vsel %vm2311, %v2404, %v2400
    %v2406 = vlaneseq
    %v2407 = vshrl.u32 %v2406, 7
    %v2408 = vsub.s32 %v2313, %v2407
    %v2409 = vrot.slane %v1946, %v2408
    %v2410 = vsel %vm2318, %v2409, %v2405
    %v2411 = vlaneseq
    %v2412 = vshrl.u32 %v2411, 7
    %v2413 = vsub.s32 %v2320, %v2412
    %v2414 = vrot.slane %v1949, %v2413
    %v2415 = vsel %vm2325, %v2414, %v2410
    %v2416 = vlaneseq
    %v2417 = vshrl.u32 %v2416, 7
    %v2418 = vsub.s32 %v2327, %v2417
    %v2419 = vrot.slane %v1952, %v2418
    %v2420 = vsel %vm2332, %v2419, %v2415
    %v2421 = vlaneseq
    %v2422 = vshrl.u32 %v2421, 7
    %v2423 = vsub.s32 %v2334, %v2422
    %v2424 = vrot.slane %v1955, %v2423
    %v2425 = vsel %vm2339, %v2424, %v2420
    %v2426 = vlaneseq
    %v2427 = vshrl.u32 %v2426, 7
    %v2428 = vsub.s32 %v2341, %v2427
    %v2429 = vrot.slane %v1958, %v2428
    %v2430 = vsel %vm2346, %v2429, %v2425
    %v2431 = vlaneseq
    %v2432 = vshrl.u32 %v2431, 7
    %v2433 = vsub.s32 %v2348, %v2432
    %v2434 = vrot.slane %v1961, %v2433
    %v2435 = vsel %vm2353, %v2434, %v2430
    %v2436 = vlaneseq
    %v2437 = vshrl.u32 %v2436, 7
    %v2438 = vsub.s32 %v2355, %v2437
    %v2439 = vrot.slane %v1964, %v2438
    %v2440 = vsel %vm2360, %v2439, %v2435
    %v2441 = vlaneseq
    %v2442 = vshrl.u32 %v2441, 7
    %v2443 = vsub.s32 %v1739, %v2442
    %v2444 = vrot.slane %v1967, %v2443
    %v2445 = vlaneseq
    %v2446 = vshrl.u32 %v2445, 7
    %v2447 = vsub.s32 %v2257, %v2446
    %v2448 = vrot.slane %v1970, %v2447
    %v2449 = vsel %vm2262, %v2448, %v2444
    %v2450 = vlaneseq
    %v2451 = vshrl.u32 %v2450, 7
    %v2452 = vsub.s32 %v2264, %v2451
    %v2453 = vrot.slane %v1973, %v2452
    %v2454 = vsel %vm2269, %v2453, %v2449
    %v2455 = vlaneseq
    %v2456 = vshrl.u32 %v2455, 7
    %v2457 = vsub.s32 %v2271, %v2456
    %v2458 = vrot.slane %v1976, %v2457
    %v2459 = vsel %vm2276, %v2458, %v2454
    %v2460 = vlaneseq
    %v2461 = vshrl.u32 %v2460, 7
    %v2462 = vsub.s32 %v2278, %v2461
    %v2463 = vrot.slane %v1979, %v2462
    %v2464 = vsel %vm2283, %v2463, %v2459
    %v2465 = vlaneseq
    %v2466 = vshrl.u32 %v2465, 7
    %v2467 = vsub.s32 %v2285, %v2466
    %v2468 = vrot.slane %v1982, %v2467
    %v2469 = vsel %vm2290, %v2468, %v2464
    %v2470 = vlaneseq
    %v2471 = vshrl.u32 %v2470, 7
    %v2472 = vsub.s32 %v2292, %v2471
    %v2473 = vrot.slane %v1985, %v2472
    %v2474 = vsel %vm2297, %v2473, %v2469
    %v2475 = vlaneseq
    %v2476 = vshrl.u32 %v2475, 7
    %v2477 = vsub.s32 %v2299, %v2476
    %v2478 = vrot.slane %v1988, %v2477
    %v2479 = vsel %vm2304, %v2478, %v2474
    %v2480 = vlaneseq
    %v2481 = vshrl.u32 %v2480, 7
    %v2482 = vsub.s32 %v2306, %v2481
    %v2483 = vrot.slane %v1991, %v2482
    %v2484 = vsel %vm2311, %v2483, %v2479
    %v2485 = vlaneseq
    %v2486 = vshrl.u32 %v2485, 7
    %v2487 = vsub.s32 %v2313, %v2486
    %v2488 = vrot.slane %v1994, %v2487
    %v2489 = vsel %vm2318, %v2488, %v2484
    %v2490 = vlaneseq
    %v2491 = vshrl.u32 %v2490, 7
    %v2492 = vsub.s32 %v2320, %v2491
    %v2493 = vrot.slane %v1997, %v2492
    %v2494 = vsel %vm2325, %v2493, %v2489
    %v2495 = vlaneseq
    %v2496 = vshrl.u32 %v2495, 7
    %v2497 = vsub.s32 %v2327, %v2496
    %v2498 = vrot.slane %v2000, %v2497
    %v2499 = vsel %vm2332, %v2498, %v2494
    %v2500 = vlaneseq
    %v2501 = vshrl.u32 %v2500, 7
    %v2502 = vsub.s32 %v2334, %v2501
    %v2503 = vrot.slane %v2003, %v2502
    %v2504 = vsel %vm2339, %v2503, %v2499
    %v2505 = vlaneseq
    %v2506 = vshrl.u32 %v2505, 7
    %v2507 = vsub.s32 %v2341, %v2506
    %v2508 = vrot.slane %v2006, %v2507
    %v2509 = vsel %vm2346, %v2508, %v2504
    %v2510 = vlaneseq
    %v2511 = vshrl.u32 %v2510, 7
    %v2512 = vsub.s32 %v2348, %v2511
    %v2513 = vrot.slane %v2009, %v2512
    %v2514 = vsel %vm2353, %v2513, %v2509
    %v2515 = vlaneseq
    %v2516 = vshrl.u32 %v2515, 7
    %v2517 = vsub.s32 %v2355, %v2516
    %v2518 = vrot.slane %v2012, %v2517
    %v2519 = vsel %vm2360, %v2518, %v2514
    %v2520 = vlaneseq
    %v2521 = vshrl.u32 %v2520, 7
    %v2522 = vsub.s32 %v1739, %v2521
    %v2523 = vrot.slane %v2015, %v2522
    %v2524 = vlaneseq
    %v2525 = vshrl.u32 %v2524, 7
    %v2526 = vsub.s32 %v2257, %v2525
    %v2527 = vrot.slane %v2018, %v2526
    %v2528 = vsel %vm2262, %v2527, %v2523
    %v2529 = vlaneseq
    %v2530 = vshrl.u32 %v2529, 7
    %v2531 = vsub.s32 %v2264, %v2530
    %v2532 = vrot.slane %v2021, %v2531
    %v2533 = vsel %vm2269, %v2532, %v2528
    %v2534 = vlaneseq
    %v2535 = vshrl.u32 %v2534, 7
    %v2536 = vsub.s32 %v2271, %v2535
    %v2537 = vrot.slane %v2024, %v2536
    %v2538 = vsel %vm2276, %v2537, %v2533
    %v2539 = vlaneseq
    %v2540 = vshrl.u32 %v2539, 7
    %v2541 = vsub.s32 %v2278, %v2540
    %v2542 = vrot.slane %v2027, %v2541
    %v2543 = vsel %vm2283, %v2542, %v2538
    %v2544 = vlaneseq
    %v2545 = vshrl.u32 %v2544, 7
    %v2546 = vsub.s32 %v2285, %v2545
    %v2547 = vrot.slane %v2030, %v2546
    %v2548 = vsel %vm2290, %v2547, %v2543
    %v2549 = vlaneseq
    %v2550 = vshrl.u32 %v2549, 7
    %v2551 = vsub.s32 %v2292, %v2550
    %v2552 = vrot.slane %v2033, %v2551
    %v2553 = vsel %vm2297, %v2552, %v2548
    %v2554 = vlaneseq
    %v2555 = vshrl.u32 %v2554, 7
    %v2556 = vsub.s32 %v2299, %v2555
    %v2557 = vrot.slane %v2036, %v2556
    %v2558 = vsel %vm2304, %v2557, %v2553
    %v2559 = vlaneseq
    %v2560 = vshrl.u32 %v2559, 7
    %v2561 = vsub.s32 %v2306, %v2560
    %v2562 = vrot.slane %v2039, %v2561
    %v2563 = vsel %vm2311, %v2562, %v2558
    %v2564 = vlaneseq
    %v2565 = vshrl.u32 %v2564, 7
    %v2566 = vsub.s32 %v2313, %v2565
    %v2567 = vrot.slane %v2042, %v2566
    %v2568 = vsel %vm2318, %v2567, %v2563
    %v2569 = vlaneseq
    %v2570 = vshrl.u32 %v2569, 7
    %v2571 = vsub.s32 %v2320, %v2570
    %v2572 = vrot.slane %v2045, %v2571
    %v2573 = vsel %vm2325, %v2572, %v2568
    %v2574 = vlaneseq
    %v2575 = vshrl.u32 %v2574, 7
    %v2576 = vsub.s32 %v2327, %v2575
    %v2577 = vrot.slane %v2048, %v2576
    %v2578 = vsel %vm2332, %v2577, %v2573
    %v2579 = vlaneseq
    %v2580 = vshrl.u32 %v2579, 7
    %v2581 = vsub.s32 %v2334, %v2580
    %v2582 = vrot.slane %v2051, %v2581
    %v2583 = vsel %vm2339, %v2582, %v2578
    %v2584 = vlaneseq
    %v2585 = vshrl.u32 %v2584, 7
    %v2586 = vsub.s32 %v2341, %v2585
    %v2587 = vrot.slane %v2054, %v2586
    %v2588 = vsel %vm2346, %v2587, %v2583
    %v2589 = vlaneseq
    %v2590 = vshrl.u32 %v2589, 7
    %v2591 = vsub.s32 %v2348, %v2590
    %v2592 = vrot.slane %v2057, %v2591
    %v2593 = vsel %vm2353, %v2592, %v2588
    %v2594 = vlaneseq
    %v2595 = vshrl.u32 %v2594, 7
    %v2596 = vsub.s32 %v2355, %v2595
    %v2597 = vrot.slane %v2060, %v2596
    %v2598 = vsel %vm2360, %v2597, %v2593
    %v2599 = vlaneseq
    %v2600 = vshrl.u32 %v2599, 7
    %v2601 = vsub.s32 %v1739, %v2600
    %v2602 = vrot.slane %v2063, %v2601
    %v2603 = vlaneseq
    %v2604 = vshrl.u32 %v2603, 7
    %v2605 = vsub.s32 %v2257, %v2604
    %v2606 = vrot.slane %v2066, %v2605
    %v2607 = vsel %vm2262, %v2606, %v2602
    %v2608 = vlaneseq
    %v2609 = vshrl.u32 %v2608, 7
    %v2610 = vsub.s32 %v2264, %v2609
    %v2611 = vrot.slane %v2069, %v2610
    %v2612 = vsel %vm2269, %v2611, %v2607
    %v2613 = vlaneseq
    %v2614 = vshrl.u32 %v2613, 7
    %v2615 = vsub.s32 %v2271, %v2614
    %v2616 = vrot.slane %v2072, %v2615
    %v2617 = vsel %vm2276, %v2616, %v2612
    %v2618 = vlaneseq
    %v2619 = vshrl.u32 %v2618, 7
    %v2620 = vsub.s32 %v2278, %v2619
    %v2621 = vrot.slane %v2075, %v2620
    %v2622 = vsel %vm2283, %v2621, %v2617
    %v2623 = vlaneseq
    %v2624 = vshrl.u32 %v2623, 7
    %v2625 = vsub.s32 %v2285, %v2624
    %v2626 = vrot.slane %v2078, %v2625
    %v2627 = vsel %vm2290, %v2626, %v2622
    %v2628 = vlaneseq
    %v2629 = vshrl.u32 %v2628, 7
    %v2630 = vsub.s32 %v2292, %v2629
    %v2631 = vrot.slane %v2081, %v2630
    %v2632 = vsel %vm2297, %v2631, %v2627
    %v2633 = vlaneseq
    %v2634 = vshrl.u32 %v2633, 7
    %v2635 = vsub.s32 %v2299, %v2634
    %v2636 = vrot.slane %v2084, %v2635
    %v2637 = vsel %vm2304, %v2636, %v2632
    %v2638 = vlaneseq
    %v2639 = vshrl.u32 %v2638, 7
    %v2640 = vsub.s32 %v2306, %v2639
    %v2641 = vrot.slane %v2087, %v2640
    %v2642 = vsel %vm2311, %v2641, %v2637
    %v2643 = vlaneseq
    %v2644 = vshrl.u32 %v2643, 7
    %v2645 = vsub.s32 %v2313, %v2644
    %v2646 = vrot.slane %v2090, %v2645
    %v2647 = vsel %vm2318, %v2646, %v2642
    %v2648 = vlaneseq
    %v2649 = vshrl.u32 %v2648, 7
    %v2650 = vsub.s32 %v2320, %v2649
    %v2651 = vrot.slane %v2093, %v2650
    %v2652 = vsel %vm2325, %v2651, %v2647
    %v2653 = vlaneseq
    %v2654 = vshrl.u32 %v2653, 7
    %v2655 = vsub.s32 %v2327, %v2654
    %v2656 = vrot.slane %v2096, %v2655
    %v2657 = vsel %vm2332, %v2656, %v2652
    %v2658 = vlaneseq
    %v2659 = vshrl.u32 %v2658, 7
    %v2660 = vsub.s32 %v2334, %v2659
    %v2661 = vrot.slane %v2099, %v2660
    %v2662 = vsel %vm2339, %v2661, %v2657
    %v2663 = vlaneseq
    %v2664 = vshrl.u32 %v2663, 7
    %v2665 = vsub.s32 %v2341, %v2664
    %v2666 = vrot.slane %v2102, %v2665
    %v2667 = vsel %vm2346, %v2666, %v2662
    %v2668 = vlaneseq
    %v2669 = vshrl.u32 %v2668, 7
    %v2670 = vsub.s32 %v2348, %v2669
    %v2671 = vrot.slane %v2105, %v2670
    %v2672 = vsel %vm2353, %v2671, %v2667
    %v2673 = vlaneseq
    %v2674 = vshrl.u32 %v2673, 7
    %v2675 = vsub.s32 %v2355, %v2674
    %v2676 = vrot.slane %v2108, %v2675
    %v2677 = vsel %vm2360, %v2676, %v2672
    %v2678 = vlaneseq
    %v2679 = vshrl.u32 %v2678, 7
    %v2680 = vsub.s32 %v1739, %v2679
    %v2681 = vrot.slane %v2111, %v2680
    %v2682 = vlaneseq
    %v2683 = vshrl.u32 %v2682, 7
    %v2684 = vsub.s32 %v2257, %v2683
    %v2685 = vrot.slane %v2114, %v2684
    %v2686 = vsel %vm2262, %v2685, %v2681
    %v2687 = vlaneseq
    %v2688 = vshrl.u32 %v2687, 7
    %v2689 = vsub.s32 %v2264, %v2688
    %v2690 = vrot.slane %v2117, %v2689
    %v2691 = vsel %vm2269, %v2690, %v2686
    %v2692 = vlaneseq
    %v2693 = vshrl.u32 %v2692, 7
    %v2694 = vsub.s32 %v2271, %v2693
    %v2695 = vrot.slane %v2120, %v2694
    %v2696 = vsel %vm2276, %v2695, %v2691
    %v2697 = vlaneseq
    %v2698 = vshrl.u32 %v2697, 7
    %v2699 = vsub.s32 %v2278, %v2698
    %v2700 = vrot.slane %v2123, %v2699
    %v2701 = vsel %vm2283, %v2700, %v2696
    %v2702 = vlaneseq
    %v2703 = vshrl.u32 %v2702, 7
    %v2704 = vsub.s32 %v2285, %v2703
    %v2705 = vrot.slane %v2126, %v2704
    %v2706 = vsel %vm2290, %v2705, %v2701
    %v2707 = vlaneseq
    %v2708 = vshrl.u32 %v2707, 7
    %v2709 = vsub.s32 %v2292, %v2708
    %v2710 = vrot.slane %v2129, %v2709
    %v2711 = vsel %vm2297, %v2710, %v2706
    %v2712 = vlaneseq
    %v2713 = vshrl.u32 %v2712, 7
    %v2714 = vsub.s32 %v2299, %v2713
    %v2715 = vrot.slane %v2132, %v2714
    %v2716 = vsel %vm2304, %v2715, %v2711
    %v2717 = vlaneseq
    %v2718 = vshrl.u32 %v2717, 7
    %v2719 = vsub.s32 %v2306, %v2718
    %v2720 = vrot.slane %v2135, %v2719
    %v2721 = vsel %vm2311, %v2720, %v2716
    %v2722 = vlaneseq
    %v2723 = vshrl.u32 %v2722, 7
    %v2724 = vsub.s32 %v2313, %v2723
    %v2725 = vrot.slane %v2138, %v2724
    %v2726 = vsel %vm2318, %v2725, %v2721
    %v2727 = vlaneseq
    %v2728 = vshrl.u32 %v2727, 7
    %v2729 = vsub.s32 %v2320, %v2728
    %v2730 = vrot.slane %v2141, %v2729
    %v2731 = vsel %vm2325, %v2730, %v2726
    %v2732 = vlaneseq
    %v2733 = vshrl.u32 %v2732, 7
    %v2734 = vsub.s32 %v2327, %v2733
    %v2735 = vrot.slane %v2144, %v2734
    %v2736 = vsel %vm2332, %v2735, %v2731
    %v2737 = vlaneseq
    %v2738 = vshrl.u32 %v2737, 7
    %v2739 = vsub.s32 %v2334, %v2738
    %v2740 = vrot.slane %v2147, %v2739
    %v2741 = vsel %vm2339, %v2740, %v2736
    %v2742 = vlaneseq
    %v2743 = vshrl.u32 %v2742, 7
    %v2744 = vsub.s32 %v2341, %v2743
    %v2745 = vrot.slane %v2150, %v2744
    %v2746 = vsel %vm2346, %v2745, %v2741
    %v2747 = vlaneseq
    %v2748 = vshrl.u32 %v2747, 7
    %v2749 = vsub.s32 %v2348, %v2748
    %v2750 = vrot.slane %v2153, %v2749
    %v2751 = vsel %vm2353, %v2750, %v2746
    %v2752 = vlaneseq
    %v2753 = vshrl.u32 %v2752, 7
    %v2754 = vsub.s32 %v2355, %v2753
    %v2755 = vrot.slane %v2156, %v2754
    %v2756 = vsel %vm2360, %v2755, %v2751
    %v2757 = vlaneseq
    %v2758 = vshrl.u32 %v2757, 7
    %v2759 = vsub.s32 %v1739, %v2758
    %v2760 = vrot.slane %v2159, %v2759
    %v2761 = vlaneseq
    %v2762 = vshrl.u32 %v2761, 7
    %v2763 = vsub.s32 %v2257, %v2762
    %v2764 = vrot.slane %v2162, %v2763
    %v2765 = vsel %vm2262, %v2764, %v2760
    %v2766 = vlaneseq
    %v2767 = vshrl.u32 %v2766, 7
    %v2768 = vsub.s32 %v2264, %v2767
    %v2769 = vrot.slane %v2165, %v2768
    %v2770 = vsel %vm2269, %v2769, %v2765
    %v2771 = vlaneseq
    %v2772 = vshrl.u32 %v2771, 7
    %v2773 = vsub.s32 %v2271, %v2772
    %v2774 = vrot.slane %v2168, %v2773
    %v2775 = vsel %vm2276, %v2774, %v2770
    %v2776 = vlaneseq
    %v2777 = vshrl.u32 %v2776, 7
    %v2778 = vsub.s32 %v2278, %v2777
    %v2779 = vrot.slane %v2171, %v2778
    %v2780 = vsel %vm2283, %v2779, %v2775
    %v2781 = vlaneseq
    %v2782 = vshrl.u32 %v2781, 7
    %v2783 = vsub.s32 %v2285, %v2782
    %v2784 = vrot.slane %v2174, %v2783
    %v2785 = vsel %vm2290, %v2784, %v2780
    %v2786 = vlaneseq
    %v2787 = vshrl.u32 %v2786, 7
    %v2788 = vsub.s32 %v2292, %v2787
    %v2789 = vrot.slane %v2177, %v2788
    %v2790 = vsel %vm2297, %v2789, %v2785
    %v2791 = vlaneseq
    %v2792 = vshrl.u32 %v2791, 7
    %v2793 = vsub.s32 %v2299, %v2792
    %v2794 = vrot.slane %v2180, %v2793
    %v2795 = vsel %vm2304, %v2794, %v2790
    %v2796 = vlaneseq
    %v2797 = vshrl.u32 %v2796, 7
    %v2798 = vsub.s32 %v2306, %v2797
    %v2799 = vrot.slane %v2183, %v2798
    %v2800 = vsel %vm2311, %v2799, %v2795
    %v2801 = vlaneseq
    %v2802 = vshrl.u32 %v2801, 7
    %v2803 = vsub.s32 %v2313, %v2802
    %v2804 = vrot.slane %v2186, %v2803
    %v2805 = vsel %vm2318, %v2804, %v2800
    %v2806 = vlaneseq
    %v2807 = vshrl.u32 %v2806, 7
    %v2808 = vsub.s32 %v2320, %v2807
    %v2809 = vrot.slane %v2189, %v2808
    %v2810 = vsel %vm2325, %v2809, %v2805
    %v2811 = vlaneseq
    %v2812 = vshrl.u32 %v2811, 7
    %v2813 = vsub.s32 %v2327, %v2812
    %v2814 = vrot.slane %v2192, %v2813
    %v2815 = vsel %vm2332, %v2814, %v2810
    %v2816 = vlaneseq
    %v2817 = vshrl.u32 %v2816, 7
    %v2818 = vsub.s32 %v2334, %v2817
    %v2819 = vrot.slane %v2195, %v2818
    %v2820 = vsel %vm2339, %v2819, %v2815
    %v2821 = vlaneseq
    %v2822 = vshrl.u32 %v2821, 7
    %v2823 = vsub.s32 %v2341, %v2822
    %v2824 = vrot.slane %v2198, %v2823
    %v2825 = vsel %vm2346, %v2824, %v2820
    %v2826 = vlaneseq
    %v2827 = vshrl.u32 %v2826, 7
    %v2828 = vsub.s32 %v2348, %v2827
    %v2829 = vrot.slane %v2201, %v2828
    %v2830 = vsel %vm2353, %v2829, %v2825
    %v2831 = vlaneseq
    %v2832 = vshrl.u32 %v2831, 7
    %v2833 = vsub.s32 %v2355, %v2832
    %v2834 = vrot.slane %v2204, %v2833
    %v2835 = vsel %vm2360, %v2834, %v2830
    %v2836 = vlaneseq
    %v2837 = vshrl.u32 %v2836, 7
    %v2838 = vsub.s32 %v1739, %v2837
    %v2839 = vrot.slane %v2207, %v2838
    %v2840 = vlaneseq
    %v2841 = vshrl.u32 %v2840, 7
    %v2842 = vsub.s32 %v2257, %v2841
    %v2843 = vrot.slane %v2210, %v2842
    %v2844 = vsel %vm2262, %v2843, %v2839
    %v2845 = vlaneseq
    %v2846 = vshrl.u32 %v2845, 7
    %v2847 = vsub.s32 %v2264, %v2846
    %v2848 = vrot.slane %v2213, %v2847
    %v2849 = vsel %vm2269, %v2848, %v2844
    %v2850 = vlaneseq
    %v2851 = vshrl.u32 %v2850, 7
    %v2852 = vsub.s32 %v2271, %v2851
    %v2853 = vrot.slane %v2216, %v2852
    %v2854 = vsel %vm2276, %v2853, %v2849
    %v2855 = vlaneseq
    %v2856 = vshrl.u32 %v2855, 7
    %v2857 = vsub.s32 %v2278, %v2856
    %v2858 = vrot.slane %v2219, %v2857
    %v2859 = vsel %vm2283, %v2858, %v2854
    %v2860 = vlaneseq
    %v2861 = vshrl.u32 %v2860, 7
    %v2862 = vsub.s32 %v2285, %v2861
    %v2863 = vrot.slane %v2222, %v2862
    %v2864 = vsel %vm2290, %v2863, %v2859
    %v2865 = vlaneseq
    %v2866 = vshrl.u32 %v2865, 7
    %v2867 = vsub.s32 %v2292, %v2866
    %v2868 = vrot.slane %v2225, %v2867
    %v2869 = vsel %vm2297, %v2868, %v2864
    %v2870 = vlaneseq
    %v2871 = vshrl.u32 %v2870, 7
    %v2872 = vsub.s32 %v2299, %v2871
    %v2873 = vrot.slane %v2228, %v2872
    %v2874 = vsel %vm2304, %v2873, %v2869
    %v2875 = vlaneseq
    %v2876 = vshrl.u32 %v2875, 7
    %v2877 = vsub.s32 %v2306, %v2876
    %v2878 = vrot.slane %v2231, %v2877
    %v2879 = vsel %vm2311, %v2878, %v2874
    %v2880 = vlaneseq
    %v2881 = vshrl.u32 %v2880, 7
    %v2882 = vsub.s32 %v2313, %v2881
    %v2883 = vrot.slane %v2234, %v2882
    %v2884 = vsel %vm2318, %v2883, %v2879
    %v2885 = vlaneseq
    %v2886 = vshrl.u32 %v2885, 7
    %v2887 = vsub.s32 %v2320, %v2886
    %v2888 = vrot.slane %v2237, %v2887
    %v2889 = vsel %vm2325, %v2888, %v2884
    %v2890 = vlaneseq
    %v2891 = vshrl.u32 %v2890, 7
    %v2892 = vsub.s32 %v2327, %v2891
    %v2893 = vrot.slane %v2240, %v2892
    %v2894 = vsel %vm2332, %v2893, %v2889
    %v2895 = vlaneseq
    %v2896 = vshrl.u32 %v2895, 7
    %v2897 = vsub.s32 %v2334, %v2896
    %v2898 = vrot.slane %v2243, %v2897
    %v2899 = vsel %vm2339, %v2898, %v2894
    %v2900 = vlaneseq
    %v2901 = vshrl.u32 %v2900, 7
    %v2902 = vsub.s32 %v2341, %v2901
    %v2903 = vrot.slane %v2246, %v2902
    %v2904 = vsel %vm2346, %v2903, %v2899
    %v2905 = vlaneseq
    %v2906 = vshrl.u32 %v2905, 7
    %v2907 = vsub.s32 %v2348, %v2906
    %v2908 = vrot.slane %v2249, %v2907
    %v2909 = vsel %vm2353, %v2908, %v2904
    %v2910 = vlaneseq
    %v2911 = vshrl.u32 %v2910, 7
    %v2912 = vsub.s32 %v2355, %v2911
    %v2913 = vrot.slane %v2252, %v2912
    %v2914 = vsel %vm2360, %v2913, %v2909
    %vm2915 = vcmask 1041409
    %v2916 = vsel %vm2915, %v2440, %v2361
    %vm2917 = vcmask 1042434
    %v2918 = vsel %vm2917, %v2519, %v2916
    %vm2919 = vcmask 1043459
    %v2920 = vsel %vm2919, %v2598, %v2918
    %vm2921 = vcmask 1044484
    %v2922 = vsel %vm2921, %v2677, %v2920
    %vm2923 = vcmask 1045509
    %v2924 = vsel %vm2923, %v2756, %v2922
    %vm2925 = vcmask 1046534
    %v2926 = vsel %vm2925, %v2835, %v2924
    %vm2927 = vcmask 1047559
    %v2928 = vsel %vm2927, %v2914, %v2926
    %v2930 = vsel %vm1740, %v2928, -inf
    %2931 = vmax.xlane.f32.xlu0 %v2930
    %v2932 = vpop.xlane.xlu0 %2931
    %v2933 = vsub.f32 %v2930, %v2932
    %v2934 = vmul.f32 %v2933, 1.442695
    %v2935 = vpow.pop %v2934
    %2936 = vadd.xlane.f32.xlu0 %v2935
    %v2937 = vpop.xlane.xlu0 %2936
    %v2938 = vrcp.pop %v2937
    %v2939 = vmul.f32 %v2935, %v2938
    %2940 = vst [vmem:[#allocation19] sm:$0xff] %v2939
    %v2941 = vlaneseq
    %v2942 = vshrl.u32 %v2941, 7
    %v2943 = vsub.s32 0, %v2942
    %v2944 = vrot.slane %v2939, %v2943
    %2946 = vbcast.lane.b32.xlu0 %v2944, 256
    %v2947 = vpop.permute.xlu0 %2946
    %s2949 = sor.u32 256, 8
    %2950 = vbcast.lane.b32.xlu0 %v2944, %s2949
    %v2951 = vpop.permute.xlu0 %2950
    %s2953 = sor.u32 256, 16
    %2954 = vbcast.lane.b32.xlu0 %v2944, %s2953
    %v2955 = vpop.permute.xlu0 %2954
    %s2957 = sor.u32 256, 24
    %2958 = vbcast.lane.b32.xlu0 %v2944, %s2957
    %v2959 = vpop.permute.xlu0 %2958
    %s2961 = sor.u32 256, 32
    %2962 = vbcast.lane.b32.xlu0 %v2944, %s2961
    %v2963 = vpop.permute.xlu0 %2962
    %s2965 = sor.u32 256, 40
    %2966 = vbcast.lane.b32.xlu0 %v2944, %s2965
    %v2967 = vpop.permute.xlu0 %2966
    %s2969 = sor.u32 256, 48
    %2970 = vbcast.lane.b32.xlu0 %v2944, %s2969
    %v2971 = vpop.permute.xlu0 %2970
    %s2973 = sor.u32 256, 56
    %2974 = vbcast.lane.b32.xlu0 %v2944, %s2973
    %v2975 = vpop.permute.xlu0 %2974
    %s2977 = sor.u32 256, 64
    %2978 = vbcast.lane.b32.xlu0 %v2944, %s2977
    %v2979 = vpop.permute.xlu0 %2978
    %s2981 = sor.u32 256, 72
    %2982 = vbcast.lane.b32.xlu0 %v2944, %s2981
    %v2983 = vpop.permute.xlu0 %2982
    %s2985 = sor.u32 256, 80
    %2986 = vbcast.lane.b32.xlu0 %v2944, %s2985
    %v2987 = vpop.permute.xlu0 %2986
    %s2989 = sor.u32 256, 88
    %2990 = vbcast.lane.b32.xlu0 %v2944, %s2989
    %v2991 = vpop.permute.xlu0 %2990
    %s2993 = sor.u32 256, 96
    %2994 = vbcast.lane.b32.xlu0 %v2944, %s2993
    %v2995 = vpop.permute.xlu0 %2994
    %s2997 = sor.u32 256, 104
    %2998 = vbcast.lane.b32.xlu0 %v2944, %s2997
    %v2999 = vpop.permute.xlu0 %2998
    %s3001 = sor.u32 256, 112
    %3002 = vbcast.lane.b32.xlu0 %v2944, %s3001
    %v3003 = vpop.permute.xlu0 %3002
    %s3005 = sor.u32 256, 120
    %3006 = vbcast.lane.b32.xlu0 %v2944, %s3005
    %v3007 = vpop.permute.xlu0 %3006
    %v3008 = vlaneseq
    %v3009 = vshrl.u32 %v3008, 7
    %v3010 = vsub.s32 1, %v3009
    %v3011 = vrot.slane %v2939, %v3010
    %3013 = vbcast.lane.b32.xlu0 %v3011, 256
    %v3014 = vpop.permute.xlu0 %3013
    %s3016 = sor.u32 256, 8
    %3017 = vbcast.lane.b32.xlu0 %v3011, %s3016
    %v3018 = vpop.permute.xlu0 %3017
    %s3020 = sor.u32 256, 16
    %3021 = vbcast.lane.b32.xlu0 %v3011, %s3020
    %v3022 = vpop.permute.xlu0 %3021
    %s3024 = sor.u32 256, 24
    %3025 = vbcast.lane.b32.xlu0 %v3011, %s3024
    %v3026 = vpop.permute.xlu0 %3025
    %s3028 = sor.u32 256, 32
    %3029 = vbcast.lane.b32.xlu0 %v3011, %s3028
    %v3030 = vpop.permute.xlu0 %3029
    %s3032 = sor.u32 256, 40
    %3033 = vbcast.lane.b32.xlu0 %v3011, %s3032
    %v3034 = vpop.permute.xlu0 %3033
    %s3036 = sor.u32 256, 48
    %3037 = vbcast.lane.b32.xlu0 %v3011, %s3036
    %v3038 = vpop.permute.xlu0 %3037
    %s3040 = sor.u32 256, 56
    %3041 = vbcast.lane.b32.xlu0 %v3011, %s3040
    %v3042 = vpop.permute.xlu0 %3041
    %s3044 = sor.u32 256, 64
    %3045 = vbcast.lane.b32.xlu0 %v3011, %s3044
    %v3046 = vpop.permute.xlu0 %3045
    %s3048 = sor.u32 256, 72
    %3049 = vbcast.lane.b32.xlu0 %v3011, %s3048
    %v3050 = vpop.permute.xlu0 %3049
    %s3052 = sor.u32 256, 80
    %3053 = vbcast.lane.b32.xlu0 %v3011, %s3052
    %v3054 = vpop.permute.xlu0 %3053
    %s3056 = sor.u32 256, 88
    %3057 = vbcast.lane.b32.xlu0 %v3011, %s3056
    %v3058 = vpop.permute.xlu0 %3057
    %s3060 = sor.u32 256, 96
    %3061 = vbcast.lane.b32.xlu0 %v3011, %s3060
    %v3062 = vpop.permute.xlu0 %3061
    %s3064 = sor.u32 256, 104
    %3065 = vbcast.lane.b32.xlu0 %v3011, %s3064
    %v3066 = vpop.permute.xlu0 %3065
    %s3068 = sor.u32 256, 112
    %3069 = vbcast.lane.b32.xlu0 %v3011, %s3068
    %v3070 = vpop.permute.xlu0 %3069
    %s3072 = sor.u32 256, 120
    %3073 = vbcast.lane.b32.xlu0 %v3011, %s3072
    %v3074 = vpop.permute.xlu0 %3073
    %v3075 = vlaneseq
    %v3076 = vshrl.u32 %v3075, 7
    %v3077 = vsub.s32 2, %v3076
    %v3078 = vrot.slane %v2939, %v3077
    %3080 = vbcast.lane.b32.xlu0 %v3078, 256
    %v3081 = vpop.permute.xlu0 %3080
    %s3083 = sor.u32 256, 8
    %3084 = vbcast.lane.b32.xlu0 %v3078, %s3083
    %v3085 = vpop.permute.xlu0 %3084
    %s3087 = sor.u32 256, 16
    %3088 = vbcast.lane.b32.xlu0 %v3078, %s3087
    %v3089 = vpop.permute.xlu0 %3088
    %s3091 = sor.u32 256, 24
    %3092 = vbcast.lane.b32.xlu0 %v3078, %s3091
    %v3093 = vpop.permute.xlu0 %3092
    %s3095 = sor.u32 256, 32
    %3096 = vbcast.lane.b32.xlu0 %v3078, %s3095
    %v3097 = vpop.permute.xlu0 %3096
    %s3099 = sor.u32 256, 40
    %3100 = vbcast.lane.b32.xlu0 %v3078, %s3099
    %v3101 = vpop.permute.xlu0 %3100
    %s3103 = sor.u32 256, 48
    %3104 = vbcast.lane.b32.xlu0 %v3078, %s3103
    %v3105 = vpop.permute.xlu0 %3104
    %s3107 = sor.u32 256, 56
    %3108 = vbcast.lane.b32.xlu0 %v3078, %s3107
    %v3109 = vpop.permute.xlu0 %3108
    %s3111 = sor.u32 256, 64
    %3112 = vbcast.lane.b32.xlu0 %v3078, %s3111
    %v3113 = vpop.permute.xlu0 %3112
    %s3115 = sor.u32 256, 72
    %3116 = vbcast.lane.b32.xlu0 %v3078, %s3115
    %v3117 = vpop.permute.xlu0 %3116
    %s3119 = sor.u32 256, 80
    %3120 = vbcast.lane.b32.xlu0 %v3078, %s3119
    %v3121 = vpop.permute.xlu0 %3120
    %s3123 = sor.u32 256, 88
    %3124 = vbcast.lane.b32.xlu0 %v3078, %s3123
    %v3125 = vpop.permute.xlu0 %3124
    %s3127 = sor.u32 256, 96
    %3128 = vbcast.lane.b32.xlu0 %v3078, %s3127
    %v3129 = vpop.permute.xlu0 %3128
    %s3131 = sor.u32 256, 104
    %3132 = vbcast.lane.b32.xlu0 %v3078, %s3131
    %v3133 = vpop.permute.xlu0 %3132
    %s3135 = sor.u32 256, 112
    %3136 = vbcast.lane.b32.xlu0 %v3078, %s3135
    %v3137 = vpop.permute.xlu0 %3136
    %s3139 = sor.u32 256, 120
    %3140 = vbcast.lane.b32.xlu0 %v3078, %s3139
    %v3141 = vpop.permute.xlu0 %3140
    %v3142 = vlaneseq
    %v3143 = vshrl.u32 %v3142, 7
    %v3144 = vsub.s32 3, %v3143
    %v3145 = vrot.slane %v2939, %v3144
    %3147 = vbcast.lane.b32.xlu0 %v3145, 256
    %v3148 = vpop.permute.xlu0 %3147
    %s3150 = sor.u32 256, 8
    %3151 = vbcast.lane.b32.xlu0 %v3145, %s3150
    %v3152 = vpop.permute.xlu0 %3151
    %s3154 = sor.u32 256, 16
    %3155 = vbcast.lane.b32.xlu0 %v3145, %s3154
    %v3156 = vpop.permute.xlu0 %3155
    %s3158 = sor.u32 256, 24
    %3159 = vbcast.lane.b32.xlu0 %v3145, %s3158
    %v3160 = vpop.permute.xlu0 %3159
    %s3162 = sor.u32 256, 32
    %3163 = vbcast.lane.b32.xlu0 %v3145, %s3162
    %v3164 = vpop.permute.xlu0 %3163
    %s3166 = sor.u32 256, 40
    %3167 = vbcast.lane.b32.xlu0 %v3145, %s3166
    %v3168 = vpop.permute.xlu0 %3167
    %s3170 = sor.u32 256, 48
    %3171 = vbcast.lane.b32.xlu0 %v3145, %s3170
    %v3172 = vpop.permute.xlu0 %3171
    %s3174 = sor.u32 256, 56
    %3175 = vbcast.lane.b32.xlu0 %v3145, %s3174
    %v3176 = vpop.permute.xlu0 %3175
    %s3178 = sor.u32 256, 64
    %3179 = vbcast.lane.b32.xlu0 %v3145, %s3178
    %v3180 = vpop.permute.xlu0 %3179
    %s3182 = sor.u32 256, 72
    %3183 = vbcast.lane.b32.xlu0 %v3145, %s3182
    %v3184 = vpop.permute.xlu0 %3183
    %s3186 = sor.u32 256, 80
    %3187 = vbcast.lane.b32.xlu0 %v3145, %s3186
    %v3188 = vpop.permute.xlu0 %3187
    %s3190 = sor.u32 256, 88
    %3191 = vbcast.lane.b32.xlu0 %v3145, %s3190
    %v3192 = vpop.permute.xlu0 %3191
    %s3194 = sor.u32 256, 96
    %3195 = vbcast.lane.b32.xlu0 %v3145, %s3194
    %v3196 = vpop.permute.xlu0 %3195
    %s3198 = sor.u32 256, 104
    %3199 = vbcast.lane.b32.xlu0 %v3145, %s3198
    %v3200 = vpop.permute.xlu0 %3199
    %s3202 = sor.u32 256, 112
    %3203 = vbcast.lane.b32.xlu0 %v3145, %s3202
    %v3204 = vpop.permute.xlu0 %3203
    %s3206 = sor.u32 256, 120
    %3207 = vbcast.lane.b32.xlu0 %v3145, %s3206
    %v3208 = vpop.permute.xlu0 %3207
    %v3209 = vlaneseq
    %v3210 = vshrl.u32 %v3209, 7
    %v3211 = vsub.s32 4, %v3210
    %v3212 = vrot.slane %v2939, %v3211
    %3214 = vbcast.lane.b32.xlu0 %v3212, 256
    %v3215 = vpop.permute.xlu0 %3214
    %s3217 = sor.u32 256, 8
    %3218 = vbcast.lane.b32.xlu0 %v3212, %s3217
    %v3219 = vpop.permute.xlu0 %3218
    %s3221 = sor.u32 256, 16
    %3222 = vbcast.lane.b32.xlu0 %v3212, %s3221
    %v3223 = vpop.permute.xlu0 %3222
    %s3225 = sor.u32 256, 24
    %3226 = vbcast.lane.b32.xlu0 %v3212, %s3225
    %v3227 = vpop.permute.xlu0 %3226
    %s3229 = sor.u32 256, 32
    %3230 = vbcast.lane.b32.xlu0 %v3212, %s3229
    %v3231 = vpop.permute.xlu0 %3230
    %s3233 = sor.u32 256, 40
    %3234 = vbcast.lane.b32.xlu0 %v3212, %s3233
    %v3235 = vpop.permute.xlu0 %3234
    %s3237 = sor.u32 256, 48
    %3238 = vbcast.lane.b32.xlu0 %v3212, %s3237
    %v3239 = vpop.permute.xlu0 %3238
    %s3241 = sor.u32 256, 56
    %3242 = vbcast.lane.b32.xlu0 %v3212, %s3241
    %v3243 = vpop.permute.xlu0 %3242
    %s3245 = sor.u32 256, 64
    %3246 = vbcast.lane.b32.xlu0 %v3212, %s3245
    %v3247 = vpop.permute.xlu0 %3246
    %s3249 = sor.u32 256, 72
    %3250 = vbcast.lane.b32.xlu0 %v3212, %s3249
    %v3251 = vpop.permute.xlu0 %3250
    %s3253 = sor.u32 256, 80
    %3254 = vbcast.lane.b32.xlu0 %v3212, %s3253
    %v3255 = vpop.permute.xlu0 %3254
    %s3257 = sor.u32 256, 88
    %3258 = vbcast.lane.b32.xlu0 %v3212, %s3257
    %v3259 = vpop.permute.xlu0 %3258
    %s3261 = sor.u32 256, 96
    %3262 = vbcast.lane.b32.xlu0 %v3212, %s3261
    %v3263 = vpop.permute.xlu0 %3262
    %s3265 = sor.u32 256, 104
    %3266 = vbcast.lane.b32.xlu0 %v3212, %s3265
    %v3267 = vpop.permute.xlu0 %3266
    %s3269 = sor.u32 256, 112
    %3270 = vbcast.lane.b32.xlu0 %v3212, %s3269
    %v3271 = vpop.permute.xlu0 %3270
    %s3273 = sor.u32 256, 120
    %3274 = vbcast.lane.b32.xlu0 %v3212, %s3273
    %v3275 = vpop.permute.xlu0 %3274
    %v3276 = vlaneseq
    %v3277 = vshrl.u32 %v3276, 7
    %v3278 = vsub.s32 5, %v3277
    %v3279 = vrot.slane %v2939, %v3278
    %3281 = vbcast.lane.b32.xlu0 %v3279, 256
    %v3282 = vpop.permute.xlu0 %3281
    %s3284 = sor.u32 256, 8
    %3285 = vbcast.lane.b32.xlu0 %v3279, %s3284
    %v3286 = vpop.permute.xlu0 %3285
    %s3288 = sor.u32 256, 16
    %3289 = vbcast.lane.b32.xlu0 %v3279, %s3288
    %v3290 = vpop.permute.xlu0 %3289
    %s3292 = sor.u32 256, 24
    %3293 = vbcast.lane.b32.xlu0 %v3279, %s3292
    %v3294 = vpop.permute.xlu0 %3293
    %s3296 = sor.u32 256, 32
    %3297 = vbcast.lane.b32.xlu0 %v3279, %s3296
    %v3298 = vpop.permute.xlu0 %3297
    %s3300 = sor.u32 256, 40
    %3301 = vbcast.lane.b32.xlu0 %v3279, %s3300
    %v3302 = vpop.permute.xlu0 %3301
    %s3304 = sor.u32 256, 48
    %3305 = vbcast.lane.b32.xlu0 %v3279, %s3304
    %v3306 = vpop.permute.xlu0 %3305
    %s3308 = sor.u32 256, 56
    %3309 = vbcast.lane.b32.xlu0 %v3279, %s3308
    %v3310 = vpop.permute.xlu0 %3309
    %s3312 = sor.u32 256, 64
    %3313 = vbcast.lane.b32.xlu0 %v3279, %s3312
    %v3314 = vpop.permute.xlu0 %3313
    %s3316 = sor.u32 256, 72
    %3317 = vbcast.lane.b32.xlu0 %v3279, %s3316
    %v3318 = vpop.permute.xlu0 %3317
    %s3320 = sor.u32 256, 80
    %3321 = vbcast.lane.b32.xlu0 %v3279, %s3320
    %v3322 = vpop.permute.xlu0 %3321
    %s3324 = sor.u32 256, 88
    %3325 = vbcast.lane.b32.xlu0 %v3279, %s3324
    %v3326 = vpop.permute.xlu0 %3325
    %s3328 = sor.u32 256, 96
    %3329 = vbcast.lane.b32.xlu0 %v3279, %s3328
    %v3330 = vpop.permute.xlu0 %3329
    %s3332 = sor.u32 256, 104
    %3333 = vbcast.lane.b32.xlu0 %v3279, %s3332
    %v3334 = vpop.permute.xlu0 %3333
    %s3336 = sor.u32 256, 112
    %3337 = vbcast.lane.b32.xlu0 %v3279, %s3336
    %v3338 = vpop.permute.xlu0 %3337
    %s3340 = sor.u32 256, 120
    %3341 = vbcast.lane.b32.xlu0 %v3279, %s3340
    %v3342 = vpop.permute.xlu0 %3341
    %v3343 = vlaneseq
    %v3344 = vshrl.u32 %v3343, 7
    %v3345 = vsub.s32 6, %v3344
    %v3346 = vrot.slane %v2939, %v3345
    %3348 = vbcast.lane.b32.xlu0 %v3346, 256
    %v3349 = vpop.permute.xlu0 %3348
    %s3351 = sor.u32 256, 8
    %3352 = vbcast.lane.b32.xlu0 %v3346, %s3351
    %v3353 = vpop.permute.xlu0 %3352
    %s3355 = sor.u32 256, 16
    %3356 = vbcast.lane.b32.xlu0 %v3346, %s3355
    %v3357 = vpop.permute.xlu0 %3356
    %s3359 = sor.u32 256, 24
    %3360 = vbcast.lane.b32.xlu0 %v3346, %s3359
    %v3361 = vpop.permute.xlu0 %3360
    %s3363 = sor.u32 256, 32
    %3364 = vbcast.lane.b32.xlu0 %v3346, %s3363
    %v3365 = vpop.permute.xlu0 %3364
    %s3367 = sor.u32 256, 40
    %3368 = vbcast.lane.b32.xlu0 %v3346, %s3367
    %v3369 = vpop.permute.xlu0 %3368
    %s3371 = sor.u32 256, 48
    %3372 = vbcast.lane.b32.xlu0 %v3346, %s3371
    %v3373 = vpop.permute.xlu0 %3372
    %s3375 = sor.u32 256, 56
    %3376 = vbcast.lane.b32.xlu0 %v3346, %s3375
    %v3377 = vpop.permute.xlu0 %3376
    %s3379 = sor.u32 256, 64
    %3380 = vbcast.lane.b32.xlu0 %v3346, %s3379
    %v3381 = vpop.permute.xlu0 %3380
    %s3383 = sor.u32 256, 72
    %3384 = vbcast.lane.b32.xlu0 %v3346, %s3383
    %v3385 = vpop.permute.xlu0 %3384
    %s3387 = sor.u32 256, 80
    %3388 = vbcast.lane.b32.xlu0 %v3346, %s3387
    %v3389 = vpop.permute.xlu0 %3388
    %s3391 = sor.u32 256, 88
    %3392 = vbcast.lane.b32.xlu0 %v3346, %s3391
    %v3393 = vpop.permute.xlu0 %3392
    %s3395 = sor.u32 256, 96
    %3396 = vbcast.lane.b32.xlu0 %v3346, %s3395
    %v3397 = vpop.permute.xlu0 %3396
    %s3399 = sor.u32 256, 104
    %3400 = vbcast.lane.b32.xlu0 %v3346, %s3399
    %v3401 = vpop.permute.xlu0 %3400
    %s3403 = sor.u32 256, 112
    %3404 = vbcast.lane.b32.xlu0 %v3346, %s3403
    %v3405 = vpop.permute.xlu0 %3404
    %s3407 = sor.u32 256, 120
    %3408 = vbcast.lane.b32.xlu0 %v3346, %s3407
    %v3409 = vpop.permute.xlu0 %3408
    %v3410 = vlaneseq
    %v3411 = vshrl.u32 %v3410, 7
    %v3412 = vsub.s32 7, %v3411
    %v3413 = vrot.slane %v2939, %v3412
    %3415 = vbcast.lane.b32.xlu0 %v3413, 256
    %v3416 = vpop.permute.xlu0 %3415
    %s3418 = sor.u32 256, 8
    %3419 = vbcast.lane.b32.xlu0 %v3413, %s3418
    %v3420 = vpop.permute.xlu0 %3419
    %s3422 = sor.u32 256, 16
    %3423 = vbcast.lane.b32.xlu0 %v3413, %s3422
    %v3424 = vpop.permute.xlu0 %3423
    %s3426 = sor.u32 256, 24
    %3427 = vbcast.lane.b32.xlu0 %v3413, %s3426
    %v3428 = vpop.permute.xlu0 %3427
    %s3430 = sor.u32 256, 32
    %3431 = vbcast.lane.b32.xlu0 %v3413, %s3430
    %v3432 = vpop.permute.xlu0 %3431
    %s3434 = sor.u32 256, 40
    %3435 = vbcast.lane.b32.xlu0 %v3413, %s3434
    %v3436 = vpop.permute.xlu0 %3435
    %s3438 = sor.u32 256, 48
    %3439 = vbcast.lane.b32.xlu0 %v3413, %s3438
    %v3440 = vpop.permute.xlu0 %3439
    %s3442 = sor.u32 256, 56
    %3443 = vbcast.lane.b32.xlu0 %v3413, %s3442
    %v3444 = vpop.permute.xlu0 %3443
    %s3446 = sor.u32 256, 64
    %3447 = vbcast.lane.b32.xlu0 %v3413, %s3446
    %v3448 = vpop.permute.xlu0 %3447
    %s3450 = sor.u32 256, 72
    %3451 = vbcast.lane.b32.xlu0 %v3413, %s3450
    %v3452 = vpop.permute.xlu0 %3451
    %s3454 = sor.u32 256, 80
    %3455 = vbcast.lane.b32.xlu0 %v3413, %s3454
    %v3456 = vpop.permute.xlu0 %3455
    %s3458 = sor.u32 256, 88
    %3459 = vbcast.lane.b32.xlu0 %v3413, %s3458
    %v3460 = vpop.permute.xlu0 %3459
    %s3462 = sor.u32 256, 96
    %3463 = vbcast.lane.b32.xlu0 %v3413, %s3462
    %v3464 = vpop.permute.xlu0 %3463
    %s3466 = sor.u32 256, 104
    %3467 = vbcast.lane.b32.xlu0 %v3413, %s3466
    %v3468 = vpop.permute.xlu0 %3467
    %s3470 = sor.u32 256, 112
    %3471 = vbcast.lane.b32.xlu0 %v3413, %s3470
    %v3472 = vpop.permute.xlu0 %3471
    %s3474 = sor.u32 256, 120
    %3475 = vbcast.lane.b32.xlu0 %v3413, %s3474
    %v3476 = vpop.permute.xlu0 %3475
    %v3477 = vmul.f32 %v2947, %v852
    %v3478 = vmul.f32 %v2951, %v853
    %v3479 = vmul.f32 %v2955, %v854
    %v3480 = vmul.f32 %v2959, %v855
    %v3481 = vmul.f32 %v2963, %v856
    %v3482 = vmul.f32 %v2967, %v857
    %v3483 = vmul.f32 %v2971, %v858
    %v3484 = vmul.f32 %v2975, %v859
    %v3485 = vmul.f32 %v2979, %v860
    %v3486 = vmul.f32 %v2983, %v861
    %v3487 = vmul.f32 %v2987, %v862
    %v3488 = vmul.f32 %v2991, %v863
    %v3489 = vmul.f32 %v2995, %v864
    %v3490 = vmul.f32 %v2999, %v865
    %v3491 = vmul.f32 %v3003, %v866
    %v3492 = vmul.f32 %v3007, %v867
    %v3493 = vmul.f32 %v3014, %v868
    %v3494 = vmul.f32 %v3018, %v869
    %v3495 = vmul.f32 %v3022, %v870
    %v3496 = vmul.f32 %v3026, %v871
    %v3497 = vmul.f32 %v3030, %v872
    %v3498 = vmul.f32 %v3034, %v873
    %v3499 = vmul.f32 %v3038, %v874
    %v3500 = vmul.f32 %v3042, %v875
    %v3501 = vmul.f32 %v3046, %v876
    %v3502 = vmul.f32 %v3050, %v877
    %v3503 = vmul.f32 %v3054, %v878
    %v3504 = vmul.f32 %v3058, %v879
    %v3505 = vmul.f32 %v3062, %v880
    %v3506 = vmul.f32 %v3066, %v881
    %v3507 = vmul.f32 %v3070, %v882
    %v3508 = vmul.f32 %v3074, %v883
    %v3509 = vmul.f32 %v3081, %v884
    %v3510 = vmul.f32 %v3085, %v885
    %v3511 = vmul.f32 %v3089, %v886
    %v3512 = vmul.f32 %v3093, %v887
    %v3513 = vmul.f32 %v3097, %v888
    %v3514 = vmul.f32 %v3101, %v889
    %v3515 = vmul.f32 %v3105, %v890
    %v3516 = vmul.f32 %v3109, %v891
    %v3517 = vmul.f32 %v3113, %v892
    %v3518 = vmul.f32 %v3117, %v893
    %v3519 = vmul.f32 %v3121, %v894
    %v3520 = vmul.f32 %v3125, %v895
    %v3521 = vmul.f32 %v3129, %v896
    %v3522 = vmul.f32 %v3133, %v897
    %v3523 = vmul.f32 %v3137, %v898
    %v3524 = vmul.f32 %v3141, %v899
    %v3525 = vmul.f32 %v3148, %v900
    %v3526 = vmul.f32 %v3152, %v901
    %v3527 = vmul.f32 %v3156, %v902
    %v3528 = vmul.f32 %v3160, %v903
    %v3529 = vmul.f32 %v3164, %v904
    %v3530 = vmul.f32 %v3168, %v905
    %v3531 = vmul.f32 %v3172, %v906
    %v3532 = vmul.f32 %v3176, %v907
    %v3533 = vmul.f32 %v3180, %v908
    %v3534 = vmul.f32 %v3184, %v909
    %v3535 = vmul.f32 %v3188, %v910
    %v3536 = vmul.f32 %v3192, %v911
    %v3537 = vmul.f32 %v3196, %v912
    %v3538 = vmul.f32 %v3200, %v913
    %v3539 = vmul.f32 %v3204, %v914
    %v3540 = vmul.f32 %v3208, %v915
    %v3541 = vmul.f32 %v3215, %v916
    %v3542 = vmul.f32 %v3219, %v917
    %v3543 = vmul.f32 %v3223, %v918
    %v3544 = vmul.f32 %v3227, %v919
    %v3545 = vmul.f32 %v3231, %v920
    %v3546 = vmul.f32 %v3235, %v921
    %v3547 = vmul.f32 %v3239, %v922
    %v3548 = vmul.f32 %v3243, %v923
    %v3549 = vmul.f32 %v3247, %v924
    %v3550 = vmul.f32 %v3251, %v925
    %v3551 = vmul.f32 %v3255, %v926
    %v3552 = vmul.f32 %v3259, %v927
    %v3553 = vmul.f32 %v3263, %v928
    %v3554 = vmul.f32 %v3267, %v929
    %v3555 = vmul.f32 %v3271, %v930
    %v3556 = vmul.f32 %v3275, %v931
    %v3557 = vmul.f32 %v3282, %v932
    %v3558 = vmul.f32 %v3286, %v933
    %v3559 = vmul.f32 %v3290, %v934
    %v3560 = vmul.f32 %v3294, %v935
    %v3561 = vmul.f32 %v3298, %v936
    %v3562 = vmul.f32 %v3302, %v937
    %v3563 = vmul.f32 %v3306, %v938
    %v3564 = vmul.f32 %v3310, %v939
    %v3565 = vmul.f32 %v3314, %v940
    %v3566 = vmul.f32 %v3318, %v941
    %v3567 = vmul.f32 %v3322, %v942
    %v3568 = vmul.f32 %v3326, %v943
    %v3569 = vmul.f32 %v3330, %v944
    %v3570 = vmul.f32 %v3334, %v945
    %v3571 = vmul.f32 %v3338, %v946
    %v3572 = vmul.f32 %v3342, %v947
    %v3573 = vmul.f32 %v3349, %v948
    %v3574 = vmul.f32 %v3353, %v949
    %v3575 = vmul.f32 %v3357, %v950
    %v3576 = vmul.f32 %v3361, %v951
    %v3577 = vmul.f32 %v3365, %v952
    %v3578 = vmul.f32 %v3369, %v953
    %v3579 = vmul.f32 %v3373, %v954
    %v3580 = vmul.f32 %v3377, %v955
    %v3581 = vmul.f32 %v3381, %v956
    %v3582 = vmul.f32 %v3385, %v957
    %v3583 = vmul.f32 %v3389, %v958
    %v3584 = vmul.f32 %v3393, %v959
    %v3585 = vmul.f32 %v3397, %v960
    %v3586 = vmul.f32 %v3401, %v961
    %v3587 = vmul.f32 %v3405, %v962
    %v3588 = vmul.f32 %v3409, %v963
    %v3589 = vmul.f32 %v3416, %v964
    %v3590 = vmul.f32 %v3420, %v965
    %v3591 = vmul.f32 %v3424, %v966
    %v3592 = vmul.f32 %v3428, %v967
    %v3593 = vmul.f32 %v3432, %v968
    %v3594 = vmul.f32 %v3436, %v969
    %v3595 = vmul.f32 %v3440, %v970
    %v3596 = vmul.f32 %v3444, %v971
    %v3597 = vmul.f32 %v3448, %v972
    %v3598 = vmul.f32 %v3452, %v973
    %v3599 = vmul.f32 %v3456, %v974
    %v3600 = vmul.f32 %v3460, %v975
    %v3601 = vmul.f32 %v3464, %v976
    %v3602 = vmul.f32 %v3468, %v977
    %v3603 = vmul.f32 %v3472, %v978
    %v3604 = vmul.f32 %v3476, %v979
    %v3605 = vadd.f32 %v3477, %v3478
    %v3606 = vadd.f32 %v3605, %v3479
    %v3607 = vadd.f32 %v3606, %v3480
    %v3608 = vadd.f32 %v3607, %v3481
    %v3609 = vadd.f32 %v3608, %v3482
    %v3610 = vadd.f32 %v3609, %v3483
    %v3611 = vadd.f32 %v3610, %v3484
    %v3612 = vadd.f32 %v3611, %v3485
    %v3613 = vadd.f32 %v3612, %v3486
    %v3614 = vadd.f32 %v3613, %v3487
    %v3615 = vadd.f32 %v3614, %v3488
    %v3616 = vadd.f32 %v3615, %v3489
    %v3617 = vadd.f32 %v3616, %v3490
    %v3618 = vadd.f32 %v3617, %v3491
    %v3619 = vadd.f32 %v3618, %v3492
    %v3620 = vrot.slane %v3619, 4
    %v3621 = vadd.f32 %v3619, %v3620
    %v3622 = vrot.slane %v3621, 2
    %v3623 = vadd.f32 %v3621, %v3622
    %v3624 = vrot.slane %v3623, 1
    %v3625 = vadd.f32 %v3623, %v3624
    %v3626 = vadd.f32 %v3493, %v3494
    %v3627 = vadd.f32 %v3626, %v3495
    %v3628 = vadd.f32 %v3627, %v3496
    %v3629 = vadd.f32 %v3628, %v3497
    %v3630 = vadd.f32 %v3629, %v3498
    %v3631 = vadd.f32 %v3630, %v3499
    %v3632 = vadd.f32 %v3631, %v3500
    %v3633 = vadd.f32 %v3632, %v3501
    %v3634 = vadd.f32 %v3633, %v3502
    %v3635 = vadd.f32 %v3634, %v3503
    %v3636 = vadd.f32 %v3635, %v3504
    %v3637 = vadd.f32 %v3636, %v3505
    %v3638 = vadd.f32 %v3637, %v3506
    %v3639 = vadd.f32 %v3638, %v3507
    %v3640 = vadd.f32 %v3639, %v3508
    %v3641 = vrot.slane %v3640, 4
    %v3642 = vadd.f32 %v3640, %v3641
    %v3643 = vrot.slane %v3642, 2
    %v3644 = vadd.f32 %v3642, %v3643
    %v3645 = vrot.slane %v3644, 1
    %v3646 = vadd.f32 %v3644, %v3645
    %v3647 = vadd.f32 %v3509, %v3510
    %v3648 = vadd.f32 %v3647, %v3511
    %v3649 = vadd.f32 %v3648, %v3512
    %v3650 = vadd.f32 %v3649, %v3513
    %v3651 = vadd.f32 %v3650, %v3514
    %v3652 = vadd.f32 %v3651, %v3515
    %v3653 = vadd.f32 %v3652, %v3516
    %v3654 = vadd.f32 %v3653, %v3517
    %v3655 = vadd.f32 %v3654, %v3518
    %v3656 = vadd.f32 %v3655, %v3519
    %v3657 = vadd.f32 %v3656, %v3520
    %v3658 = vadd.f32 %v3657, %v3521
    %v3659 = vadd.f32 %v3658, %v3522
    %v3660 = vadd.f32 %v3659, %v3523
    %v3661 = vadd.f32 %v3660, %v3524
    %v3662 = vrot.slane %v3661, 4
    %v3663 = vadd.f32 %v3661, %v3662
    %v3664 = vrot.slane %v3663, 2
    %v3665 = vadd.f32 %v3663, %v3664
    %v3666 = vrot.slane %v3665, 1
    %v3667 = vadd.f32 %v3665, %v3666
    %v3668 = vadd.f32 %v3525, %v3526
    %v3669 = vadd.f32 %v3668, %v3527
    %v3670 = vadd.f32 %v3669, %v3528
    %v3671 = vadd.f32 %v3670, %v3529
    %v3672 = vadd.f32 %v3671, %v3530
    %v3673 = vadd.f32 %v3672, %v3531
    %v3674 = vadd.f32 %v3673, %v3532
    %v3675 = vadd.f32 %v3674, %v3533
    %v3676 = vadd.f32 %v3675, %v3534
    %v3677 = vadd.f32 %v3676, %v3535
    %v3678 = vadd.f32 %v3677, %v3536
    %v3679 = vadd.f32 %v3678, %v3537
    %v3680 = vadd.f32 %v3679, %v3538
    %v3681 = vadd.f32 %v3680, %v3539
    %v3682 = vadd.f32 %v3681, %v3540
    %v3683 = vrot.slane %v3682, 4
    %v3684 = vadd.f32 %v3682, %v3683
    %v3685 = vrot.slane %v3684, 2
    %v3686 = vadd.f32 %v3684, %v3685
    %v3687 = vrot.slane %v3686, 1
    %v3688 = vadd.f32 %v3686, %v3687
    %v3689 = vadd.f32 %v3541, %v3542
    %v3690 = vadd.f32 %v3689, %v3543
    %v3691 = vadd.f32 %v3690, %v3544
    %v3692 = vadd.f32 %v3691, %v3545
    %v3693 = vadd.f32 %v3692, %v3546
    %v3694 = vadd.f32 %v3693, %v3547
    %v3695 = vadd.f32 %v3694, %v3548
    %v3696 = vadd.f32 %v3695, %v3549
    %v3697 = vadd.f32 %v3696, %v3550
    %v3698 = vadd.f32 %v3697, %v3551
    %v3699 = vadd.f32 %v3698, %v3552
    %v3700 = vadd.f32 %v3699, %v3553
    %v3701 = vadd.f32 %v3700, %v3554
    %v3702 = vadd.f32 %v3701, %v3555
    %v3703 = vadd.f32 %v3702, %v3556
    %v3704 = vrot.slane %v3703, 4
    %v3705 = vadd.f32 %v3703, %v3704
    %v3706 = vrot.slane %v3705, 2
    %v3707 = vadd.f32 %v3705, %v3706
    %v3708 = vrot.slane %v3707, 1
    %v3709 = vadd.f32 %v3707, %v3708
    %v3710 = vadd.f32 %v3557, %v3558
    %v3711 = vadd.f32 %v3710, %v3559
    %v3712 = vadd.f32 %v3711, %v3560
    %v3713 = vadd.f32 %v3712, %v3561
    %v3714 = vadd.f32 %v3713, %v3562
    %v3715 = vadd.f32 %v3714, %v3563
    %v3716 = vadd.f32 %v3715, %v3564
    %v3717 = vadd.f32 %v3716, %v3565
    %v3718 = vadd.f32 %v3717, %v3566
    %v3719 = vadd.f32 %v3718, %v3567
    %v3720 = vadd.f32 %v3719, %v3568
    %v3721 = vadd.f32 %v3720, %v3569
    %v3722 = vadd.f32 %v3721, %v3570
    %v3723 = vadd.f32 %v3722, %v3571
    %v3724 = vadd.f32 %v3723, %v3572
    %v3725 = vrot.slane %v3724, 4
    %v3726 = vadd.f32 %v3724, %v3725
    %v3727 = vrot.slane %v3726, 2
    %v3728 = vadd.f32 %v3726, %v3727
    %v3729 = vrot.slane %v3728, 1
    %v3730 = vadd.f32 %v3728, %v3729
    %v3731 = vadd.f32 %v3573, %v3574
    %v3732 = vadd.f32 %v3731, %v3575
    %v3733 = vadd.f32 %v3732, %v3576
    %v3734 = vadd.f32 %v3733, %v3577
    %v3735 = vadd.f32 %v3734, %v3578
    %v3736 = vadd.f32 %v3735, %v3579
    %v3737 = vadd.f32 %v3736, %v3580
    %v3738 = vadd.f32 %v3737, %v3581
    %v3739 = vadd.f32 %v3738, %v3582
    %v3740 = vadd.f32 %v3739, %v3583
    %v3741 = vadd.f32 %v3740, %v3584
    %v3742 = vadd.f32 %v3741, %v3585
    %v3743 = vadd.f32 %v3742, %v3586
    %v3744 = vadd.f32 %v3743, %v3587
    %v3745 = vadd.f32 %v3744, %v3588
    %v3746 = vrot.slane %v3745, 4
    %v3747 = vadd.f32 %v3745, %v3746
    %v3748 = vrot.slane %v3747, 2
    %v3749 = vadd.f32 %v3747, %v3748
    %v3750 = vrot.slane %v3749, 1
    %v3751 = vadd.f32 %v3749, %v3750
    %v3752 = vadd.f32 %v3589, %v3590
    %v3753 = vadd.f32 %v3752, %v3591
    %v3754 = vadd.f32 %v3753, %v3592
    %v3755 = vadd.f32 %v3754, %v3593
    %v3756 = vadd.f32 %v3755, %v3594
    %v3757 = vadd.f32 %v3756, %v3595
    %v3758 = vadd.f32 %v3757, %v3596
    %v3759 = vadd.f32 %v3758, %v3597
    %v3760 = vadd.f32 %v3759, %v3598
    %v3761 = vadd.f32 %v3760, %v3599
    %v3762 = vadd.f32 %v3761, %v3600
    %v3763 = vadd.f32 %v3762, %v3601
    %v3764 = vadd.f32 %v3763, %v3602
    %v3765 = vadd.f32 %v3764, %v3603
    %v3766 = vadd.f32 %v3765, %v3604
    %v3767 = vrot.slane %v3766, 4
    %v3768 = vadd.f32 %v3766, %v3767
    %v3769 = vrot.slane %v3768, 2
    %v3770 = vadd.f32 %v3768, %v3769
    %v3771 = vrot.slane %v3770, 1
    %v3772 = vadd.f32 %v3770, %v3771
    %v3773 = vld [vmem:[#allocation15] sm:$0xf]
    %v3774 = vld [vmem:[#allocation15 + $0x4] sm:$0xf]
    %v3775 = vld [vmem:[#allocation15 + $0x8] sm:$0xf]
    %v3776 = vld [vmem:[#allocation15 + $0xc] sm:$0xf]
    %v3777 = vld [vmem:[#allocation15 + $0x10] sm:$0xf]
    %v3778 = vld [vmem:[#allocation15 + $0x14] sm:$0xf]
    %v3779 = vld [vmem:[#allocation15 + $0x18] sm:$0xf]
    %v3780 = vld [vmem:[#allocation15 + $0x1c] sm:$0xf]
    %v3781 = vld [vmem:[#allocation15 + $0x20] sm:$0xf]
    %v3782 = vld [vmem:[#allocation15 + $0x24] sm:$0xf]
    %v3783 = vld [vmem:[#allocation15 + $0x28] sm:$0xf]
    %v3784 = vld [vmem:[#allocation15 + $0x2c] sm:$0xf]
    %v3785 = vld [vmem:[#allocation15 + $0x30] sm:$0xf]
    %v3786 = vld [vmem:[#allocation15 + $0x34] sm:$0xf]
    %v3787 = vld [vmem:[#allocation15 + $0x38] sm:$0xf]
    %v3788 = vld [vmem:[#allocation15 + $0x3c] sm:$0xf]
    %v3789 = vpack.c.bf16 %v3625, %v3625
    %v3790 = vpack.c.bf16 %v3646, %v3646
    %v3791 = vpack.c.bf16 %v3667, %v3667
    %v3792 = vpack.c.bf16 %v3688, %v3688
    %v3793 = vpack.c.bf16 %v3709, %v3709
    %v3794 = vpack.c.bf16 %v3730, %v3730
    %v3795 = vpack.c.bf16 %v3751, %v3751
    %v3796 = vpack.c.bf16 %v3772, %v3772
    %v3797 = vld [vmem:[#allocation17] sm:$0xf]
    %v3798 = vld [vmem:[#allocation17 + $0x4] sm:$0xf]
    %v3799 = vld [vmem:[#allocation17 + $0x8] sm:$0xf]
    %v3800 = vld [vmem:[#allocation17 + $0xc] sm:$0xf]
    %v3801 = vld [vmem:[#allocation17 + $0x10] sm:$0xf]
    %v3802 = vld [vmem:[#allocation17 + $0x14] sm:$0xf]
    %v3803 = vld [vmem:[#allocation17 + $0x18] sm:$0xf]
    %v3804 = vld [vmem:[#allocation17 + $0x1c] sm:$0xf]
    %v3805 = vld [vmem:[#allocation17 + $0x20] sm:$0xf]
    %v3806 = vld [vmem:[#allocation17 + $0x24] sm:$0xf]
    %v3807 = vld [vmem:[#allocation17 + $0x28] sm:$0xf]
    %v3808 = vld [vmem:[#allocation17 + $0x2c] sm:$0xf]
    %v3809 = vld [vmem:[#allocation17 + $0x30] sm:$0xf]
    %v3810 = vld [vmem:[#allocation17 + $0x34] sm:$0xf]
    %v3811 = vld [vmem:[#allocation17 + $0x38] sm:$0xf]
    %v3812 = vld [vmem:[#allocation17 + $0x3c] sm:$0xf]
    %v3821 = vunpack.c.l.b16 %v3789
    %v3822 = vunpack.c.l.b16 %v3790
    %v3823 = vunpack.c.l.b16 %v3791
    %v3824 = vunpack.c.l.b16 %v3792
    %v3825 = vunpack.c.l.b16 %v3793
    %v3826 = vunpack.c.l.b16 %v3794
    %v3827 = vunpack.c.l.b16 %v3795
    %v3828 = vunpack.c.l.b16 %v3796
    %v3829 = vsel %vm2915, %v3822, %v3821
    %v3830 = vsel %vm2917, %v3823, %v3829
    %v3831 = vsel %vm2919, %v3824, %v3830
    %v3832 = vsel %vm2921, %v3825, %v3831
    %v3833 = vsel %vm2923, %v3826, %v3832
    %v3834 = vsel %vm2925, %v3827, %v3833
    %v3835 = vsel %vm2927, %v3828, %v3834
    %v3836 = vpack.c.b16 %v3835, %v3835
    %v3854 = vunpack.c.l.b16 %v3797
    %v3855 = vunpack.c.l.b16 %v3798
    %v3856 = vunpack.c.l.b16 %v3799
    %v3857 = vunpack.c.l.b16 %v3800
    %v3858 = vunpack.c.l.b16 %v3801
    %v3859 = vunpack.c.l.b16 %v3802
    %v3860 = vunpack.c.l.b16 %v3803
    %v3861 = vunpack.c.l.b16 %v3804
    %v3862 = vunpack.c.l.b16 %v3805
    %v3863 = vunpack.c.l.b16 %v3806
    %v3864 = vunpack.c.l.b16 %v3807
    %v3865 = vunpack.c.l.b16 %v3808
    %v3866 = vunpack.c.l.b16 %v3809
    %v3867 = vunpack.c.l.b16 %v3810
    %v3868 = vunpack.c.l.b16 %v3811
    %v3869 = vunpack.c.l.b16 %v3812
    %v3870 = vpack.c.b16 %v3855, %v3854
    %v3871 = vpack.c.b16 %v3857, %v3856
    %v3872 = vpack.c.b16 %v3859, %v3858
    %v3873 = vpack.c.b16 %v3861, %v3860
    %v3874 = vpack.c.b16 %v3863, %v3862
    %v3875 = vpack.c.b16 %v3865, %v3864
    %v3876 = vpack.c.b16 %v3867, %v3866
    %v3877 = vpack.c.b16 %v3869, %v3868
    %3886 = vmatprep.subr.bf16.mxu0 0
    %3887 = vmatpush1.bf16.msra.mxu0 %v3877
    %3888 = vmatprep.subr.bf16.mxu0 0
    %3889 = vmatpush1.bf16.msra.mxu0 %v3876
    %3890 = vmatprep.subr.bf16.mxu0 0
    %3891 = vmatpush1.bf16.msra.mxu0 %v3875
    %3892 = vmatprep.subr.bf16.mxu0 0
    %3893 = vmatpush1.bf16.msra.mxu0 %v3874
    %3894 = vmatprep.subr.bf16.mxu0 0
    %3895 = vmatpush1.bf16.msra.mxu0 %v3873
    %3896 = vmatprep.subr.bf16.mxu0 0
    %3897 = vmatpush1.bf16.msra.mxu0 %v3872
    %3898 = vmatprep.subr.bf16.mxu0 0
    %3899 = vmatpush1.bf16.msra.mxu0 %v3871
    %3900 = vmatprep.subr.bf16.mxu0 0
    %3901 = vmatpush1.bf16.msra.mxu0 %v3870
    %3902 = vmatprep.subr.bf16.mxu0 0
    %3903 = vmatpush2.bf16.msra.mxu0 0
    %3904 = vmatprep.subr.bf16.mxu0 0
    %3905 = vmatpush2.bf16.msra.mxu0 0
    %3906 = vmatprep.subr.bf16.mxu0 0
    %3907 = vmatpush2.bf16.msra.mxu0 0
    %3908 = vmatprep.subr.bf16.mxu0 0
    %3909 = vmatpush2.bf16.msra.mxu0 0
    %3910 = vmatprep.subr.bf16.mxu0 0
    %3911 = vmatpush2.bf16.msra.mxu0 0
    %3912 = vmatprep.subr.bf16.mxu0 0
    %3913 = vmatpush2.bf16.msra.mxu0 0
    %3914 = vmatprep.subr.bf16.mxu0 0
    %3915 = vmatpush2.bf16.msra.mxu0 0
    %3916 = vmatprep.subr.bf16.mxu0 0
    %3917 = vmatpush2.bf16.msra.mxu0 0
    %3918 = vmatprep.mubr.bf16.mxu0 0
    %3919 = vmatmul.mubr.bf16.gmra.mxu0 %v3836
    %v3920 = vpop.f32.mrf.mxu0
    %v3921 = vadd.f32 0.0, %v3920
    %v3922 = vpop.f32.mrf.mxu0
    %v3923 = vpop.f32.mrf.mxu0
    %v3924 = vpop.f32.mrf.mxu0
    %3925 = vdwg.mxu0
    %v3942 = vunpack.c.l.b16 %v3773
    %v3943 = vunpack.c.l.b16 %v3774
    %v3944 = vunpack.c.l.b16 %v3775
    %v3945 = vunpack.c.l.b16 %v3776
    %v3946 = vunpack.c.l.b16 %v3777
    %v3947 = vunpack.c.l.b16 %v3778
    %v3948 = vunpack.c.l.b16 %v3779
    %v3949 = vunpack.c.l.b16 %v3780
    %v3950 = vunpack.c.l.b16 %v3781
    %v3951 = vunpack.c.l.b16 %v3782
    %v3952 = vunpack.c.l.b16 %v3783
    %v3953 = vunpack.c.l.b16 %v3784
    %v3954 = vunpack.c.l.b16 %v3785
    %v3955 = vunpack.c.l.b16 %v3786
    %v3956 = vunpack.c.l.b16 %v3787
    %v3957 = vunpack.c.l.b16 %v3788
    %v3958 = vpack.c.b16 %v3943, %v3942
    %v3959 = vpack.c.b16 %v3945, %v3944
    %v3960 = vpack.c.b16 %v3947, %v3946
    %v3961 = vpack.c.b16 %v3949, %v3948
    %v3962 = vpack.c.b16 %v3951, %v3950
    %v3963 = vpack.c.b16 %v3953, %v3952
    %v3964 = vpack.c.b16 %v3955, %v3954
    %v3965 = vpack.c.b16 %v3957, %v3956
    %3974 = vmatprep.subr.bf16.mxu0 0
    %3975 = vmatpush1.bf16.msra.mxu0 %v3965
    %3976 = vmatprep.subr.bf16.mxu0 0
    %3977 = vmatpush1.bf16.msra.mxu0 %v3964
    %3978 = vmatprep.subr.bf16.mxu0 0
    %3979 = vmatpush1.bf16.msra.mxu0 %v3963
    %3980 = vmatprep.subr.bf16.mxu0 0
    %3981 = vmatpush1.bf16.msra.mxu0 %v3962
    %3982 = vmatprep.subr.bf16.mxu0 0
    %3983 = vmatpush1.bf16.msra.mxu0 %v3961
    %3984 = vmatprep.subr.bf16.mxu0 0
    %3985 = vmatpush1.bf16.msra.mxu0 %v3960
    %3986 = vmatprep.subr.bf16.mxu0 0
    %3987 = vmatpush1.bf16.msra.mxu0 %v3959
    %3988 = vmatprep.subr.bf16.mxu0 0
    %3989 = vmatpush1.bf16.msra.mxu0 %v3958
    %3990 = vmatprep.subr.bf16.mxu0 0
    %3991 = vmatpush2.bf16.msra.mxu0 0
    %3992 = vmatprep.subr.bf16.mxu0 0
    %3993 = vmatpush2.bf16.msra.mxu0 0
    %3994 = vmatprep.subr.bf16.mxu0 0
    %3995 = vmatpush2.bf16.msra.mxu0 0
    %3996 = vmatprep.subr.bf16.mxu0 0
    %3997 = vmatpush2.bf16.msra.mxu0 0
    %3998 = vmatprep.subr.bf16.mxu0 0
    %3999 = vmatpush2.bf16.msra.mxu0 0
    %4000 = vmatprep.subr.bf16.mxu0 0
    %4001 = vmatpush2.bf16.msra.mxu0 0
    %4002 = vmatprep.subr.bf16.mxu0 0
    %4003 = vmatpush2.bf16.msra.mxu0 0
    %4004 = vmatprep.subr.bf16.mxu0 0
    %4005 = vmatpush2.bf16.msra.mxu0 0
    %4006 = vmatprep.mubr.bf16.mxu0 0
    %4007 = vmatmul.mubr.bf16.gmra.mxu0 %v980
    %v4008 = vpop.f32.mrf.mxu0
    %v4009 = vadd.f32 %v3921, %v4008
    %v4010 = vpop.f32.mrf.mxu0
    %v4011 = vpop.f32.mrf.mxu0
    %v4012 = vpop.f32.mrf.mxu0
    %4013 = vdwg.mxu0
    %v4014 = vld [vmem:[%s12] sm:$0x1]
    %v4016 = vlaneseq
    %v4017 = vshrl.u32 %v4016, 7
    %v4018 = vsub.s32 0, %v4017
    %v4019 = vrot.slane %v4014, %v4018
    %v4021 = vadd.f32 %v4009, %v4019
    %v4022 = vtanh.pop %v4021
    %v4023 = vpack.c.bf16 %v4022, %v4022
    %4024 = vst [vmem:[#allocation21] sm:$0xf] %v4023
    // Predicated region
    $region82: #{tpu_custom_call.1} parent=1 // pred_check
      _
    $region83: #{tpu_custom_call.1} parent=1 // pred_check_branch
      %4026 = sbr.rel (0) target = $region85
    $region84: #{tpu_custom_call.1} parent=1 // pred_region
      %s4028 = ssub.s32 128, 128
      %4029 = vsyncadd [#allocation8], %s4028
      %s4031 = sshll.u32 [#allocation18], 4
      %s4032 = int_to_ptr.vmem [resolvable:$true] %s4031
      %4034 = dma.vmem_to_hbm [thread:$0]  %s4032, 128, %s13, [#allocation8]
    $region85: #{tpu_custom_call.1} parent=1 // pred_fallthru
      _
    // Predicated region
    $region86: #{tpu_custom_call.1} parent=1 // pred_check
      _
    $region87: #{tpu_custom_call.1} parent=1 // pred_check_branch
      %4036 = sbr.rel (0) target = $region89
    $region88: #{tpu_custom_call.1} parent=1 // pred_region
      %s4038 = ssub.s32 128, 128
      %4039 = vsyncadd [#allocation20], %s4038
      %s4041 = sshll.u32 [#allocation19], 4
      %s4042 = int_to_ptr.vmem [resolvable:$true] %s4041
      %4044 = dma.vmem_to_hbm [thread:$0]  %s4042, 128, %s14, [#allocation20]
    $region89: #{tpu_custom_call.1} parent=1 // pred_fallthru
      _
    // Predicated region
    $region90: #{tpu_custom_call.1} parent=1 // pred_check
      _
    $region91: #{tpu_custom_call.1} parent=1 // pred_check_branch
      %4046 = sbr.rel (0) target = $region93
    $region92: #{tpu_custom_call.1} parent=1 // pred_region
      %s4048 = ssub.s32 64, 64
      %4049 = vsyncadd [#allocation20], %s4048
      %s4051 = sshll.u32 [#allocation21], 4
      %s4052 = int_to_ptr.vmem [resolvable:$true] %s4051
      %4054 = dma.vmem_to_hbm [thread:$0]  %s4052, 64, %s15, [#allocation20]
    $region93: #{tpu_custom_call.1} parent=1 // pred_fallthru
      _
    // Predicated region
    $region94: #{tpu_custom_call.1} parent=1 // pred_check
      _
    $region95: #{tpu_custom_call.1} parent=1 // pred_check_branch
      %4056 = sbr.rel (0) target = $region97
    $region96: #{tpu_custom_call.1} parent=1 // pred_region
      %4057 = dma.done [#allocation8], 128
    $region97: #{tpu_custom_call.1} parent=1 // pred_fallthru
      _
    // Predicated region
    $region98: #{tpu_custom_call.1} parent=1 // pred_check
      _
    $region99: #{tpu_custom_call.1} parent=1 // pred_check_branch
      %4059 = sbr.rel (0) target = $region101
    $region100: #{tpu_custom_call.1} parent=1 // pred_region
      %4060 = dma.done [#allocation20], 128
    $region101: #{tpu_custom_call.1} parent=1 // pred_fallthru
      _
    // Predicated region
    $region102: #{tpu_custom_call.1} parent=1 // pred_check
      _
    $region103: #{tpu_custom_call.1} parent=1 // pred_check_branch
      %4062 = sbr.rel (0) target = $region105
    $region104: #{tpu_custom_call.1} parent=1 // pred_region
      %4063 = dma.done [#allocation20], 64
    $region105: #{tpu_custom_call.1} parent=1 // pred_fallthru
      _
    %4064 = vsyncpa [#allocation7], 1
    %4065 = vsyncpa [#allocation10], 1
    %4066 = vsyncpa [#allocation13], 1
    %4067 = vsyncpa [#allocation16], 1
    %4068 = vsyncpa [#allocation8], 1
    %4069 = vsyncpa [#allocation20], 1
  %4070 = vsyncmov [#allocation3]
  %s4071 = vpop.sfrf %4070
  %p4072 = scmp.eq.s32.totalorder %s4071, 0
  %p4073 = pneg %p4072
  %4075 = shalt.err (%p4073)
  %s4076 = scalar_lea.sflag [#allocation3], 1
  %4077 = vsyncmov %s4076
  %s4078 = vpop.sfrf %4077
  %p4079 = scmp.eq.s32.totalorder %s4078, 0
  %p4080 = pneg %p4079
  %4082 = shalt.err (%p4080)

</llo_original>
